<compile_context>
chip_gen: v6e
topology: v6e:2x2x1
jax: 0.10.0
libtpu: 0.0.40
codegen_flags: <defaults>
</compile_context>

<pallas_src>
import functools

import jax
import jax.numpy as jnp
from jax.experimental import pallas as pl
from jax.experimental.pallas import tpu as pltpu


# --------------------------------------------------------------------------- #
# Kernel
# --------------------------------------------------------------------------- #
def resmlp_kernel(x_ref, w0_ref, b0_ref, wb_ref, bb_ref, wo_ref, bo_ref, o_ref,
                  *, num_blocks, block_size):
    compute_dtype = w0_ref.dtype  # bf16 weights -> bf16 MXU operands

    # Input projection: (TB, 3072)bf16 @ (3072, H)bf16 -> f32 acc, + f32 bias.
    x = jnp.dot(x_ref[...], w0_ref[...],
                preferred_element_type=jnp.float32) + b0_ref[...]

    # Residual MLP blocks (statically unrolled; fine for small L).
    # TODO(synk): for large L*H*H (wb block >~ 8-16 MiB), keep wb in HBM
    # (memory_space=pl.ANY / L-blocked spec) and pipeline one (1, H, H) layer
    # tile at a time (pltpu.emit_pipeline or manual 2-deep double buffer) so
    # weight residency stays bounded on v7x's 64 MiB VMEM.
    layer_idx = 0
    for _ in range(num_blocks):
        x_res = x
        for _ in range(block_size):
            # relu in f32 (v5e has no bf16 VALU), cast only for the MXU operand.
            h = jnp.maximum(x_res, 0.0).astype(compute_dtype)
            x_res = jnp.dot(h, wb_ref[layer_idx],
                            preferred_element_type=jnp.float32) + bb_ref[layer_idx]
            x = x + x_res                        # residual add stays f32 (VPU)
            layer_idx += 1

    # Output projection onto the lane-dense padded width (TB, 128*k).
    out = jnp.dot(x.astype(compute_dtype), wo_ref[...],
                  preferred_element_type=jnp.float32) + bo_ref[...]
    o_ref[...] = out.astype(o_ref.dtype)


# --------------------------------------------------------------------------- #
# One-time parameter preparation (init-time, outside the forward path)
# --------------------------------------------------------------------------- #
def prepare_params(w0, b0, wb, bb, wo, bo):
    """Convert weights to bf16 and pad the output projection to 128 lanes.

    Hoisted out of the per-call forward so each forward only reads the already
    converted/padded weights from HBM (no f32 re-read + bf16 write per step).
    """
    H, D_out = wo.shape
    D_out_pad = ((D_out + 127) // 128) * 128
    wo_pad = jnp.zeros((H, D_out_pad), jnp.float32).at[:, :D_out].set(wo)
    bo_pad = jnp.zeros((1, D_out_pad), jnp.float32).at[:, :D_out].set(bo)
    return dict(
        w0=w0.astype(jnp.bfloat16),
        b0=b0.astype(jnp.float32),
        wb=wb.astype(jnp.bfloat16),
        bb=bb.astype(jnp.float32),
        wo=wo_pad.astype(jnp.bfloat16),
        bo=bo_pad,
        d_out=D_out,
    )


def _pick_batch_tile(B):
    # Prefer >= 4 grid steps (2 per TensorCore on v7x megacore, each still
    # pipelining its x-tile DMA); fall back to >= 2 steps, then 1.  Larger
    # tiles amortize the ~0.35 us per-grid-step overhead on v5e/v6e.
    for min_steps in (4, 2, 1):
        for tb in (512, 256, 128, 64, 32, 16, 8):
            if tb * min_steps <= B and B % tb == 0:
                return tb
    return B


def _vmem_limit_bytes(TB, D_in, H, L, D_out_pad):
    # 2x x-tile (bf16, double-buffered) + 2x out-tile (f32, double-buffered)
    # + weights/biases single-buffered (Buffered(1)), +25% headroom
    # + ~4 MiB for Mosaic internal scratch.  Kept under v7x's 64 MiB physical.
    x_tile = 2 * TB * D_in * 2
    o_tile = 2 * TB * D_out_pad * 4
    weights = (D_in * H * 2 + H * 4
               + L * H * H * 2 + L * H * 4
               + H * D_out_pad * 2 + D_out_pad * 4)
    total = int((x_tile + o_tile + weights) * 1.25) + (4 << 20)
    return max(16 << 20, min(total, 56 << 20))


# --------------------------------------------------------------------------- #
# Forward wrapper
# --------------------------------------------------------------------------- #
def simple_resmlp_forward(x, params, *, num_blocks, block_size, batch_tile=None):
    B, D_in = x.shape
    w0, b0, wb, bb, wo, bo = (params["w0"], params["b0"], params["wb"],
                              params["bb"], params["wo"], params["bo"])
    H = w0.shape[1]
    D_out_pad = wo.shape[1]
    D_out = params["d_out"]
    L = num_blocks * block_size
    assert wb.shape == (L, H, H) and bb.shape == (L, 1, H)
    assert (w0.dtype == jnp.bfloat16 and wb.dtype == jnp.bfloat16
            and wo.dtype == jnp.bfloat16), "run prepare_params() first (bf16 weights)"

    # x is the dominant HBM stream; it should already arrive as bf16 (cast fused
    # into the producer).  The fallback cast below is only a safety net.
    if x.dtype != jnp.bfloat16:
        # TODO(synk): fuse this cast into the upstream producer of x instead.
        x = x.astype(jnp.bfloat16)

    TB = batch_tile if batch_tile is not None else _pick_batch_tile(B)
    TB = min(TB, B)
    assert B % TB == 0, "batch must be divisible by the batch tile"
    assert TB % 8 == 0, "batch tile must be a multiple of 8 (sublane tiling)"

    kernel = functools.partial(resmlp_kernel,
                               num_blocks=num_blocks, block_size=block_size)

    inv = pl.Buffered(1)  # grid-invariant blocks: single-buffered

    out_pad = pl.pallas_call(
        kernel,
        out_shape=jax.ShapeDtypeStruct((B, D_out_pad), jnp.float32),
        grid_spec=pl.GridSpec(
            grid=(B // TB,),
            in_specs=[
                pl.BlockSpec((TB, D_in), lambda i: (i, 0)),                      # x tile (bf16, pipelined)
                pl.BlockSpec((D_in, H), lambda i: (0, 0), pipeline_mode=inv),    # W0 (bf16)
                pl.BlockSpec((1, H), lambda i: (0, 0), pipeline_mode=inv),       # b0 (f32)
                pl.BlockSpec((L, H, H), lambda i: (0, 0, 0), pipeline_mode=inv), # block weights (bf16)
                pl.BlockSpec((L, 1, H), lambda i: (0, 0, 0), pipeline_mode=inv), # block biases (f32)
                pl.BlockSpec((H, D_out_pad), lambda i: (0, 0), pipeline_mode=inv),  # Wout padded (bf16)
                pl.BlockSpec((1, D_out_pad), lambda i: (0, 0), pipeline_mode=inv),  # bout padded (f32)
            ],
            out_specs=pl.BlockSpec((TB, D_out_pad), lambda i: (i, 0)),           # lane-dense output
        ),
        compiler_params=pltpu.CompilerParams(
            dimension_semantics=("parallel",),
            vmem_limit_bytes=_vmem_limit_bytes(TB, D_in, H, L, D_out_pad)),
    )(x, w0, b0, wb, bb, wo, bo)

    return out_pad[:, :D_out]


# --------------------------------------------------------------------------- #
# References
# --------------------------------------------------------------------------- #
def reference_forward_bf16(x_bf, w0, b0, wb, bb, wo, bo, *, num_blocks, block_size):
    # Same bf16-operand / f32-accumulate recipe as the kernel (tight check).
    bf = jnp.bfloat16
    x = jnp.dot(x_bf.astype(bf), w0.astype(bf),
                preferred_element_type=jnp.float32) + b0
    l = 0
    for _ in range(num_blocks):
        x_res = x
        for _ in range(block_size):
            h = jnp.maximum(x_res, 0.0).astype(bf)
            x_res = jnp.dot(h, wb[l].astype(bf),
                            preferred_element_type=jnp.float32) + bb[l]
            x = x + x_res
            l += 1
    return jnp.dot(x.astype(bf), wo.astype(bf),
                   preferred_element_type=jnp.float32) + bo


def reference_forward_f32(x, w0, b0, wb, bb, wo, bo, *, num_blocks, block_size):
    # Pure-f32 forward (PyTorch semantics) at HIGHEST matmul precision.
    hp = jax.lax.Precision.HIGHEST
    x = jnp.dot(x, w0, precision=hp) + b0
    l = 0
    for _ in range(num_blocks):
        x_res = x
        for _ in range(block_size):
            x_res = jnp.dot(jnp.maximum(x_res, 0.0), wb[l], precision=hp) + bb[l]
            x = x + x_res
            l += 1
    return jnp.dot(x, wo, precision=hp) + bo


# --------------------------------------------------------------------------- #
# Demo / self-test
# --------------------------------------------------------------------------- #
if __name__ == "__main__":
    # Module hyperparameters (consistent with the PyTorch __init__).
    width_mult = 1
    depth_mult = 1
    block_size = 1
    num_blocks = 4 * depth_mult              # base_hidden_blocks * depth_mult
    L = num_blocks * block_size
    H = 128 * width_mult
    D_in, D_out = 3072, 10
    B = 512                                   # 4 grid steps of TB=128

    key = jax.random.PRNGKey(0)
    kx, k0, kb_w, kb_b, ko_w, ko_b = jax.random.split(key, 6)

    # Deterministic parameter init mirroring the PyTorch scales.
    w0 = jax.random.normal(k0, (D_in, H), jnp.float32) / jnp.sqrt(D_in)
    b0 = jnp.zeros((1, H), jnp.float32)
    wb = (jax.random.normal(kb_w, (L, H, H), jnp.float32)
          * jnp.sqrt(2.0 / H)
          / (depth_mult ** (1.0 / block_size)) ** 0.5)
    bb = jax.random.uniform(kb_b, (L, 1, H), jnp.float32,
                            minval=-1.0 / jnp.sqrt(H), maxval=1.0 / jnp.sqrt(H))
    wo = jax.random.uniform(ko_w, (H, D_out), jnp.float32,
                            minval=-1.0 / jnp.sqrt(H), maxval=1.0 / jnp.sqrt(H))
    bo = jax.random.uniform(ko_b, (1, D_out), jnp.float32,
                            minval=-1.0 / jnp.sqrt(H), maxval=1.0 / jnp.sqrt(H))

    x_f32 = jax.random.normal(kx, (B, D_in), jnp.float32)

    # One-time, init-time conversions (outside the forward path):
    params = prepare_params(w0, b0, wb, bb, wo, bo)     # bf16 weights + padded Wout
    x_bf16 = x_f32.astype(jnp.bfloat16)                 # producer-side bf16 activations

    out = simple_resmlp_forward(x_bf16, params,
                                num_blocks=num_blocks, block_size=block_size)
    out = jax.block_until_ready(out)
    assert out.shape == (B, D_out)

    # (1) Tight check vs the identical bf16-operand / f32-accumulate recipe.
    ref_bf = reference_forward_bf16(x_bf16, w0, b0, wb, bb, wo, bo,
                                    num_blocks=num_blocks, block_size=block_size)
    assert jnp.allclose(out, ref_bf, atol=1e-2, rtol=1e-2), (
        f"bf16-recipe mismatch, max abs err = {jnp.max(jnp.abs(out - ref_bf))}")

    # (2) Fidelity vs the pure-f32 PyTorch-equivalent forward (quantifies bf16
    #     operand rounding; accumulation is f32 so the error is bounded).
    ref_f32 = reference_forward_f32(x_f32, w0, b0, wb, bb, wo, bo,
                                    num_blocks=num_blocks, block_size=block_size)
    err = out - ref_f32
    rel_rms = float(jnp.sqrt(jnp.mean(err * err)) / jnp.sqrt(jnp.mean(ref_f32 * ref_f32)))
    max_abs = float(jnp.max(jnp.abs(err)))
    assert rel_rms < 0.06, (
        f"bf16-vs-f32 relative RMS error {rel_rms:.4f} (max abs {max_abs:.4f})")

    print("KERNEL_OK")
</pallas_src>

<mosaic_0001>
module attributes {stable_mosaic.version = 11 : i64} {
  func.func @resmlp_kernel(%arg0: i32, %arg1: memref<128x3072xbf16, #tpu.memory_space<vmem>>, %arg2: memref<3072x128xbf16, #tpu.memory_space<vmem>>, %arg3: memref<1x128xf32, #tpu.memory_space<vmem>>, %arg4: memref<4x128x128xbf16, #tpu.memory_space<vmem>>, %arg5: memref<4x1x128xf32, #tpu.memory_space<vmem>>, %arg6: memref<128x128xbf16, #tpu.memory_space<vmem>>, %arg7: memref<1x128xf32, #tpu.memory_space<vmem>>, %arg8: memref<128x128xf32, #tpu.memory_space<vmem>>) attributes {dimension_semantics = [#tpu.dimension_semantics<parallel>], iteration_bounds = array<i64: 4>, scalar_prefetch = 0 : i64, scratch_operands = 0 : i64, tpu.core_type = #tpu.core_type<tc>, window_params = [{transform_indices = @transform_0, window_bounds = array<i64: 128, 3072>}, {pipeline_mode = #tpu.pipeline_mode<synchronous>, transform_indices = @transform_1, window_bounds = array<i64: 3072, 128>}, {pipeline_mode = #tpu.pipeline_mode<synchronous>, transform_indices = @transform_2, window_bounds = array<i64: 1, 128>}, {pipeline_mode = #tpu.pipeline_mode<synchronous>, transform_indices = @transform_3, window_bounds = array<i64: 4, 128, 128>}, {pipeline_mode = #tpu.pipeline_mode<synchronous>, transform_indices = @transform_4, window_bounds = array<i64: 4, 1, 128>}, {pipeline_mode = #tpu.pipeline_mode<synchronous>, transform_indices = @transform_5, window_bounds = array<i64: 128, 128>}, {pipeline_mode = #tpu.pipeline_mode<synchronous>, transform_indices = @transform_6, window_bounds = array<i64: 1, 128>}, {transform_indices = @transform_7, window_bounds = array<i64: 128, 128>}]} {
    %c0 = arith.constant 0 : index
    %c0_0 = arith.constant 0 : index
    %0 = vector.load %arg1[%c0, %c0_0] : memref<128x3072xbf16, #tpu.memory_space<vmem>>, vector<128x3072xbf16>
    %c0_1 = arith.constant 0 : index
    %c0_2 = arith.constant 0 : index
    %1 = vector.load %arg2[%c0_1, %c0_2] : memref<3072x128xbf16, #tpu.memory_space<vmem>>, vector<3072x128xbf16>
    %cst = arith.constant dense<0.000000e+00> : vector<128x128xf32>
    %2 = tpu.matmul %0, %1, %cst {dimension_numbers = #tpu.dot_dimension_numbers<[1], [0], [0], [1], [0, 0, 1, 1], [], []>} : vector<128x3072xbf16>, vector<3072x128xbf16>, vector<128x128xf32> -> vector<128x128xf32>
    %c0_3 = arith.constant 0 : index
    %c0_4 = arith.constant 0 : index
    %3 = vector.load %arg3[%c0_3, %c0_4] : memref<1x128xf32, #tpu.memory_space<vmem>>, vector<1x128xf32>
    %4 = vector.broadcast %3 : vector<1x128xf32> to vector<128x128xf32>
    %5 = arith.addf %2, %4 : vector<128x128xf32>
    %cst_5 = arith.constant 0.000000e+00 : f32
    %6 = vector.broadcast %cst_5 : f32 to vector<128x128xf32>
    %7 = arith.maximumf %5, %6 : vector<128x128xf32>
    %8 = arith.truncf %7 : vector<128x128xf32> to vector<128x128xbf16>
    %c0_6 = arith.constant 0 : index
    %c0_7 = arith.constant 0 : index
    %c0_8 = arith.constant 0 : index
    %9 = vector.load %arg4[%c0_6, %c0_7, %c0_8] : memref<4x128x128xbf16, #tpu.memory_space<vmem>>, vector<1x128x128xbf16>
    %10 = vector.shape_cast %9 : vector<1x128x128xbf16> to vector<128x128xbf16>
    %cst_9 = arith.constant dense<0.000000e+00> : vector<128x128xf32>
    %11 = tpu.matmul %8, %10, %cst_9 {dimension_numbers = #tpu.dot_dimension_numbers<[1], [0], [0], [1], [0, 0, 1, 1], [], []>} : vector<128x128xbf16>, vector<128x128xbf16>, vector<128x128xf32> -> vector<128x128xf32>
    %c0_10 = arith.constant 0 : index
    %c0_11 = arith.constant 0 : index
    %c0_12 = arith.constant 0 : index
    %12 = vector.load %arg5[%c0_10, %c0_11, %c0_12] : memref<4x1x128xf32, #tpu.memory_space<vmem>>, vector<1x1x128xf32>
    %13 = vector.shape_cast %12 : vector<1x1x128xf32> to vector<1x128xf32>
    %14 = vector.broadcast %13 : vector<1x128xf32> to vector<128x128xf32>
    %15 = arith.addf %11, %14 : vector<128x128xf32>
    %16 = arith.addf %5, %15 : vector<128x128xf32>
    %cst_13 = arith.constant 0.000000e+00 : f32
    %17 = vector.broadcast %cst_13 : f32 to vector<128x128xf32>
    %18 = arith.maximumf %16, %17 : vector<128x128xf32>
    %19 = arith.truncf %18 : vector<128x128xf32> to vector<128x128xbf16>
    %c1 = arith.constant 1 : index
    %c0_14 = arith.constant 0 : index
    %c0_15 = arith.constant 0 : index
    %20 = vector.load %arg4[%c1, %c0_14, %c0_15] : memref<4x128x128xbf16, #tpu.memory_space<vmem>>, vector<1x128x128xbf16>
    %21 = vector.shape_cast %20 : vector<1x128x128xbf16> to vector<128x128xbf16>
    %cst_16 = arith.constant dense<0.000000e+00> : vector<128x128xf32>
    %22 = tpu.matmul %19, %21, %cst_16 {dimension_numbers = #tpu.dot_dimension_numbers<[1], [0], [0], [1], [0, 0, 1, 1], [], []>} : vector<128x128xbf16>, vector<128x128xbf16>, vector<128x128xf32> -> vector<128x128xf32>
    %c1_17 = arith.constant 1 : index
    %c0_18 = arith.constant 0 : index
    %c0_19 = arith.constant 0 : index
    %23 = vector.load %arg5[%c1_17, %c0_18, %c0_19] : memref<4x1x128xf32, #tpu.memory_space<vmem>>, vector<1x1x128xf32>
    %24 = vector.shape_cast %23 : vector<1x1x128xf32> to vector<1x128xf32>
    %25 = vector.broadcast %24 : vector<1x128xf32> to vector<128x128xf32>
    %26 = arith.addf %22, %25 : vector<128x128xf32>
    %27 = arith.addf %16, %26 : vector<128x128xf32>
    %cst_20 = arith.constant 0.000000e+00 : f32
    %28 = vector.broadcast %cst_20 : f32 to vector<128x128xf32>
    %29 = arith.maximumf %27, %28 : vector<128x128xf32>
    %30 = arith.truncf %29 : vector<128x128xf32> to vector<128x128xbf16>
    %c2 = arith.constant 2 : index
    %c0_21 = arith.constant 0 : index
    %c0_22 = arith.constant 0 : index
    %31 = vector.load %arg4[%c2, %c0_21, %c0_22] : memref<4x128x128xbf16, #tpu.memory_space<vmem>>, vector<1x128x128xbf16>
    %32 = vector.shape_cast %31 : vector<1x128x128xbf16> to vector<128x128xbf16>
    %cst_23 = arith.constant dense<0.000000e+00> : vector<128x128xf32>
    %33 = tpu.matmul %30, %32, %cst_23 {dimension_numbers = #tpu.dot_dimension_numbers<[1], [0], [0], [1], [0, 0, 1, 1], [], []>} : vector<128x128xbf16>, vector<128x128xbf16>, vector<128x128xf32> -> vector<128x128xf32>
    %c2_24 = arith.constant 2 : index
    %c0_25 = arith.constant 0 : index
    %c0_26 = arith.constant 0 : index
    %34 = vector.load %arg5[%c2_24, %c0_25, %c0_26] : memref<4x1x128xf32, #tpu.memory_space<vmem>>, vector<1x1x128xf32>
    %35 = vector.shape_cast %34 : vector<1x1x128xf32> to vector<1x128xf32>
    %36 = vector.broadcast %35 : vector<1x128xf32> to vector<128x128xf32>
    %37 = arith.addf %33, %36 : vector<128x128xf32>
    %38 = arith.addf %27, %37 : vector<128x128xf32>
    %cst_27 = arith.constant 0.000000e+00 : f32
    %39 = vector.broadcast %cst_27 : f32 to vector<128x128xf32>
    %40 = arith.maximumf %38, %39 : vector<128x128xf32>
    %41 = arith.truncf %40 : vector<128x128xf32> to vector<128x128xbf16>
    %c3 = arith.constant 3 : index
    %c0_28 = arith.constant 0 : index
    %c0_29 = arith.constant 0 : index
    %42 = vector.load %arg4[%c3, %c0_28, %c0_29] : memref<4x128x128xbf16, #tpu.memory_space<vmem>>, vector<1x128x128xbf16>
    %43 = vector.shape_cast %42 : vector<1x128x128xbf16> to vector<128x128xbf16>
    %cst_30 = arith.constant dense<0.000000e+00> : vector<128x128xf32>
    %44 = tpu.matmul %41, %43, %cst_30 {dimension_numbers = #tpu.dot_dimension_numbers<[1], [0], [0], [1], [0, 0, 1, 1], [], []>} : vector<128x128xbf16>, vector<128x128xbf16>, vector<128x128xf32> -> vector<128x128xf32>
    %c3_31 = arith.constant 3 : index
    %c0_32 = arith.constant 0 : index
    %c0_33 = arith.constant 0 : index
    %45 = vector.load %arg5[%c3_31, %c0_32, %c0_33] : memref<4x1x128xf32, #tpu.memory_space<vmem>>, vector<1x1x128xf32>
    %46 = vector.shape_cast %45 : vector<1x1x128xf32> to vector<1x128xf32>
    %47 = vector.broadcast %46 : vector<1x128xf32> to vector<128x128xf32>
    %48 = arith.addf %44, %47 : vector<128x128xf32>
    %49 = arith.addf %38, %48 : vector<128x128xf32>
    %50 = arith.truncf %49 : vector<128x128xf32> to vector<128x128xbf16>
    %c0_34 = arith.constant 0 : index
    %c0_35 = arith.constant 0 : index
    %51 = vector.load %arg6[%c0_34, %c0_35] : memref<128x128xbf16, #tpu.memory_space<vmem>>, vector<128x128xbf16>
    %cst_36 = arith.constant dense<0.000000e+00> : vector<128x128xf32>
    %52 = tpu.matmul %50, %51, %cst_36 {dimension_numbers = #tpu.dot_dimension_numbers<[1], [0], [0], [1], [0, 0, 1, 1], [], []>} : vector<128x128xbf16>, vector<128x128xbf16>, vector<128x128xf32> -> vector<128x128xf32>
    %c0_37 = arith.constant 0 : index
    %c0_38 = arith.constant 0 : index
    %53 = vector.load %arg7[%c0_37, %c0_38] : memref<1x128xf32, #tpu.memory_space<vmem>>, vector<1x128xf32>
    %54 = vector.broadcast %53 : vector<1x128xf32> to vector<128x128xf32>
    %55 = arith.addf %52, %54 : vector<128x128xf32>
    %c0_39 = arith.constant 0 : index
    %c0_40 = arith.constant 0 : index
    %56 = vector.load %arg8[%c0_39, %c0_40] : memref<128x128xf32, #tpu.memory_space<vmem>>, vector<128x128xf32>
    tpu.vector_store %arg8[%c0_39, %c0_40], %55 {strides = array<i32>} : memref<128x128xf32, #tpu.memory_space<vmem>>, vector<128x128xf32>,
    return
  }
  func.func @transform_0(%arg0: i32) -> (i32, i32) {
    %c0_i32 = arith.constant 0 : i32
    %c0_i32_0 = arith.constant 0 : i32
    return %arg0, %c0_i32 : i32, i32
  }
  func.func @transform_1(%arg0: i32) -> (i32, i32) {
    %c0_i32 = arith.constant 0 : i32
    %c0_i32_0 = arith.constant 0 : i32
    %c0_i32_1 = arith.constant 0 : i32
    return %c0_i32, %c0_i32_0 : i32, i32
  }
  func.func @transform_2(%arg0: i32) -> (i32, i32) {
    %c0_i32 = arith.constant 0 : i32
    %c0_i32_0 = arith.constant 0 : i32
    %c0_i32_1 = arith.constant 0 : i32
    return %c0_i32, %c0_i32_0 : i32, i32
  }
  func.func @transform_3(%arg0: i32) -> (i32, i32, i32) {
    %c0_i32 = arith.constant 0 : i32
    %c0_i32_0 = arith.constant 0 : i32
    %c0_i32_1 = arith.constant 0 : i32
    %c0_i32_2 = arith.constant 0 : i32
    return %c0_i32, %c0_i32_0, %c0_i32_1 : i32, i32, i32
  }
  func.func @transform_4(%arg0: i32) -> (i32, i32, i32) {
    %c0_i32 = arith.constant 0 : i32
    %c0_i32_0 = arith.constant 0 : i32
    %c0_i32_1 = arith.constant 0 : i32
    %c0_i32_2 = arith.constant 0 : i32
    return %c0_i32, %c0_i32_0, %c0_i32_1 : i32, i32, i32
  }
  func.func @transform_5(%arg0: i32) -> (i32, i32) {
    %c0_i32 = arith.constant 0 : i32
    %c0_i32_0 = arith.constant 0 : i32
    %c0_i32_1 = arith.constant 0 : i32
    return %c0_i32, %c0_i32_0 : i32, i32
  }
  func.func @transform_6(%arg0: i32) -> (i32, i32) {
    %c0_i32 = arith.constant 0 : i32
    %c0_i32_0 = arith.constant 0 : i32
    %c0_i32_1 = arith.constant 0 : i32
    return %c0_i32, %c0_i32_0 : i32, i32
  }
  func.func @transform_7(%arg0: i32) -> (i32, i32) {
    %c0_i32 = arith.constant 0 : i32
    %c0_i32_0 = arith.constant 0 : i32
    return %arg0, %c0_i32 : i32, i32
  }
}

</mosaic_0001>

<llo_original>
// kernel: tpu_custom_call.1
$region0: #{tpu_custom_call.1}
  #allocation0 [shape = 'u32[]', space=smem, size = 0x4, offset = 0x4, fixed_abs, tag = 'smem constant byte address 0x4 - core index']
  #allocation1 [shape = 'u32[144,128]{1,0:T(1,128)}', space=vmem, size = 0x12000, scoped, tag = 'internal scratch']
  %s0 = inlined_call_operand.hbm [shape: bf16[512,3072], index: 0, kind: input, shape index: {}]
  %s1 = inlined_call_operand.hbm [shape: bf16[3072,128], index: 1, kind: input, shape index: {}]
  %s2 = inlined_call_operand.hbm [shape: f32[1,128], index: 2, kind: input, shape index: {}]
  %s3 = inlined_call_operand.hbm [shape: bf16[4,128,128], index: 3, kind: input, shape index: {}]
  %s4 = inlined_call_operand.hbm [shape: f32[4,1,128], index: 4, kind: input, shape index: {}]
  %s5 = inlined_call_operand.hbm [shape: bf16[128,128], index: 5, kind: input, shape index: {}]
  %s6 = inlined_call_operand.hbm [shape: f32[1,128], index: 6, kind: input, shape index: {}]
  %s7 = inlined_call_operand.hbm [shape: f32[512,128], index: 7, kind: output, shape index: {}]
  %s8 = sld [smem:[#allocation0]]
  $region89: #{tpu_custom_call.1} parent=0
    _
  %s10 = ssub.s32 1, %s8
  %s11 = scalar_select 0, %s10, %s8
  $region1: #{tpu_custom_call.1} parent=0
    #allocation2 [shape = 'u8[1572864]{0}', space=vmem, size = 0x180000, scoped, tag = 'input window, operand 0']
    #allocation3 [shape = 's32[2]{0}', space=sflag, size = 0x8, scoped, tag = 'scoped memory for tpu_custom_call.1']
    #allocation4 [shape = 's32[2]{0}', space=sflag, size = 0x8, scoped, tag = 'scoped memory for tpu_custom_call.1']
    #allocation5 [shape = 'u8[786432]{0}', space=vmem, size = 0xc0000, scoped, tag = 'input window, operand 1, single buffered']
    #allocation6 [shape = 's32[1]{0}', space=sflag, size = 0x4, scoped, tag = 'scoped memory for tpu_custom_call.1']
    #allocation7 [shape = 'u8[512]{0}', space=vmem, size = 0x400, scoped, tag = 'input window, operand 2, single buffered']
    #allocation8 [shape = 'u8[131072]{0}', space=vmem, size = 0x20000, scoped, tag = 'input window, operand 3, single buffered']
    #allocation9 [shape = 's32[1]{0}', space=sflag, size = 0x4, scoped, tag = 'scoped memory for tpu_custom_call.1']
    #allocation10 [shape = 'u8[2048]{0}', space=vmem, size = 0x800, scoped, tag = 'input window, operand 4, single buffered']
    #allocation11 [shape = 'u8[32768]{0}', space=vmem, size = 0x8000, scoped, tag = 'input window, operand 5, single buffered']
    #allocation12 [shape = 's32[1]{0}', space=sflag, size = 0x4, scoped, tag = 'scoped memory for tpu_custom_call.1']
    #allocation13 [shape = 'u8[512]{0}', space=vmem, size = 0x400, scoped, tag = 'input window, operand 6, single buffered']
    #allocation14 [shape = 'u8[131072]{0}', space=vmem, size = 0x20000, scoped, tag = 'output window, operand 0']
    %12 = vsyncpa [#allocation3], 0
    %s13 = scalar_lea.sflag [#allocation3], 1
    %14 = vsyncpa %s13, 0
    %15 = vsyncpa [#allocation6], 0
    %16 = vsyncpa [#allocation9], 0
    %17 = vsyncpa [#allocation12], 0
    %18 = vsyncpa [#allocation4], 0
    %s19 = scalar_lea.sflag [#allocation4], 1
    %20 = vsyncpa %s19, 0
    loop: start=0, step=1, limit=6
    $region2: #{tpu_custom_call.1} parent=1 // loop_pre_header
      _
    $region3: #{tpu_custom_call.1} parent=1 // loop_header
      %s22 = sphi 0, %s26
      %p23 = scmp.ge.s32.totalorder %s22, 6
      %s32 = sphi 0, %s34
      %s35 = sphi 0, %s32
      %s36 = sphi 0, %s35
      %s52 = sphi 0, %s36
      %s56 = sphi 0, %s56
      %s58 = sphi 0, %s56
      %s59 = sphi 0, %s58
      %s73 = sphi 0, %s59
      %s77 = sphi 0, %s77
      %s79 = sphi 0, %s77
      %s80 = sphi 0, %s79
      %s94 = sphi 0, %s80
      %s98 = sphi 0, %s98
      %s100 = sphi 0, %s98
      %s101 = sphi 0, %s100
      %s115 = sphi 0, %s101
      %s119 = sphi 0, %s119
      %s121 = sphi 0, %s119
      %s122 = sphi 0, %s121
      %s136 = sphi 0, %s122
      %s140 = sphi 0, %s140
      %s142 = sphi 0, %s140
      %s143 = sphi 0, %s142
      %s157 = sphi 0, %s143
      %s161 = sphi 0, %s161
      %s163 = sphi 0, %s161
      %s164 = sphi 0, %s163
      %s178 = sphi 0, %s164
      %s184 = sphi 0, %s186
      %s187 = sphi 0, %s184
      %s188 = sphi 0, %s187
      %s204 = sphi 0, %s188
    $region4: #{tpu_custom_call.1} parent=1 // loop_header_branch
      %25 = sbr.rel (%p23) target = $region8
    $region5: #{tpu_custom_call.1} parent=1 // loop_body
      %s27 = ssub.s32 %s22, 1
      %s28 = ssub.s32 %s22, 2
      %s29 = sadd.s32 %s22, 1
      %s30 = ssub.s32 %s22, %s29
      %p31 = scmp.eq.s32.totalorder %s30, 0
      %s33 = sadd.s32 %s32, 1
      %s34 = scalar_select %p31, %s32, %s33
      %p37 = pneg %p31
      %p38 = scmp.eq.s32.totalorder %s22, 3
      %p39 = por %p37, %p38
      %p40 = scmp.ne.s32.totalorder %s32, %s35
      %p41 = scmp.eq.s32.totalorder %s22, 0
      %p42 = por %p40, %p41
      %p43 = scmp.ne.s32.totalorder %s32, %s35
      %p44 = scmp.eq.s32.totalorder %s27, 3
      %p45 = por %p43, %p44
      %p46 = scmp.ne.s32.totalorder %s35, %s36
      %p47 = scmp.eq.s32.totalorder %s27, 0
      %p48 = por %p46, %p47
      %p49 = scmp.ne.s32.totalorder %s35, %s36
      %p50 = scmp.eq.s32.totalorder %s28, 3
      %p51 = por %p49, %p50
      %p53 = scmp.ne.s32.totalorder %s36, %s52
      %p54 = scmp.eq.s32.totalorder %s28, 0
      %p55 = por %p53, %p54
      %s57 = sadd.s32 %s56, 1
      %p60 = scmp.eq.s32.totalorder %s22, 3
      %p61 = scmp.ne.s32.totalorder %s56, %s58
      %p62 = scmp.eq.s32.totalorder %s22, 0
      %p63 = por %p61, %p62
      %p64 = scmp.ne.s32.totalorder %s56, %s58
      %p65 = scmp.eq.s32.totalorder %s27, 3
      %p66 = por %p64, %p65
      %p67 = scmp.ne.s32.totalorder %s58, %s59
      %p68 = scmp.eq.s32.totalorder %s27, 0
      %p69 = por %p67, %p68
      %p70 = scmp.ne.s32.totalorder %s58, %s59
      %p71 = scmp.eq.s32.totalorder %s28, 3
      %p72 = por %p70, %p71
      %p74 = scmp.ne.s32.totalorder %s59, %s73
      %p75 = scmp.eq.s32.totalorder %s28, 0
      %p76 = por %p74, %p75
      %s78 = sadd.s32 %s77, 1
      %p81 = scmp.eq.s32.totalorder %s22, 3
      %p82 = scmp.ne.s32.totalorder %s77, %s79
      %p83 = scmp.eq.s32.totalorder %s22, 0
      %p84 = por %p82, %p83
      %p85 = scmp.ne.s32.totalorder %s77, %s79
      %p86 = scmp.eq.s32.totalorder %s27, 3
      %p87 = por %p85, %p86
      %p88 = scmp.ne.s32.totalorder %s79, %s80
      %p89 = scmp.eq.s32.totalorder %s27, 0
      %p90 = por %p88, %p89
      %p91 = scmp.ne.s32.totalorder %s79, %s80
      %p92 = scmp.eq.s32.totalorder %s28, 3
      %p93 = por %p91, %p92
      %p95 = scmp.ne.s32.totalorder %s80, %s94
      %p96 = scmp.eq.s32.totalorder %s28, 0
      %p97 = por %p95, %p96
      %s99 = sadd.s32 %s98, 1
      %p102 = scmp.eq.s32.totalorder %s22, 3
      %p103 = scmp.ne.s32.totalorder %s98, %s100
      %p104 = scmp.eq.s32.totalorder %s22, 0
      %p105 = por %p103, %p104
      %p106 = scmp.ne.s32.totalorder %s98, %s100
      %p107 = scmp.eq.s32.totalorder %s27, 3
      %p108 = por %p106, %p107
      %p109 = scmp.ne.s32.totalorder %s100, %s101
      %p110 = scmp.eq.s32.totalorder %s27, 0
      %p111 = por %p109, %p110
      %p112 = scmp.ne.s32.totalorder %s100, %s101
      %p113 = scmp.eq.s32.totalorder %s28, 3
      %p114 = por %p112, %p113
      %p116 = scmp.ne.s32.totalorder %s101, %s115
      %p117 = scmp.eq.s32.totalorder %s28, 0
      %p118 = por %p116, %p117
      %s120 = sadd.s32 %s119, 1
      %p123 = scmp.eq.s32.totalorder %s22, 3
      %p124 = scmp.ne.s32.totalorder %s119, %s121
      %p125 = scmp.eq.s32.totalorder %s22, 0
      %p126 = por %p124, %p125
      %p127 = scmp.ne.s32.totalorder %s119, %s121
      %p128 = scmp.eq.s32.totalorder %s27, 3
      %p129 = por %p127, %p128
      %p130 = scmp.ne.s32.totalorder %s121, %s122
      %p131 = scmp.eq.s32.totalorder %s27, 0
      %p132 = por %p130, %p131
      %p133 = scmp.ne.s32.totalorder %s121, %s122
      %p134 = scmp.eq.s32.totalorder %s28, 3
      %p135 = por %p133, %p134
      %p137 = scmp.ne.s32.totalorder %s122, %s136
      %p138 = scmp.eq.s32.totalorder %s28, 0
      %p139 = por %p137, %p138
      %s141 = sadd.s32 %s140, 1
      %p144 = scmp.eq.s32.totalorder %s22, 3
      %p145 = scmp.ne.s32.totalorder %s140, %s142
      %p146 = scmp.eq.s32.totalorder %s22, 0
      %p147 = por %p145, %p146
      %p148 = scmp.ne.s32.totalorder %s140, %s142
      %p149 = scmp.eq.s32.totalorder %s27, 3
      %p150 = por %p148, %p149
      %p151 = scmp.ne.s32.totalorder %s142, %s143
      %p152 = scmp.eq.s32.totalorder %s27, 0
      %p153 = por %p151, %p152
      %p154 = scmp.ne.s32.totalorder %s142, %s143
      %p155 = scmp.eq.s32.totalorder %s28, 3
      %p156 = por %p154, %p155
      %p158 = scmp.ne.s32.totalorder %s143, %s157
      %p159 = scmp.eq.s32.totalorder %s28, 0
      %p160 = por %p158, %p159
      %s162 = sadd.s32 %s161, 1
      %p165 = scmp.eq.s32.totalorder %s22, 3
      %p166 = scmp.ne.s32.totalorder %s161, %s163
      %p167 = scmp.eq.s32.totalorder %s22, 0
      %p168 = por %p166, %p167
      %p169 = scmp.ne.s32.totalorder %s161, %s163
      %p170 = scmp.eq.s32.totalorder %s27, 3
      %p171 = por %p169, %p170
      %p172 = scmp.ne.s32.totalorder %s163, %s164
      %p173 = scmp.eq.s32.totalorder %s27, 0
      %p174 = por %p172, %p173
      %p175 = scmp.ne.s32.totalorder %s163, %s164
      %p176 = scmp.eq.s32.totalorder %s28, 3
      %p177 = por %p175, %p176
      %p179 = scmp.ne.s32.totalorder %s164, %s178
      %p180 = scmp.eq.s32.totalorder %s28, 0
      %p181 = por %p179, %p180
      %s182 = ssub.s32 %s22, %s29
      %p183 = scmp.eq.s32.totalorder %s182, 0
      %s185 = sadd.s32 %s184, 1
      %s186 = scalar_select %p183, %s184, %s185
      %p189 = pneg %p183
      %p190 = scmp.eq.s32.totalorder %s22, 3
      %p191 = por %p189, %p190
      %p192 = scmp.ne.s32.totalorder %s184, %s187
      %p193 = scmp.eq.s32.totalorder %s22, 0
      %p194 = por %p192, %p193
      %p195 = scmp.ne.s32.totalorder %s184, %s187
      %p196 = scmp.eq.s32.totalorder %s27, 3
      %p197 = por %p195, %p196
      %p198 = scmp.ne.s32.totalorder %s187, %s188
      %p199 = scmp.eq.s32.totalorder %s27, 0
      %p200 = por %p198, %p199
      %p201 = scmp.ne.s32.totalorder %s187, %s188
      %p202 = scmp.eq.s32.totalorder %s28, 3
      %p203 = por %p201, %p202
      %p205 = scmp.ne.s32.totalorder %s188, %s204
      %p206 = scmp.eq.s32.totalorder %s28, 0
      %p207 = por %p205, %p206
      %p208 = scmp.le.s32.totalorder 1, %s22
      %p209 = scmp.lt.s32.totalorder %s22, 5
      %p210 = pnand %p208, %p209
      %p211 = pneg %p210
      // Predicated region
      $region9: #{tpu_custom_call.1} parent=5 // pred_check
        _
      $region10: #{tpu_custom_call.1} parent=5 // pred_check_branch
        %213 = sbr.rel (%p210) target = $region12
      $region11: #{tpu_custom_call.1} parent=5 // pred_region
        %s214 = ssub.s32 %s22, 1
        // Predicated region
        $region13: #{tpu_custom_call.1} parent=11 // pred_check
          %p215 = pneg %p69
        $region14: #{tpu_custom_call.1} parent=11 // pred_check_branch
          %217 = sbr.rel (%p215) target = $region16
        $region15: #{tpu_custom_call.1} parent=11 // pred_region
          %s219 = ssub.s32 24576, 24576
          %220 = vsyncadd [#allocation6], %s219
          %s221 = sshll.u32 [#allocation5], 4
          %s222 = int_to_ptr.vmem [resolvable:$true] %s221
          %227 = dma.hbm_to_vmem [thread:$0]  %s1, 24576, %s222, [#allocation6], 64, 64, 4
        $region16: #{tpu_custom_call.1} parent=11 // pred_fallthru
          _
        // Predicated region
        $region17: #{tpu_custom_call.1} parent=11 // pred_check
          %p228 = pneg %p90
        $region18: #{tpu_custom_call.1} parent=11 // pred_check_branch
          %230 = sbr.rel (%p228) target = $region20
        $region19: #{tpu_custom_call.1} parent=11 // pred_region
          %s232 = ssub.s32 16, 16
          %233 = vsyncadd [#allocation6], %s232
          %s235 = sshll.u32 [#allocation7], 4
          %s236 = int_to_ptr.vmem [resolvable:$true] %s235
          %238 = dma.hbm_to_vmem [thread:$0]  %s2, 16, %s236, [#allocation6]
        $region20: #{tpu_custom_call.1} parent=11 // pred_fallthru
          _
        // Predicated region
        $region21: #{tpu_custom_call.1} parent=11 // pred_check
          %p239 = pneg %p111
        $region22: #{tpu_custom_call.1} parent=11 // pred_check_branch
          %241 = sbr.rel (%p239) target = $region24
        $region23: #{tpu_custom_call.1} parent=11 // pred_region
          %s243 = ssub.s32 4096, 4096
          %244 = vsyncadd [#allocation9], %s243
          %s245 = sshll.u32 [#allocation8], 4
          %s246 = int_to_ptr.vmem [resolvable:$true] %s245
          %251 = dma.hbm_to_vmem [thread:$0]  %s3, 4096, %s246, [#allocation9], 64, 64, 4
        $region24: #{tpu_custom_call.1} parent=11 // pred_fallthru
          _
        // Predicated region
        $region25: #{tpu_custom_call.1} parent=11 // pred_check
          %p252 = pneg %p132
        $region26: #{tpu_custom_call.1} parent=11 // pred_check_branch
          %254 = sbr.rel (%p252) target = $region28
        $region27: #{tpu_custom_call.1} parent=11 // pred_region
          %s256 = ssub.s32 64, 64
          %257 = vsyncadd [#allocation9], %s256
          %s258 = sshll.u32 [#allocation10], 4
          %s259 = int_to_ptr.vmem [resolvable:$true] %s258
          %264 = dma.hbm_to_vmem [thread:$0]  %s4, 64, %s259, [#allocation9], 16, 16, 1
        $region28: #{tpu_custom_call.1} parent=11 // pred_fallthru
          _
        // Predicated region
        $region29: #{tpu_custom_call.1} parent=11 // pred_check
          %p265 = pneg %p153
        $region30: #{tpu_custom_call.1} parent=11 // pred_check_branch
          %267 = sbr.rel (%p265) target = $region32
        $region31: #{tpu_custom_call.1} parent=11 // pred_region
          %s269 = ssub.s32 1024, 1024
          %270 = vsyncadd [#allocation12], %s269
          %s271 = sshll.u32 [#allocation11], 4
          %s272 = int_to_ptr.vmem [resolvable:$true] %s271
          %277 = dma.hbm_to_vmem [thread:$0]  %s5, 1024, %s272, [#allocation12], 64, 64, 4
        $region32: #{tpu_custom_call.1} parent=11 // pred_fallthru
          _
        // Predicated region
        $region33: #{tpu_custom_call.1} parent=11 // pred_check
          %p278 = pneg %p174
        $region34: #{tpu_custom_call.1} parent=11 // pred_check_branch
          %280 = sbr.rel (%p278) target = $region36
        $region35: #{tpu_custom_call.1} parent=11 // pred_region
          %s282 = ssub.s32 16, 16
          %283 = vsyncadd [#allocation12], %s282
          %s285 = sshll.u32 [#allocation13], 4
          %s286 = int_to_ptr.vmem [resolvable:$true] %s285
          %288 = dma.hbm_to_vmem [thread:$0]  %s6, 16, %s286, [#allocation12]
        $region36: #{tpu_custom_call.1} parent=11 // pred_fallthru
          _
      $region12: #{tpu_custom_call.1} parent=5 // pred_fallthru
        _
      %p289 = scmp.lt.s32.totalorder %s22, 4
      // Predicated region
      $region37: #{tpu_custom_call.1} parent=5 // pred_check
        %p290 = pneg %p289
      $region38: #{tpu_custom_call.1} parent=5 // pred_check_branch
        %292 = sbr.rel (%p290) target = $region40
      $region39: #{tpu_custom_call.1} parent=5 // pred_region
        // Predicated region
        $region41: #{tpu_custom_call.1} parent=39 // pred_check
          %p293 = pneg %p42
        $region42: #{tpu_custom_call.1} parent=39 // pred_check_branch
          %295 = sbr.rel (%p293) target = $region44
        $region43: #{tpu_custom_call.1} parent=39 // pred_region
          %s296 = sand.u32 %s32, 1
          %s297 = scalar_lea.sflag [#allocation3], %s296
          %s298 = sand.u32 %s32, 1
          %s299 = smul.addr %s298, 1536
          %s300 = scalar_lea.vmem [#allocation2], %s299
          %s301 = smul.u32 16, %s22
          %s303 = ssub.s32 24576, 24576
          %304 = vsyncadd %s297, %s303
          %s305 = smul.addr %s301, 24
          %s306 = smul.addr %s305, 64
          %s307 = scalar_lea.hbm %s0, %s306
          %s308 = sshll.u32 %s300, 4
          %s309 = int_to_ptr.vmem [resolvable:$true] %s308
          %314 = dma.hbm_to_vmem [thread:$0]  %s307, 24576, %s309, %s297, 1536, 1536, 96
        $region44: #{tpu_custom_call.1} parent=39 // pred_fallthru
          _
      $region40: #{tpu_custom_call.1} parent=5 // pred_fallthru
        _
      %p315 = scmp.le.s32.totalorder 1, %s22
      %p316 = scmp.lt.s32.totalorder %s22, 5
      %p317 = pnand %p315, %p316
      %p318 = pneg %p317
      // Predicated region
      $region45: #{tpu_custom_call.1} parent=5 // pred_check
        _
      $region46: #{tpu_custom_call.1} parent=5 // pred_check_branch
        %320 = sbr.rel (%p317) target = $region48
      $region47: #{tpu_custom_call.1} parent=5 // pred_region
        %s321 = ssub.s32 %s22, 1
        %s322 = sand.u32 %s35, 1
        %s323 = scalar_lea.sflag [#allocation3], %s322
        %s324 = sand.u32 %s35, 1
        %s325 = smul.addr %s324, 1536
        %s326 = scalar_lea.vmem [#allocation2], %s325
        // Predicated region
        $region49: #{tpu_custom_call.1} parent=47 // pred_check
          %p327 = pneg %p48
        $region50: #{tpu_custom_call.1} parent=47 // pred_check_branch
          %329 = sbr.rel (%p327) target = $region52
        $region51: #{tpu_custom_call.1} parent=47 // pred_region
          %330 = dma.done %s323, 24576
        $region52: #{tpu_custom_call.1} parent=47 // pred_fallthru
          _
        // Predicated region
        $region53: #{tpu_custom_call.1} parent=47 // pred_check
          %p331 = pneg %p69
        $region54: #{tpu_custom_call.1} parent=47 // pred_check_branch
          %333 = sbr.rel (%p331) target = $region56
        $region55: #{tpu_custom_call.1} parent=47 // pred_region
          %334 = dma.done [#allocation6], 24576
        $region56: #{tpu_custom_call.1} parent=47 // pred_fallthru
          _
        // Predicated region
        $region57: #{tpu_custom_call.1} parent=47 // pred_check
          %p335 = pneg %p90
        $region58: #{tpu_custom_call.1} parent=47 // pred_check_branch
          %337 = sbr.rel (%p335) target = $region60
        $region59: #{tpu_custom_call.1} parent=47 // pred_region
          %338 = dma.done [#allocation6], 16
        $region60: #{tpu_custom_call.1} parent=47 // pred_fallthru
          _
        // Predicated region
        $region61: #{tpu_custom_call.1} parent=47 // pred_check
          %p339 = pneg %p111
        $region62: #{tpu_custom_call.1} parent=47 // pred_check_branch
          %341 = sbr.rel (%p339) target = $region64
        $region63: #{tpu_custom_call.1} parent=47 // pred_region
          %342 = dma.done [#allocation9], 4096
        $region64: #{tpu_custom_call.1} parent=47 // pred_fallthru
          _
        // Predicated region
        $region65: #{tpu_custom_call.1} parent=47 // pred_check
          %p343 = pneg %p132
        $region66: #{tpu_custom_call.1} parent=47 // pred_check_branch
          %345 = sbr.rel (%p343) target = $region68
        $region67: #{tpu_custom_call.1} parent=47 // pred_region
          %346 = dma.done [#allocation9], 64
        $region68: #{tpu_custom_call.1} parent=47 // pred_fallthru
          _
        // Predicated region
        $region69: #{tpu_custom_call.1} parent=47 // pred_check
          %p347 = pneg %p153
        $region70: #{tpu_custom_call.1} parent=47 // pred_check_branch
          %349 = sbr.rel (%p347) target = $region72
        $region71: #{tpu_custom_call.1} parent=47 // pred_region
          %350 = dma.done [#allocation12], 1024
        $region72: #{tpu_custom_call.1} parent=47 // pred_fallthru
          _
        // Predicated region
        $region73: #{tpu_custom_call.1} parent=47 // pred_check
          %p351 = pneg %p174
        $region74: #{tpu_custom_call.1} parent=47 // pred_check_branch
          %353 = sbr.rel (%p351) target = $region76
        $region75: #{tpu_custom_call.1} parent=47 // pred_region
          %354 = dma.done [#allocation12], 16
        $region76: #{tpu_custom_call.1} parent=47 // pred_fallthru
          _
        %s355 = sand.u32 %s35, 1
        %s356 = scalar_lea.sflag [#allocation3], %s355
        %s357 = sand.u32 %s35, 1
        %s358 = smul.addr %s357, 1536
        %s359 = scalar_lea.vmem [#allocation2], %s358
        %p360 = pneg %p48
        %p361 = pneg %p45
        %p362 = pneg %p69
        %p363 = pneg %p66
        %p364 = pneg %p90
        %p365 = pneg %p87
        %p366 = pneg %p111
        %p367 = pneg %p108
        %p368 = pneg %p132
        %p369 = pneg %p129
        %p370 = pneg %p153
        %p371 = pneg %p150
        %p372 = pneg %p174
        %p373 = pneg %p171
        %p374 = pneg %p200
        %p375 = pneg %p197
        %s376 = sand.u32 %s187, 1
        %s377 = scalar_lea.sflag [#allocation4], %s376
        %s378 = sand.u32 %s187, 1
        %s379 = smul.addr %s378, 128
        %s380 = scalar_lea.vmem [#allocation14], %s379
        %s381 = smul.u32 16, %s27
        %s382 = smul.u32 16, %s27
        %v384 = vld [vmem:[%s326] sm:$0xff]
        %v385 = vld [vmem:[%s326 + $0x8] sm:$0xff]
        %v386 = vld [vmem:[%s326 + $0x10] sm:$0xff]
        %v387 = vld [vmem:[%s326 + $0x18] sm:$0xff]
        %v388 = vld [vmem:[%s326 + $0x20] sm:$0xff]
        %v389 = vld [vmem:[%s326 + $0x28] sm:$0xff]
        %v390 = vld [vmem:[%s326 + $0x30] sm:$0xff]
        %v391 = vld [vmem:[%s326 + $0x38] sm:$0xff]
        %v392 = vld [vmem:[%s326 + $0x40] sm:$0xff]
        %v393 = vld [vmem:[%s326 + $0x48] sm:$0xff]
        %v394 = vld [vmem:[%s326 + $0x50] sm:$0xff]
        %v395 = vld [vmem:[%s326 + $0x58] sm:$0xff]
        %v396 = vld [vmem:[%s326 + $0x60] sm:$0xff]
        %v397 = vld [vmem:[%s326 + $0x68] sm:$0xff]
        %v398 = vld [vmem:[%s326 + $0x70] sm:$0xff]
        %v399 = vld [vmem:[%s326 + $0x78] sm:$0xff]
        %v400 = vld [vmem:[%s326 + $0x80] sm:$0xff]
        %v401 = vld [vmem:[%s326 + $0x88] sm:$0xff]
        %v402 = vld [vmem:[%s326 + $0x90] sm:$0xff]
        %v403 = vld [vmem:[%s326 + $0x98] sm:$0xff]
        %v404 = vld [vmem:[%s326 + $0xa0] sm:$0xff]
        %v405 = vld [vmem:[%s326 + $0xa8] sm:$0xff]
        %v406 = vld [vmem:[%s326 + $0xb0] sm:$0xff]
        %v407 = vld [vmem:[%s326 + $0xb8] sm:$0xff]
        %v408 = vld [vmem:[%s326 + $0xc0] sm:$0xff]
        %v409 = vld [vmem:[%s326 + $0xc8] sm:$0xff]
        %v410 = vld [vmem:[%s326 + $0xd0] sm:$0xff]
        %v411 = vld [vmem:[%s326 + $0xd8] sm:$0xff]
        %v412 = vld [vmem:[%s326 + $0xe0] sm:$0xff]
        %v413 = vld [vmem:[%s326 + $0xe8] sm:$0xff]
        %v414 = vld [vmem:[%s326 + $0xf0] sm:$0xff]
        %v415 = vld [vmem:[%s326 + $0xf8] sm:$0xff]
        %v416 = vld [vmem:[%s326 + $0x100] sm:$0xff]
        %v417 = vld [vmem:[%s326 + $0x108] sm:$0xff]
        %v418 = vld [vmem:[%s326 + $0x110] sm:$0xff]
        %v419 = vld [vmem:[%s326 + $0x118] sm:$0xff]
        %v420 = vld [vmem:[%s326 + $0x120] sm:$0xff]
        %v421 = vld [vmem:[%s326 + $0x128] sm:$0xff]
        %v422 = vld [vmem:[%s326 + $0x130] sm:$0xff]
        %v423 = vld [vmem:[%s326 + $0x138] sm:$0xff]
        %v424 = vld [vmem:[%s326 + $0x140] sm:$0xff]
        %v425 = vld [vmem:[%s326 + $0x148] sm:$0xff]
        %v426 = vld [vmem:[%s326 + $0x150] sm:$0xff]
        %v427 = vld [vmem:[%s326 + $0x158] sm:$0xff]
        %v428 = vld [vmem:[%s326 + $0x160] sm:$0xff]
        %v429 = vld [vmem:[%s326 + $0x168] sm:$0xff]
        %v430 = vld [vmem:[%s326 + $0x170] sm:$0xff]
        %v431 = vld [vmem:[%s326 + $0x178] sm:$0xff]
        %v432 = vld [vmem:[%s326 + $0x180] sm:$0xff]
        %v433 = vld [vmem:[%s326 + $0x188] sm:$0xff]
        %v434 = vld [vmem:[%s326 + $0x190] sm:$0xff]
        %v435 = vld [vmem:[%s326 + $0x198] sm:$0xff]
        %v436 = vld [vmem:[%s326 + $0x1a0] sm:$0xff]
        %v437 = vld [vmem:[%s326 + $0x1a8] sm:$0xff]
        %v438 = vld [vmem:[%s326 + $0x1b0] sm:$0xff]
        %v439 = vld [vmem:[%s326 + $0x1b8] sm:$0xff]
        %v440 = vld [vmem:[%s326 + $0x1c0] sm:$0xff]
        %v441 = vld [vmem:[%s326 + $0x1c8] sm:$0xff]
        %v442 = vld [vmem:[%s326 + $0x1d0] sm:$0xff]
        %v443 = vld [vmem:[%s326 + $0x1d8] sm:$0xff]
        %v444 = vld [vmem:[%s326 + $0x1e0] sm:$0xff]
        %v445 = vld [vmem:[%s326 + $0x1e8] sm:$0xff]
        %v446 = vld [vmem:[%s326 + $0x1f0] sm:$0xff]
        %v447 = vld [vmem:[%s326 + $0x1f8] sm:$0xff]
        %v448 = vld [vmem:[%s326 + $0x200] sm:$0xff]
        %v449 = vld [vmem:[%s326 + $0x208] sm:$0xff]
        %v450 = vld [vmem:[%s326 + $0x210] sm:$0xff]
        %v451 = vld [vmem:[%s326 + $0x218] sm:$0xff]
        %v452 = vld [vmem:[%s326 + $0x220] sm:$0xff]
        %v453 = vld [vmem:[%s326 + $0x228] sm:$0xff]
        %v454 = vld [vmem:[%s326 + $0x230] sm:$0xff]
        %v455 = vld [vmem:[%s326 + $0x238] sm:$0xff]
        %v456 = vld [vmem:[%s326 + $0x240] sm:$0xff]
        %v457 = vld [vmem:[%s326 + $0x248] sm:$0xff]
        %v458 = vld [vmem:[%s326 + $0x250] sm:$0xff]
        %v459 = vld [vmem:[%s326 + $0x258] sm:$0xff]
        %v460 = vld [vmem:[%s326 + $0x260] sm:$0xff]
        %v461 = vld [vmem:[%s326 + $0x268] sm:$0xff]
        %v462 = vld [vmem:[%s326 + $0x270] sm:$0xff]
        %v463 = vld [vmem:[%s326 + $0x278] sm:$0xff]
        %v464 = vld [vmem:[%s326 + $0x280] sm:$0xff]
        %v465 = vld [vmem:[%s326 + $0x288] sm:$0xff]
        %v466 = vld [vmem:[%s326 + $0x290] sm:$0xff]
        %v467 = vld [vmem:[%s326 + $0x298] sm:$0xff]
        %v468 = vld [vmem:[%s326 + $0x2a0] sm:$0xff]
        %v469 = vld [vmem:[%s326 + $0x2a8] sm:$0xff]
        %v470 = vld [vmem:[%s326 + $0x2b0] sm:$0xff]
        %v471 = vld [vmem:[%s326 + $0x2b8] sm:$0xff]
        %v472 = vld [vmem:[%s326 + $0x2c0] sm:$0xff]
        %v473 = vld [vmem:[%s326 + $0x2c8] sm:$0xff]
        %v474 = vld [vmem:[%s326 + $0x2d0] sm:$0xff]
        %v475 = vld [vmem:[%s326 + $0x2d8] sm:$0xff]
        %v476 = vld [vmem:[%s326 + $0x2e0] sm:$0xff]
        %v477 = vld [vmem:[%s326 + $0x2e8] sm:$0xff]
        %v478 = vld [vmem:[%s326 + $0x2f0] sm:$0xff]
        %v479 = vld [vmem:[%s326 + $0x2f8] sm:$0xff]
        %v480 = vld [vmem:[%s326 + $0x300] sm:$0xff]
        %v481 = vld [vmem:[%s326 + $0x308] sm:$0xff]
        %v482 = vld [vmem:[%s326 + $0x310] sm:$0xff]
        %v483 = vld [vmem:[%s326 + $0x318] sm:$0xff]
        %v484 = vld [vmem:[%s326 + $0x320] sm:$0xff]
        %v485 = vld [vmem:[%s326 + $0x328] sm:$0xff]
        %v486 = vld [vmem:[%s326 + $0x330] sm:$0xff]
        %v487 = vld [vmem:[%s326 + $0x338] sm:$0xff]
        %v488 = vld [vmem:[%s326 + $0x340] sm:$0xff]
        %v489 = vld [vmem:[%s326 + $0x348] sm:$0xff]
        %v490 = vld [vmem:[%s326 + $0x350] sm:$0xff]
        %v491 = vld [vmem:[%s326 + $0x358] sm:$0xff]
        %v492 = vld [vmem:[%s326 + $0x360] sm:$0xff]
        %v493 = vld [vmem:[%s326 + $0x368] sm:$0xff]
        %v494 = vld [vmem:[%s326 + $0x370] sm:$0xff]
        %v495 = vld [vmem:[%s326 + $0x378] sm:$0xff]
        %v496 = vld [vmem:[%s326 + $0x380] sm:$0xff]
        %v497 = vld [vmem:[%s326 + $0x388] sm:$0xff]
        %v498 = vld [vmem:[%s326 + $0x390] sm:$0xff]
        %v499 = vld [vmem:[%s326 + $0x398] sm:$0xff]
        %v500 = vld [vmem:[%s326 + $0x3a0] sm:$0xff]
        %v501 = vld [vmem:[%s326 + $0x3a8] sm:$0xff]
        %v502 = vld [vmem:[%s326 + $0x3b0] sm:$0xff]
        %v503 = vld [vmem:[%s326 + $0x3b8] sm:$0xff]
        %v504 = vld [vmem:[%s326 + $0x3c0] sm:$0xff]
        %v505 = vld [vmem:[%s326 + $0x3c8] sm:$0xff]
        %v506 = vld [vmem:[%s326 + $0x3d0] sm:$0xff]
        %v507 = vld [vmem:[%s326 + $0x3d8] sm:$0xff]
        %v508 = vld [vmem:[%s326 + $0x3e0] sm:$0xff]
        %v509 = vld [vmem:[%s326 + $0x3e8] sm:$0xff]
        %v510 = vld [vmem:[%s326 + $0x3f0] sm:$0xff]
        %v511 = vld [vmem:[%s326 + $0x3f8] sm:$0xff]
        %v512 = vld [vmem:[%s326 + $0x400] sm:$0xff]
        %v513 = vld [vmem:[%s326 + $0x408] sm:$0xff]
        %v514 = vld [vmem:[%s326 + $0x410] sm:$0xff]
        %v515 = vld [vmem:[%s326 + $0x418] sm:$0xff]
        %v516 = vld [vmem:[%s326 + $0x420] sm:$0xff]
        %v517 = vld [vmem:[%s326 + $0x428] sm:$0xff]
        %v518 = vld [vmem:[%s326 + $0x430] sm:$0xff]
        %v519 = vld [vmem:[%s326 + $0x438] sm:$0xff]
        %v520 = vld [vmem:[%s326 + $0x440] sm:$0xff]
        %v521 = vld [vmem:[%s326 + $0x448] sm:$0xff]
        %v522 = vld [vmem:[%s326 + $0x450] sm:$0xff]
        %v523 = vld [vmem:[%s326 + $0x458] sm:$0xff]
        %v524 = vld [vmem:[%s326 + $0x460] sm:$0xff]
        %v525 = vld [vmem:[%s326 + $0x468] sm:$0xff]
        %v526 = vld [vmem:[%s326 + $0x470] sm:$0xff]
        %v527 = vld [vmem:[%s326 + $0x478] sm:$0xff]
        %v528 = vld [vmem:[%s326 + $0x480] sm:$0xff]
        %v529 = vld [vmem:[%s326 + $0x488] sm:$0xff]
        %v530 = vld [vmem:[%s326 + $0x490] sm:$0xff]
        %v531 = vld [vmem:[%s326 + $0x498] sm:$0xff]
        %v532 = vld [vmem:[%s326 + $0x4a0] sm:$0xff]
        %v533 = vld [vmem:[%s326 + $0x4a8] sm:$0xff]
        %v534 = vld [vmem:[%s326 + $0x4b0] sm:$0xff]
        %v535 = vld [vmem:[%s326 + $0x4b8] sm:$0xff]
        %v536 = vld [vmem:[%s326 + $0x4c0] sm:$0xff]
        %v537 = vld [vmem:[%s326 + $0x4c8] sm:$0xff]
        %v538 = vld [vmem:[%s326 + $0x4d0] sm:$0xff]
        %v539 = vld [vmem:[%s326 + $0x4d8] sm:$0xff]
        %v540 = vld [vmem:[%s326 + $0x4e0] sm:$0xff]
        %v541 = vld [vmem:[%s326 + $0x4e8] sm:$0xff]
        %v542 = vld [vmem:[%s326 + $0x4f0] sm:$0xff]
        %v543 = vld [vmem:[%s326 + $0x4f8] sm:$0xff]
        %v544 = vld [vmem:[%s326 + $0x500] sm:$0xff]
        %v545 = vld [vmem:[%s326 + $0x508] sm:$0xff]
        %v546 = vld [vmem:[%s326 + $0x510] sm:$0xff]
        %v547 = vld [vmem:[%s326 + $0x518] sm:$0xff]
        %v548 = vld [vmem:[%s326 + $0x520] sm:$0xff]
        %v549 = vld [vmem:[%s326 + $0x528] sm:$0xff]
        %v550 = vld [vmem:[%s326 + $0x530] sm:$0xff]
        %v551 = vld [vmem:[%s326 + $0x538] sm:$0xff]
        %v552 = vld [vmem:[%s326 + $0x540] sm:$0xff]
        %v553 = vld [vmem:[%s326 + $0x548] sm:$0xff]
        %v554 = vld [vmem:[%s326 + $0x550] sm:$0xff]
        %v555 = vld [vmem:[%s326 + $0x558] sm:$0xff]
        %v556 = vld [vmem:[%s326 + $0x560] sm:$0xff]
        %v557 = vld [vmem:[%s326 + $0x568] sm:$0xff]
        %v558 = vld [vmem:[%s326 + $0x570] sm:$0xff]
        %v559 = vld [vmem:[%s326 + $0x578] sm:$0xff]
        %v560 = vld [vmem:[%s326 + $0x580] sm:$0xff]
        %v561 = vld [vmem:[%s326 + $0x588] sm:$0xff]
        %v562 = vld [vmem:[%s326 + $0x590] sm:$0xff]
        %v563 = vld [vmem:[%s326 + $0x598] sm:$0xff]
        %v564 = vld [vmem:[%s326 + $0x5a0] sm:$0xff]
        %v565 = vld [vmem:[%s326 + $0x5a8] sm:$0xff]
        %v566 = vld [vmem:[%s326 + $0x5b0] sm:$0xff]
        %v567 = vld [vmem:[%s326 + $0x5b8] sm:$0xff]
        %v568 = vld [vmem:[%s326 + $0x5c0] sm:$0xff]
        %v569 = vld [vmem:[%s326 + $0x5c8] sm:$0xff]
        %v570 = vld [vmem:[%s326 + $0x5d0] sm:$0xff]
        %v571 = vld [vmem:[%s326 + $0x5d8] sm:$0xff]
        %v572 = vld [vmem:[%s326 + $0x5e0] sm:$0xff]
        %v573 = vld [vmem:[%s326 + $0x5e8] sm:$0xff]
        %v574 = vld [vmem:[%s326 + $0x5f0] sm:$0xff]
        %v575 = vld [vmem:[%s326 + $0x5f8] sm:$0xff]
        %v576 = vld [vmem:[#allocation5] sm:$0xf]
        %v577 = vld [vmem:[#allocation5 + $0x4] sm:$0xf]
        %v578 = vld [vmem:[#allocation5 + $0x8] sm:$0xf]
        %v579 = vld [vmem:[#allocation5 + $0xc] sm:$0xf]
        %v580 = vld [vmem:[#allocation5 + $0x10] sm:$0xf]
        %v581 = vld [vmem:[#allocation5 + $0x14] sm:$0xf]
        %v582 = vld [vmem:[#allocation5 + $0x18] sm:$0xf]
        %v583 = vld [vmem:[#allocation5 + $0x1c] sm:$0xf]
        %v584 = vld [vmem:[#allocation5 + $0x20] sm:$0xf]
        %v585 = vld [vmem:[#allocation5 + $0x24] sm:$0xf]
        %v586 = vld [vmem:[#allocation5 + $0x28] sm:$0xf]
        %v587 = vld [vmem:[#allocation5 + $0x2c] sm:$0xf]
        %v588 = vld [vmem:[#allocation5 + $0x30] sm:$0xf]
        %v589 = vld [vmem:[#allocation5 + $0x34] sm:$0xf]
        %v590 = vld [vmem:[#allocation5 + $0x38] sm:$0xf]
        %v591 = vld [vmem:[#allocation5 + $0x3c] sm:$0xf]
        %v592 = vld [vmem:[#allocation5 + $0x40] sm:$0xf]
        %v593 = vld [vmem:[#allocation5 + $0x44] sm:$0xf]
        %v594 = vld [vmem:[#allocation5 + $0x48] sm:$0xf]
        %v595 = vld [vmem:[#allocation5 + $0x4c] sm:$0xf]
        %v596 = vld [vmem:[#allocation5 + $0x50] sm:$0xf]
        %v597 = vld [vmem:[#allocation5 + $0x54] sm:$0xf]
        %v598 = vld [vmem:[#allocation5 + $0x58] sm:$0xf]
        %v599 = vld [vmem:[#allocation5 + $0x5c] sm:$0xf]
        %v600 = vld [vmem:[#allocation5 + $0x60] sm:$0xf]
        %v601 = vld [vmem:[#allocation5 + $0x64] sm:$0xf]
        %v602 = vld [vmem:[#allocation5 + $0x68] sm:$0xf]
        %v603 = vld [vmem:[#allocation5 + $0x6c] sm:$0xf]
        %v604 = vld [vmem:[#allocation5 + $0x70] sm:$0xf]
        %v605 = vld [vmem:[#allocation5 + $0x74] sm:$0xf]
        %v606 = vld [vmem:[#allocation5 + $0x78] sm:$0xf]
        %v607 = vld [vmem:[#allocation5 + $0x7c] sm:$0xf]
        %v608 = vld [vmem:[#allocation5 + $0x80] sm:$0xf]
        %v609 = vld [vmem:[#allocation5 + $0x84] sm:$0xf]
        %v610 = vld [vmem:[#allocation5 + $0x88] sm:$0xf]
        %v611 = vld [vmem:[#allocation5 + $0x8c] sm:$0xf]
        %v612 = vld [vmem:[#allocation5 + $0x90] sm:$0xf]
        %v613 = vld [vmem:[#allocation5 + $0x94] sm:$0xf]
        %v614 = vld [vmem:[#allocation5 + $0x98] sm:$0xf]
        %v615 = vld [vmem:[#allocation5 + $0x9c] sm:$0xf]
        %v616 = vld [vmem:[#allocation5 + $0xa0] sm:$0xf]
        %v617 = vld [vmem:[#allocation5 + $0xa4] sm:$0xf]
        %v618 = vld [vmem:[#allocation5 + $0xa8] sm:$0xf]
        %v619 = vld [vmem:[#allocation5 + $0xac] sm:$0xf]
        %v620 = vld [vmem:[#allocation5 + $0xb0] sm:$0xf]
        %v621 = vld [vmem:[#allocation5 + $0xb4] sm:$0xf]
        %v622 = vld [vmem:[#allocation5 + $0xb8] sm:$0xf]
        %v623 = vld [vmem:[#allocation5 + $0xbc] sm:$0xf]
        %v624 = vld [vmem:[#allocation5 + $0xc0] sm:$0xf]
        %v625 = vld [vmem:[#allocation5 + $0xc4] sm:$0xf]
        %v626 = vld [vmem:[#allocation5 + $0xc8] sm:$0xf]
        %v627 = vld [vmem:[#allocation5 + $0xcc] sm:$0xf]
        %v628 = vld [vmem:[#allocation5 + $0xd0] sm:$0xf]
        %v629 = vld [vmem:[#allocation5 + $0xd4] sm:$0xf]
        %v630 = vld [vmem:[#allocation5 + $0xd8] sm:$0xf]
        %v631 = vld [vmem:[#allocation5 + $0xdc] sm:$0xf]
        %v632 = vld [vmem:[#allocation5 + $0xe0] sm:$0xf]
        %v633 = vld [vmem:[#allocation5 + $0xe4] sm:$0xf]
        %v634 = vld [vmem:[#allocation5 + $0xe8] sm:$0xf]
        %v635 = vld [vmem:[#allocation5 + $0xec] sm:$0xf]
        %v636 = vld [vmem:[#allocation5 + $0xf0] sm:$0xf]
        %v637 = vld [vmem:[#allocation5 + $0xf4] sm:$0xf]
        %v638 = vld [vmem:[#allocation5 + $0xf8] sm:$0xf]
        %v639 = vld [vmem:[#allocation5 + $0xfc] sm:$0xf]
        %v640 = vld [vmem:[#allocation5 + $0x100] sm:$0xf]
        %v641 = vld [vmem:[#allocation5 + $0x104] sm:$0xf]
        %v642 = vld [vmem:[#allocation5 + $0x108] sm:$0xf]
        %v643 = vld [vmem:[#allocation5 + $0x10c] sm:$0xf]
        %v644 = vld [vmem:[#allocation5 + $0x110] sm:$0xf]
        %v645 = vld [vmem:[#allocation5 + $0x114] sm:$0xf]
        %v646 = vld [vmem:[#allocation5 + $0x118] sm:$0xf]
        %v647 = vld [vmem:[#allocation5 + $0x11c] sm:$0xf]
        %v648 = vld [vmem:[#allocation5 + $0x120] sm:$0xf]
        %v649 = vld [vmem:[#allocation5 + $0x124] sm:$0xf]
        %v650 = vld [vmem:[#allocation5 + $0x128] sm:$0xf]
        %v651 = vld [vmem:[#allocation5 + $0x12c] sm:$0xf]
        %v652 = vld [vmem:[#allocation5 + $0x130] sm:$0xf]
        %v653 = vld [vmem:[#allocation5 + $0x134] sm:$0xf]
        %v654 = vld [vmem:[#allocation5 + $0x138] sm:$0xf]
        %v655 = vld [vmem:[#allocation5 + $0x13c] sm:$0xf]
        %v656 = vld [vmem:[#allocation5 + $0x140] sm:$0xf]
        %v657 = vld [vmem:[#allocation5 + $0x144] sm:$0xf]
        %v658 = vld [vmem:[#allocation5 + $0x148] sm:$0xf]
        %v659 = vld [vmem:[#allocation5 + $0x14c] sm:$0xf]
        %v660 = vld [vmem:[#allocation5 + $0x150] sm:$0xf]
        %v661 = vld [vmem:[#allocation5 + $0x154] sm:$0xf]
        %v662 = vld [vmem:[#allocation5 + $0x158] sm:$0xf]
        %v663 = vld [vmem:[#allocation5 + $0x15c] sm:$0xf]
        %v664 = vld [vmem:[#allocation5 + $0x160] sm:$0xf]
        %v665 = vld [vmem:[#allocation5 + $0x164] sm:$0xf]
        %v666 = vld [vmem:[#allocation5 + $0x168] sm:$0xf]
        %v667 = vld [vmem:[#allocation5 + $0x16c] sm:$0xf]
        %v668 = vld [vmem:[#allocation5 + $0x170] sm:$0xf]
        %v669 = vld [vmem:[#allocation5 + $0x174] sm:$0xf]
        %v670 = vld [vmem:[#allocation5 + $0x178] sm:$0xf]
        %v671 = vld [vmem:[#allocation5 + $0x17c] sm:$0xf]
        %v672 = vld [vmem:[#allocation5 + $0x180] sm:$0xf]
        %v673 = vld [vmem:[#allocation5 + $0x184] sm:$0xf]
        %v674 = vld [vmem:[#allocation5 + $0x188] sm:$0xf]
        %v675 = vld [vmem:[#allocation5 + $0x18c] sm:$0xf]
        %v676 = vld [vmem:[#allocation5 + $0x190] sm:$0xf]
        %v677 = vld [vmem:[#allocation5 + $0x194] sm:$0xf]
        %v678 = vld [vmem:[#allocation5 + $0x198] sm:$0xf]
        %v679 = vld [vmem:[#allocation5 + $0x19c] sm:$0xf]
        %v680 = vld [vmem:[#allocation5 + $0x1a0] sm:$0xf]
        %v681 = vld [vmem:[#allocation5 + $0x1a4] sm:$0xf]
        %v682 = vld [vmem:[#allocation5 + $0x1a8] sm:$0xf]
        %v683 = vld [vmem:[#allocation5 + $0x1ac] sm:$0xf]
        %v684 = vld [vmem:[#allocation5 + $0x1b0] sm:$0xf]
        %v685 = vld [vmem:[#allocation5 + $0x1b4] sm:$0xf]
        %v686 = vld [vmem:[#allocation5 + $0x1b8] sm:$0xf]
        %v687 = vld [vmem:[#allocation5 + $0x1bc] sm:$0xf]
        %v688 = vld [vmem:[#allocation5 + $0x1c0] sm:$0xf]
        %v689 = vld [vmem:[#allocation5 + $0x1c4] sm:$0xf]
        %v690 = vld [vmem:[#allocation5 + $0x1c8] sm:$0xf]
        %v691 = vld [vmem:[#allocation5 + $0x1cc] sm:$0xf]
        %v692 = vld [vmem:[#allocation5 + $0x1d0] sm:$0xf]
        %v693 = vld [vmem:[#allocation5 + $0x1d4] sm:$0xf]
        %v694 = vld [vmem:[#allocation5 + $0x1d8] sm:$0xf]
        %v695 = vld [vmem:[#allocation5 + $0x1dc] sm:$0xf]
        %v696 = vld [vmem:[#allocation5 + $0x1e0] sm:$0xf]
        %v697 = vld [vmem:[#allocation5 + $0x1e4] sm:$0xf]
        %v698 = vld [vmem:[#allocation5 + $0x1e8] sm:$0xf]
        %v699 = vld [vmem:[#allocation5 + $0x1ec] sm:$0xf]
        %v700 = vld [vmem:[#allocation5 + $0x1f0] sm:$0xf]
        %v701 = vld [vmem:[#allocation5 + $0x1f4] sm:$0xf]
        %v702 = vld [vmem:[#allocation5 + $0x1f8] sm:$0xf]
        %v703 = vld [vmem:[#allocation5 + $0x1fc] sm:$0xf]
        %v704 = vld [vmem:[#allocation5 + $0x200] sm:$0xf]
        %v705 = vld [vmem:[#allocation5 + $0x204] sm:$0xf]
        %v706 = vld [vmem:[#allocation5 + $0x208] sm:$0xf]
        %v707 = vld [vmem:[#allocation5 + $0x20c] sm:$0xf]
        %v708 = vld [vmem:[#allocation5 + $0x210] sm:$0xf]
        %v709 = vld [vmem:[#allocation5 + $0x214] sm:$0xf]
        %v710 = vld [vmem:[#allocation5 + $0x218] sm:$0xf]
        %v711 = vld [vmem:[#allocation5 + $0x21c] sm:$0xf]
        %v712 = vld [vmem:[#allocation5 + $0x220] sm:$0xf]
        %v713 = vld [vmem:[#allocation5 + $0x224] sm:$0xf]
        %v714 = vld [vmem:[#allocation5 + $0x228] sm:$0xf]
        %v715 = vld [vmem:[#allocation5 + $0x22c] sm:$0xf]
        %v716 = vld [vmem:[#allocation5 + $0x230] sm:$0xf]
        %v717 = vld [vmem:[#allocation5 + $0x234] sm:$0xf]
        %v718 = vld [vmem:[#allocation5 + $0x238] sm:$0xf]
        %v719 = vld [vmem:[#allocation5 + $0x23c] sm:$0xf]
        %v720 = vld [vmem:[#allocation5 + $0x240] sm:$0xf]
        %v721 = vld [vmem:[#allocation5 + $0x244] sm:$0xf]
        %v722 = vld [vmem:[#allocation5 + $0x248] sm:$0xf]
        %v723 = vld [vmem:[#allocation5 + $0x24c] sm:$0xf]
        %v724 = vld [vmem:[#allocation5 + $0x250] sm:$0xf]
        %v725 = vld [vmem:[#allocation5 + $0x254] sm:$0xf]
        %v726 = vld [vmem:[#allocation5 + $0x258] sm:$0xf]
        %v727 = vld [vmem:[#allocation5 + $0x25c] sm:$0xf]
        %v728 = vld [vmem:[#allocation5 + $0x260] sm:$0xf]
        %v729 = vld [vmem:[#allocation5 + $0x264] sm:$0xf]
        %v730 = vld [vmem:[#allocation5 + $0x268] sm:$0xf]
        %v731 = vld [vmem:[#allocation5 + $0x26c] sm:$0xf]
        %v732 = vld [vmem:[#allocation5 + $0x270] sm:$0xf]
        %v733 = vld [vmem:[#allocation5 + $0x274] sm:$0xf]
        %v734 = vld [vmem:[#allocation5 + $0x278] sm:$0xf]
        %v735 = vld [vmem:[#allocation5 + $0x27c] sm:$0xf]
        %v736 = vld [vmem:[#allocation5 + $0x280] sm:$0xf]
        %v737 = vld [vmem:[#allocation5 + $0x284] sm:$0xf]
        %v738 = vld [vmem:[#allocation5 + $0x288] sm:$0xf]
        %v739 = vld [vmem:[#allocation5 + $0x28c] sm:$0xf]
        %v740 = vld [vmem:[#allocation5 + $0x290] sm:$0xf]
        %v741 = vld [vmem:[#allocation5 + $0x294] sm:$0xf]
        %v742 = vld [vmem:[#allocation5 + $0x298] sm:$0xf]
        %v743 = vld [vmem:[#allocation5 + $0x29c] sm:$0xf]
        %v744 = vld [vmem:[#allocation5 + $0x2a0] sm:$0xf]
        %v745 = vld [vmem:[#allocation5 + $0x2a4] sm:$0xf]
        %v746 = vld [vmem:[#allocation5 + $0x2a8] sm:$0xf]
        %v747 = vld [vmem:[#allocation5 + $0x2ac] sm:$0xf]
        %v748 = vld [vmem:[#allocation5 + $0x2b0] sm:$0xf]
        %v749 = vld [vmem:[#allocation5 + $0x2b4] sm:$0xf]
        %v750 = vld [vmem:[#allocation5 + $0x2b8] sm:$0xf]
        %v751 = vld [vmem:[#allocation5 + $0x2bc] sm:$0xf]
        %v752 = vld [vmem:[#allocation5 + $0x2c0] sm:$0xf]
        %v753 = vld [vmem:[#allocation5 + $0x2c4] sm:$0xf]
        %v754 = vld [vmem:[#allocation5 + $0x2c8] sm:$0xf]
        %v755 = vld [vmem:[#allocation5 + $0x2cc] sm:$0xf]
        %v756 = vld [vmem:[#allocation5 + $0x2d0] sm:$0xf]
        %v757 = vld [vmem:[#allocation5 + $0x2d4] sm:$0xf]
        %v758 = vld [vmem:[#allocation5 + $0x2d8] sm:$0xf]
        %v759 = vld [vmem:[#allocation5 + $0x2dc] sm:$0xf]
        %v760 = vld [vmem:[#allocation5 + $0x2e0] sm:$0xf]
        %v761 = vld [vmem:[#allocation5 + $0x2e4] sm:$0xf]
        %v762 = vld [vmem:[#allocation5 + $0x2e8] sm:$0xf]
        %v763 = vld [vmem:[#allocation5 + $0x2ec] sm:$0xf]
        %v764 = vld [vmem:[#allocation5 + $0x2f0] sm:$0xf]
        %v765 = vld [vmem:[#allocation5 + $0x2f4] sm:$0xf]
        %v766 = vld [vmem:[#allocation5 + $0x2f8] sm:$0xf]
        %v767 = vld [vmem:[#allocation5 + $0x2fc] sm:$0xf]
        %v768 = vld [vmem:[#allocation5 + $0x300] sm:$0xf]
        %v769 = vld [vmem:[#allocation5 + $0x304] sm:$0xf]
        %v770 = vld [vmem:[#allocation5 + $0x308] sm:$0xf]
        %v771 = vld [vmem:[#allocation5 + $0x30c] sm:$0xf]
        %v772 = vld [vmem:[#allocation5 + $0x310] sm:$0xf]
        %v773 = vld [vmem:[#allocation5 + $0x314] sm:$0xf]
        %v774 = vld [vmem:[#allocation5 + $0x318] sm:$0xf]
        %v775 = vld [vmem:[#allocation5 + $0x31c] sm:$0xf]
        %v776 = vld [vmem:[#allocation5 + $0x320] sm:$0xf]
        %v777 = vld [vmem:[#allocation5 + $0x324] sm:$0xf]
        %v778 = vld [vmem:[#allocation5 + $0x328] sm:$0xf]
        %v779 = vld [vmem:[#allocation5 + $0x32c] sm:$0xf]
        %v780 = vld [vmem:[#allocation5 + $0x330] sm:$0xf]
        %v781 = vld [vmem:[#allocation5 + $0x334] sm:$0xf]
        %v782 = vld [vmem:[#allocation5 + $0x338] sm:$0xf]
        %v783 = vld [vmem:[#allocation5 + $0x33c] sm:$0xf]
        %v784 = vld [vmem:[#allocation5 + $0x340] sm:$0xf]
        %v785 = vld [vmem:[#allocation5 + $0x344] sm:$0xf]
        %v786 = vld [vmem:[#allocation5 + $0x348] sm:$0xf]
        %v787 = vld [vmem:[#allocation5 + $0x34c] sm:$0xf]
        %v788 = vld [vmem:[#allocation5 + $0x350] sm:$0xf]
        %v789 = vld [vmem:[#allocation5 + $0x354] sm:$0xf]
        %v790 = vld [vmem:[#allocation5 + $0x358] sm:$0xf]
        %v791 = vld [vmem:[#allocation5 + $0x35c] sm:$0xf]
        %v792 = vld [vmem:[#allocation5 + $0x360] sm:$0xf]
        %v793 = vld [vmem:[#allocation5 + $0x364] sm:$0xf]
        %v794 = vld [vmem:[#allocation5 + $0x368] sm:$0xf]
        %v795 = vld [vmem:[#allocation5 + $0x36c] sm:$0xf]
        %v796 = vld [vmem:[#allocation5 + $0x370] sm:$0xf]
        %v797 = vld [vmem:[#allocation5 + $0x374] sm:$0xf]
        %v798 = vld [vmem:[#allocation5 + $0x378] sm:$0xf]
        %v799 = vld [vmem:[#allocation5 + $0x37c] sm:$0xf]
        %v800 = vld [vmem:[#allocation5 + $0x380] sm:$0xf]
        %v801 = vld [vmem:[#allocation5 + $0x384] sm:$0xf]
        %v802 = vld [vmem:[#allocation5 + $0x388] sm:$0xf]
        %v803 = vld [vmem:[#allocation5 + $0x38c] sm:$0xf]
        %v804 = vld [vmem:[#allocation5 + $0x390] sm:$0xf]
        %v805 = vld [vmem:[#allocation5 + $0x394] sm:$0xf]
        %v806 = vld [vmem:[#allocation5 + $0x398] sm:$0xf]
        %v807 = vld [vmem:[#allocation5 + $0x39c] sm:$0xf]
        %v808 = vld [vmem:[#allocation5 + $0x3a0] sm:$0xf]
        %v809 = vld [vmem:[#allocation5 + $0x3a4] sm:$0xf]
        %v810 = vld [vmem:[#allocation5 + $0x3a8] sm:$0xf]
        %v811 = vld [vmem:[#allocation5 + $0x3ac] sm:$0xf]
        %v812 = vld [vmem:[#allocation5 + $0x3b0] sm:$0xf]
        %v813 = vld [vmem:[#allocation5 + $0x3b4] sm:$0xf]
        %v814 = vld [vmem:[#allocation5 + $0x3b8] sm:$0xf]
        %v815 = vld [vmem:[#allocation5 + $0x3bc] sm:$0xf]
        %v816 = vld [vmem:[#allocation5 + $0x3c0] sm:$0xf]
        %v817 = vld [vmem:[#allocation5 + $0x3c4] sm:$0xf]
        %v818 = vld [vmem:[#allocation5 + $0x3c8] sm:$0xf]
        %v819 = vld [vmem:[#allocation5 + $0x3cc] sm:$0xf]
        %v820 = vld [vmem:[#allocation5 + $0x3d0] sm:$0xf]
        %v821 = vld [vmem:[#allocation5 + $0x3d4] sm:$0xf]
        %v822 = vld [vmem:[#allocation5 + $0x3d8] sm:$0xf]
        %v823 = vld [vmem:[#allocation5 + $0x3dc] sm:$0xf]
        %v824 = vld [vmem:[#allocation5 + $0x3e0] sm:$0xf]
        %v825 = vld [vmem:[#allocation5 + $0x3e4] sm:$0xf]
        %v826 = vld [vmem:[#allocation5 + $0x3e8] sm:$0xf]
        %v827 = vld [vmem:[#allocation5 + $0x3ec] sm:$0xf]
        %v828 = vld [vmem:[#allocation5 + $0x3f0] sm:$0xf]
        %v829 = vld [vmem:[#allocation5 + $0x3f4] sm:$0xf]
        %v830 = vld [vmem:[#allocation5 + $0x3f8] sm:$0xf]
        %v831 = vld [vmem:[#allocation5 + $0x3fc] sm:$0xf]
        %v832 = vld [vmem:[#allocation5 + $0x400] sm:$0xf]
        %v833 = vld [vmem:[#allocation5 + $0x404] sm:$0xf]
        %v834 = vld [vmem:[#allocation5 + $0x408] sm:$0xf]
        %v835 = vld [vmem:[#allocation5 + $0x40c] sm:$0xf]
        %v836 = vld [vmem:[#allocation5 + $0x410] sm:$0xf]
        %v837 = vld [vmem:[#allocation5 + $0x414] sm:$0xf]
        %v838 = vld [vmem:[#allocation5 + $0x418] sm:$0xf]
        %v839 = vld [vmem:[#allocation5 + $0x41c] sm:$0xf]
        %v840 = vld [vmem:[#allocation5 + $0x420] sm:$0xf]
        %v841 = vld [vmem:[#allocation5 + $0x424] sm:$0xf]
        %v842 = vld [vmem:[#allocation5 + $0x428] sm:$0xf]
        %v843 = vld [vmem:[#allocation5 + $0x42c] sm:$0xf]
        %v844 = vld [vmem:[#allocation5 + $0x430] sm:$0xf]
        %v845 = vld [vmem:[#allocation5 + $0x434] sm:$0xf]
        %v846 = vld [vmem:[#allocation5 + $0x438] sm:$0xf]
        %v847 = vld [vmem:[#allocation5 + $0x43c] sm:$0xf]
        %v848 = vld [vmem:[#allocation5 + $0x440] sm:$0xf]
        %v849 = vld [vmem:[#allocation5 + $0x444] sm:$0xf]
        %v850 = vld [vmem:[#allocation5 + $0x448] sm:$0xf]
        %v851 = vld [vmem:[#allocation5 + $0x44c] sm:$0xf]
        %v852 = vld [vmem:[#allocation5 + $0x450] sm:$0xf]
        %v853 = vld [vmem:[#allocation5 + $0x454] sm:$0xf]
        %v854 = vld [vmem:[#allocation5 + $0x458] sm:$0xf]
        %v855 = vld [vmem:[#allocation5 + $0x45c] sm:$0xf]
        %v856 = vld [vmem:[#allocation5 + $0x460] sm:$0xf]
        %v857 = vld [vmem:[#allocation5 + $0x464] sm:$0xf]
        %v858 = vld [vmem:[#allocation5 + $0x468] sm:$0xf]
        %v859 = vld [vmem:[#allocation5 + $0x46c] sm:$0xf]
        %v860 = vld [vmem:[#allocation5 + $0x470] sm:$0xf]
        %v861 = vld [vmem:[#allocation5 + $0x474] sm:$0xf]
        %v862 = vld [vmem:[#allocation5 + $0x478] sm:$0xf]
        %v863 = vld [vmem:[#allocation5 + $0x47c] sm:$0xf]
        %v864 = vld [vmem:[#allocation5 + $0x480] sm:$0xf]
        %v865 = vld [vmem:[#allocation5 + $0x484] sm:$0xf]
        %v866 = vld [vmem:[#allocation5 + $0x488] sm:$0xf]
        %v867 = vld [vmem:[#allocation5 + $0x48c] sm:$0xf]
        %v868 = vld [vmem:[#allocation5 + $0x490] sm:$0xf]
        %v869 = vld [vmem:[#allocation5 + $0x494] sm:$0xf]
        %v870 = vld [vmem:[#allocation5 + $0x498] sm:$0xf]
        %v871 = vld [vmem:[#allocation5 + $0x49c] sm:$0xf]
        %v872 = vld [vmem:[#allocation5 + $0x4a0] sm:$0xf]
        %v873 = vld [vmem:[#allocation5 + $0x4a4] sm:$0xf]
        %v874 = vld [vmem:[#allocation5 + $0x4a8] sm:$0xf]
        %v875 = vld [vmem:[#allocation5 + $0x4ac] sm:$0xf]
        %v876 = vld [vmem:[#allocation5 + $0x4b0] sm:$0xf]
        %v877 = vld [vmem:[#allocation5 + $0x4b4] sm:$0xf]
        %v878 = vld [vmem:[#allocation5 + $0x4b8] sm:$0xf]
        %v879 = vld [vmem:[#allocation5 + $0x4bc] sm:$0xf]
        %v880 = vld [vmem:[#allocation5 + $0x4c0] sm:$0xf]
        %v881 = vld [vmem:[#allocation5 + $0x4c4] sm:$0xf]
        %v882 = vld [vmem:[#allocation5 + $0x4c8] sm:$0xf]
        %v883 = vld [vmem:[#allocation5 + $0x4cc] sm:$0xf]
        %v884 = vld [vmem:[#allocation5 + $0x4d0] sm:$0xf]
        %v885 = vld [vmem:[#allocation5 + $0x4d4] sm:$0xf]
        %v886 = vld [vmem:[#allocation5 + $0x4d8] sm:$0xf]
        %v887 = vld [vmem:[#allocation5 + $0x4dc] sm:$0xf]
        %v888 = vld [vmem:[#allocation5 + $0x4e0] sm:$0xf]
        %v889 = vld [vmem:[#allocation5 + $0x4e4] sm:$0xf]
        %v890 = vld [vmem:[#allocation5 + $0x4e8] sm:$0xf]
        %v891 = vld [vmem:[#allocation5 + $0x4ec] sm:$0xf]
        %v892 = vld [vmem:[#allocation5 + $0x4f0] sm:$0xf]
        %v893 = vld [vmem:[#allocation5 + $0x4f4] sm:$0xf]
        %v894 = vld [vmem:[#allocation5 + $0x4f8] sm:$0xf]
        %v895 = vld [vmem:[#allocation5 + $0x4fc] sm:$0xf]
        %v896 = vld [vmem:[#allocation5 + $0x500] sm:$0xf]
        %v897 = vld [vmem:[#allocation5 + $0x504] sm:$0xf]
        %v898 = vld [vmem:[#allocation5 + $0x508] sm:$0xf]
        %v899 = vld [vmem:[#allocation5 + $0x50c] sm:$0xf]
        %v900 = vld [vmem:[#allocation5 + $0x510] sm:$0xf]
        %v901 = vld [vmem:[#allocation5 + $0x514] sm:$0xf]
        %v902 = vld [vmem:[#allocation5 + $0x518] sm:$0xf]
        %v903 = vld [vmem:[#allocation5 + $0x51c] sm:$0xf]
        %v904 = vld [vmem:[#allocation5 + $0x520] sm:$0xf]
        %v905 = vld [vmem:[#allocation5 + $0x524] sm:$0xf]
        %v906 = vld [vmem:[#allocation5 + $0x528] sm:$0xf]
        %v907 = vld [vmem:[#allocation5 + $0x52c] sm:$0xf]
        %v908 = vld [vmem:[#allocation5 + $0x530] sm:$0xf]
        %v909 = vld [vmem:[#allocation5 + $0x534] sm:$0xf]
        %v910 = vld [vmem:[#allocation5 + $0x538] sm:$0xf]
        %v911 = vld [vmem:[#allocation5 + $0x53c] sm:$0xf]
        %v912 = vld [vmem:[#allocation5 + $0x540] sm:$0xf]
        %v913 = vld [vmem:[#allocation5 + $0x544] sm:$0xf]
        %v914 = vld [vmem:[#allocation5 + $0x548] sm:$0xf]
        %v915 = vld [vmem:[#allocation5 + $0x54c] sm:$0xf]
        %v916 = vld [vmem:[#allocation5 + $0x550] sm:$0xf]
        %v917 = vld [vmem:[#allocation5 + $0x554] sm:$0xf]
        %v918 = vld [vmem:[#allocation5 + $0x558] sm:$0xf]
        %v919 = vld [vmem:[#allocation5 + $0x55c] sm:$0xf]
        %v920 = vld [vmem:[#allocation5 + $0x560] sm:$0xf]
        %v921 = vld [vmem:[#allocation5 + $0x564] sm:$0xf]
        %v922 = vld [vmem:[#allocation5 + $0x568] sm:$0xf]
        %v923 = vld [vmem:[#allocation5 + $0x56c] sm:$0xf]
        %v924 = vld [vmem:[#allocation5 + $0x570] sm:$0xf]
        %v925 = vld [vmem:[#allocation5 + $0x574] sm:$0xf]
        %v926 = vld [vmem:[#allocation5 + $0x578] sm:$0xf]
        %v927 = vld [vmem:[#allocation5 + $0x57c] sm:$0xf]
        %v928 = vld [vmem:[#allocation5 + $0x580] sm:$0xf]
        %v929 = vld [vmem:[#allocation5 + $0x584] sm:$0xf]
        %v930 = vld [vmem:[#allocation5 + $0x588] sm:$0xf]
        %v931 = vld [vmem:[#allocation5 + $0x58c] sm:$0xf]
        %v932 = vld [vmem:[#allocation5 + $0x590] sm:$0xf]
        %v933 = vld [vmem:[#allocation5 + $0x594] sm:$0xf]
        %v934 = vld [vmem:[#allocation5 + $0x598] sm:$0xf]
        %v935 = vld [vmem:[#allocation5 + $0x59c] sm:$0xf]
        %v936 = vld [vmem:[#allocation5 + $0x5a0] sm:$0xf]
        %v937 = vld [vmem:[#allocation5 + $0x5a4] sm:$0xf]
        %v938 = vld [vmem:[#allocation5 + $0x5a8] sm:$0xf]
        %v939 = vld [vmem:[#allocation5 + $0x5ac] sm:$0xf]
        %v940 = vld [vmem:[#allocation5 + $0x5b0] sm:$0xf]
        %v941 = vld [vmem:[#allocation5 + $0x5b4] sm:$0xf]
        %v942 = vld [vmem:[#allocation5 + $0x5b8] sm:$0xf]
        %v943 = vld [vmem:[#allocation5 + $0x5bc] sm:$0xf]
        %v944 = vld [vmem:[#allocation5 + $0x5c0] sm:$0xf]
        %v945 = vld [vmem:[#allocation5 + $0x5c4] sm:$0xf]
        %v946 = vld [vmem:[#allocation5 + $0x5c8] sm:$0xf]
        %v947 = vld [vmem:[#allocation5 + $0x5cc] sm:$0xf]
        %v948 = vld [vmem:[#allocation5 + $0x5d0] sm:$0xf]
        %v949 = vld [vmem:[#allocation5 + $0x5d4] sm:$0xf]
        %v950 = vld [vmem:[#allocation5 + $0x5d8] sm:$0xf]
        %v951 = vld [vmem:[#allocation5 + $0x5dc] sm:$0xf]
        %v952 = vld [vmem:[#allocation5 + $0x5e0] sm:$0xf]
        %v953 = vld [vmem:[#allocation5 + $0x5e4] sm:$0xf]
        %v954 = vld [vmem:[#allocation5 + $0x5e8] sm:$0xf]
        %v955 = vld [vmem:[#allocation5 + $0x5ec] sm:$0xf]
        %v956 = vld [vmem:[#allocation5 + $0x5f0] sm:$0xf]
        %v957 = vld [vmem:[#allocation5 + $0x5f4] sm:$0xf]
        %v958 = vld [vmem:[#allocation5 + $0x5f8] sm:$0xf]
        %v959 = vld [vmem:[#allocation5 + $0x5fc] sm:$0xf]
        %v960 = vld [vmem:[#allocation7] sm:$0x1]
        %v962 = vlaneseq
        %v963 = vshrl.u32 %v962, 7
        %v964 = vsub.s32 0, %v963
        %v965 = vrot.slane %v960, %v964
        %v1159 = vunpack.c.l.b16 %v384
        %v1160 = vunpack.c.h.b16 %v384
        %v1161 = vunpack.c.l.b16 %v385
        %v1162 = vunpack.c.h.b16 %v385
        %v1163 = vunpack.c.l.b16 %v386
        %v1164 = vunpack.c.h.b16 %v386
        %v1165 = vunpack.c.l.b16 %v387
        %v1166 = vunpack.c.h.b16 %v387
        %v1167 = vunpack.c.l.b16 %v388
        %v1168 = vunpack.c.h.b16 %v388
        %v1169 = vunpack.c.l.b16 %v389
        %v1170 = vunpack.c.h.b16 %v389
        %v1171 = vunpack.c.l.b16 %v390
        %v1172 = vunpack.c.h.b16 %v390
        %v1173 = vunpack.c.l.b16 %v391
        %v1174 = vunpack.c.h.b16 %v391
        %v1175 = vunpack.c.l.b16 %v392
        %v1176 = vunpack.c.h.b16 %v392
        %v1177 = vunpack.c.l.b16 %v393
        %v1178 = vunpack.c.h.b16 %v393
        %v1179 = vunpack.c.l.b16 %v394
        %v1180 = vunpack.c.h.b16 %v394
        %v1181 = vunpack.c.l.b16 %v395
        %v1182 = vunpack.c.h.b16 %v395
        %v1183 = vunpack.c.l.b16 %v396
        %v1184 = vunpack.c.h.b16 %v396
        %v1185 = vunpack.c.l.b16 %v397
        %v1186 = vunpack.c.h.b16 %v397
        %v1187 = vunpack.c.l.b16 %v398
        %v1188 = vunpack.c.h.b16 %v398
        %v1189 = vunpack.c.l.b16 %v399
        %v1190 = vunpack.c.h.b16 %v399
        %v1191 = vunpack.c.l.b16 %v400
        %v1192 = vunpack.c.h.b16 %v400
        %v1193 = vunpack.c.l.b16 %v401
        %v1194 = vunpack.c.h.b16 %v401
        %v1195 = vunpack.c.l.b16 %v402
        %v1196 = vunpack.c.h.b16 %v402
        %v1197 = vunpack.c.l.b16 %v403
        %v1198 = vunpack.c.h.b16 %v403
        %v1199 = vunpack.c.l.b16 %v404
        %v1200 = vunpack.c.h.b16 %v404
        %v1201 = vunpack.c.l.b16 %v405
        %v1202 = vunpack.c.h.b16 %v405
        %v1203 = vunpack.c.l.b16 %v406
        %v1204 = vunpack.c.h.b16 %v406
        %v1205 = vunpack.c.l.b16 %v407
        %v1206 = vunpack.c.h.b16 %v407
        %v1207 = vunpack.c.l.b16 %v408
        %v1208 = vunpack.c.h.b16 %v408
        %v1209 = vunpack.c.l.b16 %v409
        %v1210 = vunpack.c.h.b16 %v409
        %v1211 = vunpack.c.l.b16 %v410
        %v1212 = vunpack.c.h.b16 %v410
        %v1213 = vunpack.c.l.b16 %v411
        %v1214 = vunpack.c.h.b16 %v411
        %v1215 = vunpack.c.l.b16 %v412
        %v1216 = vunpack.c.h.b16 %v412
        %v1217 = vunpack.c.l.b16 %v413
        %v1218 = vunpack.c.h.b16 %v413
        %v1219 = vunpack.c.l.b16 %v414
        %v1220 = vunpack.c.h.b16 %v414
        %v1221 = vunpack.c.l.b16 %v415
        %v1222 = vunpack.c.h.b16 %v415
        %v1223 = vunpack.c.l.b16 %v416
        %v1224 = vunpack.c.h.b16 %v416
        %v1225 = vunpack.c.l.b16 %v417
        %v1226 = vunpack.c.h.b16 %v417
        %v1227 = vunpack.c.l.b16 %v418
        %v1228 = vunpack.c.h.b16 %v418
        %v1229 = vunpack.c.l.b16 %v419
        %v1230 = vunpack.c.h.b16 %v419
        %v1231 = vunpack.c.l.b16 %v420
        %v1232 = vunpack.c.h.b16 %v420
        %v1233 = vunpack.c.l.b16 %v421
        %v1234 = vunpack.c.h.b16 %v421
        %v1235 = vunpack.c.l.b16 %v422
        %v1236 = vunpack.c.h.b16 %v422
        %v1237 = vunpack.c.l.b16 %v423
        %v1238 = vunpack.c.h.b16 %v423
        %v1239 = vunpack.c.l.b16 %v424
        %v1240 = vunpack.c.h.b16 %v424
        %v1241 = vunpack.c.l.b16 %v425
        %v1242 = vunpack.c.h.b16 %v425
        %v1243 = vunpack.c.l.b16 %v426
        %v1244 = vunpack.c.h.b16 %v426
        %v1245 = vunpack.c.l.b16 %v427
        %v1246 = vunpack.c.h.b16 %v427
        %v1247 = vunpack.c.l.b16 %v428
        %v1248 = vunpack.c.h.b16 %v428
        %v1249 = vunpack.c.l.b16 %v429
        %v1250 = vunpack.c.h.b16 %v429
        %v1251 = vunpack.c.l.b16 %v430
        %v1252 = vunpack.c.h.b16 %v430
        %v1253 = vunpack.c.l.b16 %v431
        %v1254 = vunpack.c.h.b16 %v431
        %v1255 = vunpack.c.l.b16 %v432
        %v1256 = vunpack.c.h.b16 %v432
        %v1257 = vunpack.c.l.b16 %v433
        %v1258 = vunpack.c.h.b16 %v433
        %v1259 = vunpack.c.l.b16 %v434
        %v1260 = vunpack.c.h.b16 %v434
        %v1261 = vunpack.c.l.b16 %v435
        %v1262 = vunpack.c.h.b16 %v435
        %v1263 = vunpack.c.l.b16 %v436
        %v1264 = vunpack.c.h.b16 %v436
        %v1265 = vunpack.c.l.b16 %v437
        %v1266 = vunpack.c.h.b16 %v437
        %v1267 = vunpack.c.l.b16 %v438
        %v1268 = vunpack.c.h.b16 %v438
        %v1269 = vunpack.c.l.b16 %v439
        %v1270 = vunpack.c.h.b16 %v439
        %v1271 = vunpack.c.l.b16 %v440
        %v1272 = vunpack.c.h.b16 %v440
        %v1273 = vunpack.c.l.b16 %v441
        %v1274 = vunpack.c.h.b16 %v441
        %v1275 = vunpack.c.l.b16 %v442
        %v1276 = vunpack.c.h.b16 %v442
        %v1277 = vunpack.c.l.b16 %v443
        %v1278 = vunpack.c.h.b16 %v443
        %v1279 = vunpack.c.l.b16 %v444
        %v1280 = vunpack.c.h.b16 %v444
        %v1281 = vunpack.c.l.b16 %v445
        %v1282 = vunpack.c.h.b16 %v445
        %v1283 = vunpack.c.l.b16 %v446
        %v1284 = vunpack.c.h.b16 %v446
        %v1285 = vunpack.c.l.b16 %v447
        %v1286 = vunpack.c.h.b16 %v447
        %v1287 = vunpack.c.l.b16 %v448
        %v1288 = vunpack.c.h.b16 %v448
        %v1289 = vunpack.c.l.b16 %v449
        %v1290 = vunpack.c.h.b16 %v449
        %v1291 = vunpack.c.l.b16 %v450
        %v1292 = vunpack.c.h.b16 %v450
        %v1293 = vunpack.c.l.b16 %v451
        %v1294 = vunpack.c.h.b16 %v451
        %v1295 = vunpack.c.l.b16 %v452
        %v1296 = vunpack.c.h.b16 %v452
        %v1297 = vunpack.c.l.b16 %v453
        %v1298 = vunpack.c.h.b16 %v453
        %v1299 = vunpack.c.l.b16 %v454
        %v1300 = vunpack.c.h.b16 %v454
        %v1301 = vunpack.c.l.b16 %v455
        %v1302 = vunpack.c.h.b16 %v455
        %v1303 = vunpack.c.l.b16 %v456
        %v1304 = vunpack.c.h.b16 %v456
        %v1305 = vunpack.c.l.b16 %v457
        %v1306 = vunpack.c.h.b16 %v457
        %v1307 = vunpack.c.l.b16 %v458
        %v1308 = vunpack.c.h.b16 %v458
        %v1309 = vunpack.c.l.b16 %v459
        %v1310 = vunpack.c.h.b16 %v459
        %v1311 = vunpack.c.l.b16 %v460
        %v1312 = vunpack.c.h.b16 %v460
        %v1313 = vunpack.c.l.b16 %v461
        %v1314 = vunpack.c.h.b16 %v461
        %v1315 = vunpack.c.l.b16 %v462
        %v1316 = vunpack.c.h.b16 %v462
        %v1317 = vunpack.c.l.b16 %v463
        %v1318 = vunpack.c.h.b16 %v463
        %v1319 = vunpack.c.l.b16 %v464
        %v1320 = vunpack.c.h.b16 %v464
        %v1321 = vunpack.c.l.b16 %v465
        %v1322 = vunpack.c.h.b16 %v465
        %v1323 = vunpack.c.l.b16 %v466
        %v1324 = vunpack.c.h.b16 %v466
        %v1325 = vunpack.c.l.b16 %v467
        %v1326 = vunpack.c.h.b16 %v467
        %v1327 = vunpack.c.l.b16 %v468
        %v1328 = vunpack.c.h.b16 %v468
        %v1329 = vunpack.c.l.b16 %v469
        %v1330 = vunpack.c.h.b16 %v469
        %v1331 = vunpack.c.l.b16 %v470
        %v1332 = vunpack.c.h.b16 %v470
        %v1333 = vunpack.c.l.b16 %v471
        %v1334 = vunpack.c.h.b16 %v471
        %v1335 = vunpack.c.l.b16 %v472
        %v1336 = vunpack.c.h.b16 %v472
        %v1337 = vunpack.c.l.b16 %v473
        %v1338 = vunpack.c.h.b16 %v473
        %v1339 = vunpack.c.l.b16 %v474
        %v1340 = vunpack.c.h.b16 %v474
        %v1341 = vunpack.c.l.b16 %v475
        %v1342 = vunpack.c.h.b16 %v475
        %v1343 = vunpack.c.l.b16 %v476
        %v1344 = vunpack.c.h.b16 %v476
        %v1345 = vunpack.c.l.b16 %v477
        %v1346 = vunpack.c.h.b16 %v477
        %v1347 = vunpack.c.l.b16 %v478
        %v1348 = vunpack.c.h.b16 %v478
        %v1349 = vunpack.c.l.b16 %v479
        %v1350 = vunpack.c.h.b16 %v479
        %v1351 = vunpack.c.l.b16 %v480
        %v1352 = vunpack.c.h.b16 %v480
        %v1353 = vunpack.c.l.b16 %v481
        %v1354 = vunpack.c.h.b16 %v481
        %v1355 = vunpack.c.l.b16 %v482
        %v1356 = vunpack.c.h.b16 %v482
        %v1357 = vunpack.c.l.b16 %v483
        %v1358 = vunpack.c.h.b16 %v483
        %v1359 = vunpack.c.l.b16 %v484
        %v1360 = vunpack.c.h.b16 %v484
        %v1361 = vunpack.c.l.b16 %v485
        %v1362 = vunpack.c.h.b16 %v485
        %v1363 = vunpack.c.l.b16 %v486
        %v1364 = vunpack.c.h.b16 %v486
        %v1365 = vunpack.c.l.b16 %v487
        %v1366 = vunpack.c.h.b16 %v487
        %v1367 = vunpack.c.l.b16 %v488
        %v1368 = vunpack.c.h.b16 %v488
        %v1369 = vunpack.c.l.b16 %v489
        %v1370 = vunpack.c.h.b16 %v489
        %v1371 = vunpack.c.l.b16 %v490
        %v1372 = vunpack.c.h.b16 %v490
        %v1373 = vunpack.c.l.b16 %v491
        %v1374 = vunpack.c.h.b16 %v491
        %v1375 = vunpack.c.l.b16 %v492
        %v1376 = vunpack.c.h.b16 %v492
        %v1377 = vunpack.c.l.b16 %v493
        %v1378 = vunpack.c.h.b16 %v493
        %v1379 = vunpack.c.l.b16 %v494
        %v1380 = vunpack.c.h.b16 %v494
        %v1381 = vunpack.c.l.b16 %v495
        %v1382 = vunpack.c.h.b16 %v495
        %v1383 = vunpack.c.l.b16 %v496
        %v1384 = vunpack.c.h.b16 %v496
        %v1385 = vunpack.c.l.b16 %v497
        %v1386 = vunpack.c.h.b16 %v497
        %v1387 = vunpack.c.l.b16 %v498
        %v1388 = vunpack.c.h.b16 %v498
        %v1389 = vunpack.c.l.b16 %v499
        %v1390 = vunpack.c.h.b16 %v499
        %v1391 = vunpack.c.l.b16 %v500
        %v1392 = vunpack.c.h.b16 %v500
        %v1393 = vunpack.c.l.b16 %v501
        %v1394 = vunpack.c.h.b16 %v501
        %v1395 = vunpack.c.l.b16 %v502
        %v1396 = vunpack.c.h.b16 %v502
        %v1397 = vunpack.c.l.b16 %v503
        %v1398 = vunpack.c.h.b16 %v503
        %v1399 = vunpack.c.l.b16 %v504
        %v1400 = vunpack.c.h.b16 %v504
        %v1401 = vunpack.c.l.b16 %v505
        %v1402 = vunpack.c.h.b16 %v505
        %v1403 = vunpack.c.l.b16 %v506
        %v1404 = vunpack.c.h.b16 %v506
        %v1405 = vunpack.c.l.b16 %v507
        %v1406 = vunpack.c.h.b16 %v507
        %v1407 = vunpack.c.l.b16 %v508
        %v1408 = vunpack.c.h.b16 %v508
        %v1409 = vunpack.c.l.b16 %v509
        %v1410 = vunpack.c.h.b16 %v509
        %v1411 = vunpack.c.l.b16 %v510
        %v1412 = vunpack.c.h.b16 %v510
        %v1413 = vunpack.c.l.b16 %v511
        %v1414 = vunpack.c.h.b16 %v511
        %v1415 = vunpack.c.l.b16 %v512
        %v1416 = vunpack.c.h.b16 %v512
        %v1417 = vunpack.c.l.b16 %v513
        %v1418 = vunpack.c.h.b16 %v513
        %v1419 = vunpack.c.l.b16 %v514
        %v1420 = vunpack.c.h.b16 %v514
        %v1421 = vunpack.c.l.b16 %v515
        %v1422 = vunpack.c.h.b16 %v515
        %v1423 = vunpack.c.l.b16 %v516
        %v1424 = vunpack.c.h.b16 %v516
        %v1425 = vunpack.c.l.b16 %v517
        %v1426 = vunpack.c.h.b16 %v517
        %v1427 = vunpack.c.l.b16 %v518
        %v1428 = vunpack.c.h.b16 %v518
        %v1429 = vunpack.c.l.b16 %v519
        %v1430 = vunpack.c.h.b16 %v519
        %v1431 = vunpack.c.l.b16 %v520
        %v1432 = vunpack.c.h.b16 %v520
        %v1433 = vunpack.c.l.b16 %v521
        %v1434 = vunpack.c.h.b16 %v521
        %v1435 = vunpack.c.l.b16 %v522
        %v1436 = vunpack.c.h.b16 %v522
        %v1437 = vunpack.c.l.b16 %v523
        %v1438 = vunpack.c.h.b16 %v523
        %v1439 = vunpack.c.l.b16 %v524
        %v1440 = vunpack.c.h.b16 %v524
        %v1441 = vunpack.c.l.b16 %v525
        %v1442 = vunpack.c.h.b16 %v525
        %v1443 = vunpack.c.l.b16 %v526
        %v1444 = vunpack.c.h.b16 %v526
        %v1445 = vunpack.c.l.b16 %v527
        %v1446 = vunpack.c.h.b16 %v527
        %v1447 = vunpack.c.l.b16 %v528
        %v1448 = vunpack.c.h.b16 %v528
        %v1449 = vunpack.c.l.b16 %v529
        %v1450 = vunpack.c.h.b16 %v529
        %v1451 = vunpack.c.l.b16 %v530
        %v1452 = vunpack.c.h.b16 %v530
        %v1453 = vunpack.c.l.b16 %v531
        %v1454 = vunpack.c.h.b16 %v531
        %v1455 = vunpack.c.l.b16 %v532
        %v1456 = vunpack.c.h.b16 %v532
        %v1457 = vunpack.c.l.b16 %v533
        %v1458 = vunpack.c.h.b16 %v533
        %v1459 = vunpack.c.l.b16 %v534
        %v1460 = vunpack.c.h.b16 %v534
        %v1461 = vunpack.c.l.b16 %v535
        %v1462 = vunpack.c.h.b16 %v535
        %v1463 = vunpack.c.l.b16 %v536
        %v1464 = vunpack.c.h.b16 %v536
        %v1465 = vunpack.c.l.b16 %v537
        %v1466 = vunpack.c.h.b16 %v537
        %v1467 = vunpack.c.l.b16 %v538
        %v1468 = vunpack.c.h.b16 %v538
        %v1469 = vunpack.c.l.b16 %v539
        %v1470 = vunpack.c.h.b16 %v539
        %v1471 = vunpack.c.l.b16 %v540
        %v1472 = vunpack.c.h.b16 %v540
        %v1473 = vunpack.c.l.b16 %v541
        %v1474 = vunpack.c.h.b16 %v541
        %v1475 = vunpack.c.l.b16 %v542
        %v1476 = vunpack.c.h.b16 %v542
        %v1477 = vunpack.c.l.b16 %v543
        %v1478 = vunpack.c.h.b16 %v543
        %v1479 = vunpack.c.l.b16 %v544
        %v1480 = vunpack.c.h.b16 %v544
        %v1481 = vunpack.c.l.b16 %v545
        %v1482 = vunpack.c.h.b16 %v545
        %v1483 = vunpack.c.l.b16 %v546
        %v1484 = vunpack.c.h.b16 %v546
        %v1485 = vunpack.c.l.b16 %v547
        %v1486 = vunpack.c.h.b16 %v547
        %v1487 = vunpack.c.l.b16 %v548
        %v1488 = vunpack.c.h.b16 %v548
        %v1489 = vunpack.c.l.b16 %v549
        %v1490 = vunpack.c.h.b16 %v549
        %v1491 = vunpack.c.l.b16 %v550
        %v1492 = vunpack.c.h.b16 %v550
        %v1493 = vunpack.c.l.b16 %v551
        %v1494 = vunpack.c.h.b16 %v551
        %v1495 = vunpack.c.l.b16 %v552
        %v1496 = vunpack.c.h.b16 %v552
        %v1497 = vunpack.c.l.b16 %v553
        %v1498 = vunpack.c.h.b16 %v553
        %v1499 = vunpack.c.l.b16 %v554
        %v1500 = vunpack.c.h.b16 %v554
        %v1501 = vunpack.c.l.b16 %v555
        %v1502 = vunpack.c.h.b16 %v555
        %v1503 = vunpack.c.l.b16 %v556
        %v1504 = vunpack.c.h.b16 %v556
        %v1505 = vunpack.c.l.b16 %v557
        %v1506 = vunpack.c.h.b16 %v557
        %v1507 = vunpack.c.l.b16 %v558
        %v1508 = vunpack.c.h.b16 %v558
        %v1509 = vunpack.c.l.b16 %v559
        %v1510 = vunpack.c.h.b16 %v559
        %v1511 = vunpack.c.l.b16 %v560
        %v1512 = vunpack.c.h.b16 %v560
        %v1513 = vunpack.c.l.b16 %v561
        %v1514 = vunpack.c.h.b16 %v561
        %v1515 = vunpack.c.l.b16 %v562
        %v1516 = vunpack.c.h.b16 %v562
        %v1517 = vunpack.c.l.b16 %v563
        %v1518 = vunpack.c.h.b16 %v563
        %v1519 = vunpack.c.l.b16 %v564
        %v1520 = vunpack.c.h.b16 %v564
        %v1521 = vunpack.c.l.b16 %v565
        %v1522 = vunpack.c.h.b16 %v565
        %v1523 = vunpack.c.l.b16 %v566
        %v1524 = vunpack.c.h.b16 %v566
        %v1525 = vunpack.c.l.b16 %v567
        %v1526 = vunpack.c.h.b16 %v567
        %v1527 = vunpack.c.l.b16 %v568
        %v1528 = vunpack.c.h.b16 %v568
        %v1529 = vunpack.c.l.b16 %v569
        %v1530 = vunpack.c.h.b16 %v569
        %v1531 = vunpack.c.l.b16 %v570
        %v1532 = vunpack.c.h.b16 %v570
        %v1533 = vunpack.c.l.b16 %v571
        %v1534 = vunpack.c.h.b16 %v571
        %v1535 = vunpack.c.l.b16 %v572
        %v1536 = vunpack.c.h.b16 %v572
        %v1537 = vunpack.c.l.b16 %v573
        %v1538 = vunpack.c.h.b16 %v573
        %v1539 = vunpack.c.l.b16 %v574
        %v1540 = vunpack.c.h.b16 %v574
        %v1541 = vunpack.c.l.b16 %v575
        %v1542 = vunpack.c.h.b16 %v575
        %v1543 = vpack.c.b16 %v1183, %v1159
        %v1544 = vpack.c.b16 %v1184, %v1160
        %v1545 = vpack.c.b16 %v1185, %v1161
        %v1546 = vpack.c.b16 %v1186, %v1162
        %v1547 = vpack.c.b16 %v1187, %v1163
        %v1548 = vpack.c.b16 %v1188, %v1164
        %v1549 = vpack.c.b16 %v1189, %v1165
        %v1550 = vpack.c.b16 %v1190, %v1166
        %v1551 = vpack.c.b16 %v1191, %v1167
        %v1552 = vpack.c.b16 %v1192, %v1168
        %v1553 = vpack.c.b16 %v1193, %v1169
        %v1554 = vpack.c.b16 %v1194, %v1170
        %v1555 = vpack.c.b16 %v1195, %v1171
        %v1556 = vpack.c.b16 %v1196, %v1172
        %v1557 = vpack.c.b16 %v1197, %v1173
        %v1558 = vpack.c.b16 %v1198, %v1174
        %v1559 = vpack.c.b16 %v1199, %v1175
        %v1560 = vpack.c.b16 %v1200, %v1176
        %v1561 = vpack.c.b16 %v1201, %v1177
        %v1562 = vpack.c.b16 %v1202, %v1178
        %v1563 = vpack.c.b16 %v1203, %v1179
        %v1564 = vpack.c.b16 %v1204, %v1180
        %v1565 = vpack.c.b16 %v1205, %v1181
        %v1566 = vpack.c.b16 %v1206, %v1182
        %v1567 = vpack.c.b16 %v1231, %v1207
        %v1568 = vpack.c.b16 %v1232, %v1208
        %v1569 = vpack.c.b16 %v1233, %v1209
        %v1570 = vpack.c.b16 %v1234, %v1210
        %v1571 = vpack.c.b16 %v1235, %v1211
        %v1572 = vpack.c.b16 %v1236, %v1212
        %v1573 = vpack.c.b16 %v1237, %v1213
        %v1574 = vpack.c.b16 %v1238, %v1214
        %v1575 = vpack.c.b16 %v1239, %v1215
        %v1576 = vpack.c.b16 %v1240, %v1216
        %v1577 = vpack.c.b16 %v1241, %v1217
        %v1578 = vpack.c.b16 %v1242, %v1218
        %v1579 = vpack.c.b16 %v1243, %v1219
        %v1580 = vpack.c.b16 %v1244, %v1220
        %v1581 = vpack.c.b16 %v1245, %v1221
        %v1582 = vpack.c.b16 %v1246, %v1222
        %v1583 = vpack.c.b16 %v1247, %v1223
        %v1584 = vpack.c.b16 %v1248, %v1224
        %v1585 = vpack.c.b16 %v1249, %v1225
        %v1586 = vpack.c.b16 %v1250, %v1226
        %v1587 = vpack.c.b16 %v1251, %v1227
        %v1588 = vpack.c.b16 %v1252, %v1228
        %v1589 = vpack.c.b16 %v1253, %v1229
        %v1590 = vpack.c.b16 %v1254, %v1230
        %v1591 = vpack.c.b16 %v1279, %v1255
        %v1592 = vpack.c.b16 %v1280, %v1256
        %v1593 = vpack.c.b16 %v1281, %v1257
        %v1594 = vpack.c.b16 %v1282, %v1258
        %v1595 = vpack.c.b16 %v1283, %v1259
        %v1596 = vpack.c.b16 %v1284, %v1260
        %v1597 = vpack.c.b16 %v1285, %v1261
        %v1598 = vpack.c.b16 %v1286, %v1262
        %v1599 = vpack.c.b16 %v1287, %v1263
        %v1600 = vpack.c.b16 %v1288, %v1264
        %v1601 = vpack.c.b16 %v1289, %v1265
        %v1602 = vpack.c.b16 %v1290, %v1266
        %v1603 = vpack.c.b16 %v1291, %v1267
        %v1604 = vpack.c.b16 %v1292, %v1268
        %v1605 = vpack.c.b16 %v1293, %v1269
        %v1606 = vpack.c.b16 %v1294, %v1270
        %v1607 = vpack.c.b16 %v1295, %v1271
        %v1608 = vpack.c.b16 %v1296, %v1272
        %v1609 = vpack.c.b16 %v1297, %v1273
        %v1610 = vpack.c.b16 %v1298, %v1274
        %v1611 = vpack.c.b16 %v1299, %v1275
        %v1612 = vpack.c.b16 %v1300, %v1276
        %v1613 = vpack.c.b16 %v1301, %v1277
        %v1614 = vpack.c.b16 %v1302, %v1278
        %v1615 = vpack.c.b16 %v1327, %v1303
        %v1616 = vpack.c.b16 %v1328, %v1304
        %v1617 = vpack.c.b16 %v1329, %v1305
        %v1618 = vpack.c.b16 %v1330, %v1306
        %v1619 = vpack.c.b16 %v1331, %v1307
        %v1620 = vpack.c.b16 %v1332, %v1308
        %v1621 = vpack.c.b16 %v1333, %v1309
        %v1622 = vpack.c.b16 %v1334, %v1310
        %v1623 = vpack.c.b16 %v1335, %v1311
        %v1624 = vpack.c.b16 %v1336, %v1312
        %v1625 = vpack.c.b16 %v1337, %v1313
        %v1626 = vpack.c.b16 %v1338, %v1314
        %v1627 = vpack.c.b16 %v1339, %v1315
        %v1628 = vpack.c.b16 %v1340, %v1316
        %v1629 = vpack.c.b16 %v1341, %v1317
        %v1630 = vpack.c.b16 %v1342, %v1318
        %v1631 = vpack.c.b16 %v1343, %v1319
        %v1632 = vpack.c.b16 %v1344, %v1320
        %v1633 = vpack.c.b16 %v1345, %v1321
        %v1634 = vpack.c.b16 %v1346, %v1322
        %v1635 = vpack.c.b16 %v1347, %v1323
        %v1636 = vpack.c.b16 %v1348, %v1324
        %v1637 = vpack.c.b16 %v1349, %v1325
        %v1638 = vpack.c.b16 %v1350, %v1326
        %v1639 = vpack.c.b16 %v1375, %v1351
        %v1640 = vpack.c.b16 %v1376, %v1352
        %v1641 = vpack.c.b16 %v1377, %v1353
        %v1642 = vpack.c.b16 %v1378, %v1354
        %v1643 = vpack.c.b16 %v1379, %v1355
        %v1644 = vpack.c.b16 %v1380, %v1356
        %v1645 = vpack.c.b16 %v1381, %v1357
        %v1646 = vpack.c.b16 %v1382, %v1358
        %v1647 = vpack.c.b16 %v1383, %v1359
        %v1648 = vpack.c.b16 %v1384, %v1360
        %v1649 = vpack.c.b16 %v1385, %v1361
        %v1650 = vpack.c.b16 %v1386, %v1362
        %v1651 = vpack.c.b16 %v1387, %v1363
        %v1652 = vpack.c.b16 %v1388, %v1364
        %v1653 = vpack.c.b16 %v1389, %v1365
        %v1654 = vpack.c.b16 %v1390, %v1366
        %v1655 = vpack.c.b16 %v1391, %v1367
        %v1656 = vpack.c.b16 %v1392, %v1368
        %v1657 = vpack.c.b16 %v1393, %v1369
        %v1658 = vpack.c.b16 %v1394, %v1370
        %v1659 = vpack.c.b16 %v1395, %v1371
        %v1660 = vpack.c.b16 %v1396, %v1372
        %v1661 = vpack.c.b16 %v1397, %v1373
        %v1662 = vpack.c.b16 %v1398, %v1374
        %v1663 = vpack.c.b16 %v1423, %v1399
        %v1664 = vpack.c.b16 %v1424, %v1400
        %v1665 = vpack.c.b16 %v1425, %v1401
        %v1666 = vpack.c.b16 %v1426, %v1402
        %v1667 = vpack.c.b16 %v1427, %v1403
        %v1668 = vpack.c.b16 %v1428, %v1404
        %v1669 = vpack.c.b16 %v1429, %v1405
        %v1670 = vpack.c.b16 %v1430, %v1406
        %v1671 = vpack.c.b16 %v1431, %v1407
        %v1672 = vpack.c.b16 %v1432, %v1408
        %v1673 = vpack.c.b16 %v1433, %v1409
        %v1674 = vpack.c.b16 %v1434, %v1410
        %v1675 = vpack.c.b16 %v1435, %v1411
        %v1676 = vpack.c.b16 %v1436, %v1412
        %v1677 = vpack.c.b16 %v1437, %v1413
        %v1678 = vpack.c.b16 %v1438, %v1414
        %v1679 = vpack.c.b16 %v1439, %v1415
        %v1680 = vpack.c.b16 %v1440, %v1416
        %v1681 = vpack.c.b16 %v1441, %v1417
        %v1682 = vpack.c.b16 %v1442, %v1418
        %v1683 = vpack.c.b16 %v1443, %v1419
        %v1684 = vpack.c.b16 %v1444, %v1420
        %v1685 = vpack.c.b16 %v1445, %v1421
        %v1686 = vpack.c.b16 %v1446, %v1422
        %v1687 = vpack.c.b16 %v1471, %v1447
        %v1688 = vpack.c.b16 %v1472, %v1448
        %v1689 = vpack.c.b16 %v1473, %v1449
        %v1690 = vpack.c.b16 %v1474, %v1450
        %v1691 = vpack.c.b16 %v1475, %v1451
        %v1692 = vpack.c.b16 %v1476, %v1452
        %v1693 = vpack.c.b16 %v1477, %v1453
        %v1694 = vpack.c.b16 %v1478, %v1454
        %v1695 = vpack.c.b16 %v1479, %v1455
        %v1696 = vpack.c.b16 %v1480, %v1456
        %v1697 = vpack.c.b16 %v1481, %v1457
        %v1698 = vpack.c.b16 %v1482, %v1458
        %v1699 = vpack.c.b16 %v1483, %v1459
        %v1700 = vpack.c.b16 %v1484, %v1460
        %v1701 = vpack.c.b16 %v1485, %v1461
        %v1702 = vpack.c.b16 %v1486, %v1462
        %v1703 = vpack.c.b16 %v1487, %v1463
        %v1704 = vpack.c.b16 %v1488, %v1464
        %v1705 = vpack.c.b16 %v1489, %v1465
        %v1706 = vpack.c.b16 %v1490, %v1466
        %v1707 = vpack.c.b16 %v1491, %v1467
        %v1708 = vpack.c.b16 %v1492, %v1468
        %v1709 = vpack.c.b16 %v1493, %v1469
        %v1710 = vpack.c.b16 %v1494, %v1470
        %v1711 = vpack.c.b16 %v1519, %v1495
        %v1712 = vpack.c.b16 %v1520, %v1496
        %v1713 = vpack.c.b16 %v1521, %v1497
        %v1714 = vpack.c.b16 %v1522, %v1498
        %v1715 = vpack.c.b16 %v1523, %v1499
        %v1716 = vpack.c.b16 %v1524, %v1500
        %v1717 = vpack.c.b16 %v1525, %v1501
        %v1718 = vpack.c.b16 %v1526, %v1502
        %v1719 = vpack.c.b16 %v1527, %v1503
        %v1720 = vpack.c.b16 %v1528, %v1504
        %v1721 = vpack.c.b16 %v1529, %v1505
        %v1722 = vpack.c.b16 %v1530, %v1506
        %v1723 = vpack.c.b16 %v1531, %v1507
        %v1724 = vpack.c.b16 %v1532, %v1508
        %v1725 = vpack.c.b16 %v1533, %v1509
        %v1726 = vpack.c.b16 %v1534, %v1510
        %v1727 = vpack.c.b16 %v1535, %v1511
        %v1728 = vpack.c.b16 %v1536, %v1512
        %v1729 = vpack.c.b16 %v1537, %v1513
        %v1730 = vpack.c.b16 %v1538, %v1514
        %v1731 = vpack.c.b16 %v1539, %v1515
        %v1732 = vpack.c.b16 %v1540, %v1516
        %v1733 = vpack.c.b16 %v1541, %v1517
        %v1734 = vpack.c.b16 %v1542, %v1518
        %v2311 = vunpack.c.l.b16 %v576
        %v2312 = vunpack.c.l.b16 %v577
        %v2313 = vunpack.c.l.b16 %v578
        %v2314 = vunpack.c.l.b16 %v579
        %v2315 = vunpack.c.l.b16 %v580
        %v2316 = vunpack.c.l.b16 %v581
        %v2317 = vunpack.c.l.b16 %v582
        %v2318 = vunpack.c.l.b16 %v583
        %v2319 = vunpack.c.l.b16 %v584
        %v2320 = vunpack.c.l.b16 %v585
        %v2321 = vunpack.c.l.b16 %v586
        %v2322 = vunpack.c.l.b16 %v587
        %v2323 = vunpack.c.l.b16 %v588
        %v2324 = vunpack.c.l.b16 %v589
        %v2325 = vunpack.c.l.b16 %v590
        %v2326 = vunpack.c.l.b16 %v591
        %v2327 = vunpack.c.l.b16 %v592
        %v2328 = vunpack.c.l.b16 %v593
        %v2329 = vunpack.c.l.b16 %v594
        %v2330 = vunpack.c.l.b16 %v595
        %v2331 = vunpack.c.l.b16 %v596
        %v2332 = vunpack.c.l.b16 %v597
        %v2333 = vunpack.c.l.b16 %v598
        %v2334 = vunpack.c.l.b16 %v599
        %v2335 = vunpack.c.l.b16 %v600
        %v2336 = vunpack.c.l.b16 %v601
        %v2337 = vunpack.c.l.b16 %v602
        %v2338 = vunpack.c.l.b16 %v603
        %v2339 = vunpack.c.l.b16 %v604
        %v2340 = vunpack.c.l.b16 %v605
        %v2341 = vunpack.c.l.b16 %v606
        %v2342 = vunpack.c.l.b16 %v607
        %v2343 = vunpack.c.l.b16 %v608
        %v2344 = vunpack.c.l.b16 %v609
        %v2345 = vunpack.c.l.b16 %v610
        %v2346 = vunpack.c.l.b16 %v611
        %v2347 = vunpack.c.l.b16 %v612
        %v2348 = vunpack.c.l.b16 %v613
        %v2349 = vunpack.c.l.b16 %v614
        %v2350 = vunpack.c.l.b16 %v615
        %v2351 = vunpack.c.l.b16 %v616
        %v2352 = vunpack.c.l.b16 %v617
        %v2353 = vunpack.c.l.b16 %v618
        %v2354 = vunpack.c.l.b16 %v619
        %v2355 = vunpack.c.l.b16 %v620
        %v2356 = vunpack.c.l.b16 %v621
        %v2357 = vunpack.c.l.b16 %v622
        %v2358 = vunpack.c.l.b16 %v623
        %v2359 = vunpack.c.l.b16 %v624
        %v2360 = vunpack.c.l.b16 %v625
        %v2361 = vunpack.c.l.b16 %v626
        %v2362 = vunpack.c.l.b16 %v627
        %v2363 = vunpack.c.l.b16 %v628
        %v2364 = vunpack.c.l.b16 %v629
        %v2365 = vunpack.c.l.b16 %v630
        %v2366 = vunpack.c.l.b16 %v631
        %v2367 = vunpack.c.l.b16 %v632
        %v2368 = vunpack.c.l.b16 %v633
        %v2369 = vunpack.c.l.b16 %v634
        %v2370 = vunpack.c.l.b16 %v635
        %v2371 = vunpack.c.l.b16 %v636
        %v2372 = vunpack.c.l.b16 %v637
        %v2373 = vunpack.c.l.b16 %v638
        %v2374 = vunpack.c.l.b16 %v639
        %v2375 = vunpack.c.l.b16 %v640
        %v2376 = vunpack.c.l.b16 %v641
        %v2377 = vunpack.c.l.b16 %v642
        %v2378 = vunpack.c.l.b16 %v643
        %v2379 = vunpack.c.l.b16 %v644
        %v2380 = vunpack.c.l.b16 %v645
        %v2381 = vunpack.c.l.b16 %v646
        %v2382 = vunpack.c.l.b16 %v647
        %v2383 = vunpack.c.l.b16 %v648
        %v2384 = vunpack.c.l.b16 %v649
        %v2385 = vunpack.c.l.b16 %v650
        %v2386 = vunpack.c.l.b16 %v651
        %v2387 = vunpack.c.l.b16 %v652
        %v2388 = vunpack.c.l.b16 %v653
        %v2389 = vunpack.c.l.b16 %v654
        %v2390 = vunpack.c.l.b16 %v655
        %v2391 = vunpack.c.l.b16 %v656
        %v2392 = vunpack.c.l.b16 %v657
        %v2393 = vunpack.c.l.b16 %v658
        %v2394 = vunpack.c.l.b16 %v659
        %v2395 = vunpack.c.l.b16 %v660
        %v2396 = vunpack.c.l.b16 %v661
        %v2397 = vunpack.c.l.b16 %v662
        %v2398 = vunpack.c.l.b16 %v663
        %v2399 = vunpack.c.l.b16 %v664
        %v2400 = vunpack.c.l.b16 %v665
        %v2401 = vunpack.c.l.b16 %v666
        %v2402 = vunpack.c.l.b16 %v667
        %v2403 = vunpack.c.l.b16 %v668
        %v2404 = vunpack.c.l.b16 %v669
        %v2405 = vunpack.c.l.b16 %v670
        %v2406 = vunpack.c.l.b16 %v671
        %v2407 = vunpack.c.l.b16 %v672
        %v2408 = vunpack.c.l.b16 %v673
        %v2409 = vunpack.c.l.b16 %v674
        %v2410 = vunpack.c.l.b16 %v675
        %v2411 = vunpack.c.l.b16 %v676
        %v2412 = vunpack.c.l.b16 %v677
        %v2413 = vunpack.c.l.b16 %v678
        %v2414 = vunpack.c.l.b16 %v679
        %v2415 = vunpack.c.l.b16 %v680
        %v2416 = vunpack.c.l.b16 %v681
        %v2417 = vunpack.c.l.b16 %v682
        %v2418 = vunpack.c.l.b16 %v683
        %v2419 = vunpack.c.l.b16 %v684
        %v2420 = vunpack.c.l.b16 %v685
        %v2421 = vunpack.c.l.b16 %v686
        %v2422 = vunpack.c.l.b16 %v687
        %v2423 = vunpack.c.l.b16 %v688
        %v2424 = vunpack.c.l.b16 %v689
        %v2425 = vunpack.c.l.b16 %v690
        %v2426 = vunpack.c.l.b16 %v691
        %v2427 = vunpack.c.l.b16 %v692
        %v2428 = vunpack.c.l.b16 %v693
        %v2429 = vunpack.c.l.b16 %v694
        %v2430 = vunpack.c.l.b16 %v695
        %v2431 = vunpack.c.l.b16 %v696
        %v2432 = vunpack.c.l.b16 %v697
        %v2433 = vunpack.c.l.b16 %v698
        %v2434 = vunpack.c.l.b16 %v699
        %v2435 = vunpack.c.l.b16 %v700
        %v2436 = vunpack.c.l.b16 %v701
        %v2437 = vunpack.c.l.b16 %v702
        %v2438 = vunpack.c.l.b16 %v703
        %v2439 = vunpack.c.l.b16 %v704
        %v2440 = vunpack.c.l.b16 %v705
        %v2441 = vunpack.c.l.b16 %v706
        %v2442 = vunpack.c.l.b16 %v707
        %v2443 = vunpack.c.l.b16 %v708
        %v2444 = vunpack.c.l.b16 %v709
        %v2445 = vunpack.c.l.b16 %v710
        %v2446 = vunpack.c.l.b16 %v711
        %v2447 = vunpack.c.l.b16 %v712
        %v2448 = vunpack.c.l.b16 %v713
        %v2449 = vunpack.c.l.b16 %v714
        %v2450 = vunpack.c.l.b16 %v715
        %v2451 = vunpack.c.l.b16 %v716
        %v2452 = vunpack.c.l.b16 %v717
        %v2453 = vunpack.c.l.b16 %v718
        %v2454 = vunpack.c.l.b16 %v719
        %v2455 = vunpack.c.l.b16 %v720
        %v2456 = vunpack.c.l.b16 %v721
        %v2457 = vunpack.c.l.b16 %v722
        %v2458 = vunpack.c.l.b16 %v723
        %v2459 = vunpack.c.l.b16 %v724
        %v2460 = vunpack.c.l.b16 %v725
        %v2461 = vunpack.c.l.b16 %v726
        %v2462 = vunpack.c.l.b16 %v727
        %v2463 = vunpack.c.l.b16 %v728
        %v2464 = vunpack.c.l.b16 %v729
        %v2465 = vunpack.c.l.b16 %v730
        %v2466 = vunpack.c.l.b16 %v731
        %v2467 = vunpack.c.l.b16 %v732
        %v2468 = vunpack.c.l.b16 %v733
        %v2469 = vunpack.c.l.b16 %v734
        %v2470 = vunpack.c.l.b16 %v735
        %v2471 = vunpack.c.l.b16 %v736
        %v2472 = vunpack.c.l.b16 %v737
        %v2473 = vunpack.c.l.b16 %v738
        %v2474 = vunpack.c.l.b16 %v739
        %v2475 = vunpack.c.l.b16 %v740
        %v2476 = vunpack.c.l.b16 %v741
        %v2477 = vunpack.c.l.b16 %v742
        %v2478 = vunpack.c.l.b16 %v743
        %v2479 = vunpack.c.l.b16 %v744
        %v2480 = vunpack.c.l.b16 %v745
        %v2481 = vunpack.c.l.b16 %v746
        %v2482 = vunpack.c.l.b16 %v747
        %v2483 = vunpack.c.l.b16 %v748
        %v2484 = vunpack.c.l.b16 %v749
        %v2485 = vunpack.c.l.b16 %v750
        %v2486 = vunpack.c.l.b16 %v751
        %v2487 = vunpack.c.l.b16 %v752
        %v2488 = vunpack.c.l.b16 %v753
        %v2489 = vunpack.c.l.b16 %v754
        %v2490 = vunpack.c.l.b16 %v755
        %v2491 = vunpack.c.l.b16 %v756
        %v2492 = vunpack.c.l.b16 %v757
        %v2493 = vunpack.c.l.b16 %v758
        %v2494 = vunpack.c.l.b16 %v759
        %v2495 = vunpack.c.l.b16 %v760
        %v2496 = vunpack.c.l.b16 %v761
        %v2497 = vunpack.c.l.b16 %v762
        %v2498 = vunpack.c.l.b16 %v763
        %v2499 = vunpack.c.l.b16 %v764
        %v2500 = vunpack.c.l.b16 %v765
        %v2501 = vunpack.c.l.b16 %v766
        %v2502 = vunpack.c.l.b16 %v767
        %v2503 = vunpack.c.l.b16 %v768
        %v2504 = vunpack.c.l.b16 %v769
        %v2505 = vunpack.c.l.b16 %v770
        %v2506 = vunpack.c.l.b16 %v771
        %v2507 = vunpack.c.l.b16 %v772
        %v2508 = vunpack.c.l.b16 %v773
        %v2509 = vunpack.c.l.b16 %v774
        %v2510 = vunpack.c.l.b16 %v775
        %v2511 = vunpack.c.l.b16 %v776
        %v2512 = vunpack.c.l.b16 %v777
        %v2513 = vunpack.c.l.b16 %v778
        %v2514 = vunpack.c.l.b16 %v779
        %v2515 = vunpack.c.l.b16 %v780
        %v2516 = vunpack.c.l.b16 %v781
        %v2517 = vunpack.c.l.b16 %v782
        %v2518 = vunpack.c.l.b16 %v783
        %v2519 = vunpack.c.l.b16 %v784
        %v2520 = vunpack.c.l.b16 %v785
        %v2521 = vunpack.c.l.b16 %v786
        %v2522 = vunpack.c.l.b16 %v787
        %v2523 = vunpack.c.l.b16 %v788
        %v2524 = vunpack.c.l.b16 %v789
        %v2525 = vunpack.c.l.b16 %v790
        %v2526 = vunpack.c.l.b16 %v791
        %v2527 = vunpack.c.l.b16 %v792
        %v2528 = vunpack.c.l.b16 %v793
        %v2529 = vunpack.c.l.b16 %v794
        %v2530 = vunpack.c.l.b16 %v795
        %v2531 = vunpack.c.l.b16 %v796
        %v2532 = vunpack.c.l.b16 %v797
        %v2533 = vunpack.c.l.b16 %v798
        %v2534 = vunpack.c.l.b16 %v799
        %v2535 = vunpack.c.l.b16 %v800
        %v2536 = vunpack.c.l.b16 %v801
        %v2537 = vunpack.c.l.b16 %v802
        %v2538 = vunpack.c.l.b16 %v803
        %v2539 = vunpack.c.l.b16 %v804
        %v2540 = vunpack.c.l.b16 %v805
        %v2541 = vunpack.c.l.b16 %v806
        %v2542 = vunpack.c.l.b16 %v807
        %v2543 = vunpack.c.l.b16 %v808
        %v2544 = vunpack.c.l.b16 %v809
        %v2545 = vunpack.c.l.b16 %v810
        %v2546 = vunpack.c.l.b16 %v811
        %v2547 = vunpack.c.l.b16 %v812
        %v2548 = vunpack.c.l.b16 %v813
        %v2549 = vunpack.c.l.b16 %v814
        %v2550 = vunpack.c.l.b16 %v815
        %v2551 = vunpack.c.l.b16 %v816
        %v2552 = vunpack.c.l.b16 %v817
        %v2553 = vunpack.c.l.b16 %v818
        %v2554 = vunpack.c.l.b16 %v819
        %v2555 = vunpack.c.l.b16 %v820
        %v2556 = vunpack.c.l.b16 %v821
        %v2557 = vunpack.c.l.b16 %v822
        %v2558 = vunpack.c.l.b16 %v823
        %v2559 = vunpack.c.l.b16 %v824
        %v2560 = vunpack.c.l.b16 %v825
        %v2561 = vunpack.c.l.b16 %v826
        %v2562 = vunpack.c.l.b16 %v827
        %v2563 = vunpack.c.l.b16 %v828
        %v2564 = vunpack.c.l.b16 %v829
        %v2565 = vunpack.c.l.b16 %v830
        %v2566 = vunpack.c.l.b16 %v831
        %v2567 = vunpack.c.l.b16 %v832
        %v2568 = vunpack.c.l.b16 %v833
        %v2569 = vunpack.c.l.b16 %v834
        %v2570 = vunpack.c.l.b16 %v835
        %v2571 = vunpack.c.l.b16 %v836
        %v2572 = vunpack.c.l.b16 %v837
        %v2573 = vunpack.c.l.b16 %v838
        %v2574 = vunpack.c.l.b16 %v839
        %v2575 = vunpack.c.l.b16 %v840
        %v2576 = vunpack.c.l.b16 %v841
        %v2577 = vunpack.c.l.b16 %v842
        %v2578 = vunpack.c.l.b16 %v843
        %v2579 = vunpack.c.l.b16 %v844
        %v2580 = vunpack.c.l.b16 %v845
        %v2581 = vunpack.c.l.b16 %v846
        %v2582 = vunpack.c.l.b16 %v847
        %v2583 = vunpack.c.l.b16 %v848
        %v2584 = vunpack.c.l.b16 %v849
        %v2585 = vunpack.c.l.b16 %v850
        %v2586 = vunpack.c.l.b16 %v851
        %v2587 = vunpack.c.l.b16 %v852
        %v2588 = vunpack.c.l.b16 %v853
        %v2589 = vunpack.c.l.b16 %v854
        %v2590 = vunpack.c.l.b16 %v855
        %v2591 = vunpack.c.l.b16 %v856
        %v2592 = vunpack.c.l.b16 %v857
        %v2593 = vunpack.c.l.b16 %v858
        %v2594 = vunpack.c.l.b16 %v859
        %v2595 = vunpack.c.l.b16 %v860
        %v2596 = vunpack.c.l.b16 %v861
        %v2597 = vunpack.c.l.b16 %v862
        %v2598 = vunpack.c.l.b16 %v863
        %v2599 = vunpack.c.l.b16 %v864
        %v2600 = vunpack.c.l.b16 %v865
        %v2601 = vunpack.c.l.b16 %v866
        %v2602 = vunpack.c.l.b16 %v867
        %v2603 = vunpack.c.l.b16 %v868
        %v2604 = vunpack.c.l.b16 %v869
        %v2605 = vunpack.c.l.b16 %v870
        %v2606 = vunpack.c.l.b16 %v871
        %v2607 = vunpack.c.l.b16 %v872
        %v2608 = vunpack.c.l.b16 %v873
        %v2609 = vunpack.c.l.b16 %v874
        %v2610 = vunpack.c.l.b16 %v875
        %v2611 = vunpack.c.l.b16 %v876
        %v2612 = vunpack.c.l.b16 %v877
        %v2613 = vunpack.c.l.b16 %v878
        %v2614 = vunpack.c.l.b16 %v879
        %v2615 = vunpack.c.l.b16 %v880
        %v2616 = vunpack.c.l.b16 %v881
        %v2617 = vunpack.c.l.b16 %v882
        %v2618 = vunpack.c.l.b16 %v883
        %v2619 = vunpack.c.l.b16 %v884
        %v2620 = vunpack.c.l.b16 %v885
        %v2621 = vunpack.c.l.b16 %v886
        %v2622 = vunpack.c.l.b16 %v887
        %v2623 = vunpack.c.l.b16 %v888
        %v2624 = vunpack.c.l.b16 %v889
        %v2625 = vunpack.c.l.b16 %v890
        %v2626 = vunpack.c.l.b16 %v891
        %v2627 = vunpack.c.l.b16 %v892
        %v2628 = vunpack.c.l.b16 %v893
        %v2629 = vunpack.c.l.b16 %v894
        %v2630 = vunpack.c.l.b16 %v895
        %v2631 = vunpack.c.l.b16 %v896
        %v2632 = vunpack.c.l.b16 %v897
        %v2633 = vunpack.c.l.b16 %v898
        %v2634 = vunpack.c.l.b16 %v899
        %v2635 = vunpack.c.l.b16 %v900
        %v2636 = vunpack.c.l.b16 %v901
        %v2637 = vunpack.c.l.b16 %v902
        %v2638 = vunpack.c.l.b16 %v903
        %v2639 = vunpack.c.l.b16 %v904
        %v2640 = vunpack.c.l.b16 %v905
        %v2641 = vunpack.c.l.b16 %v906
        %v2642 = vunpack.c.l.b16 %v907
        %v2643 = vunpack.c.l.b16 %v908
        %v2644 = vunpack.c.l.b16 %v909
        %v2645 = vunpack.c.l.b16 %v910
        %v2646 = vunpack.c.l.b16 %v911
        %v2647 = vunpack.c.l.b16 %v912
        %v2648 = vunpack.c.l.b16 %v913
        %v2649 = vunpack.c.l.b16 %v914
        %v2650 = vunpack.c.l.b16 %v915
        %v2651 = vunpack.c.l.b16 %v916
        %v2652 = vunpack.c.l.b16 %v917
        %v2653 = vunpack.c.l.b16 %v918
        %v2654 = vunpack.c.l.b16 %v919
        %v2655 = vunpack.c.l.b16 %v920
        %v2656 = vunpack.c.l.b16 %v921
        %v2657 = vunpack.c.l.b16 %v922
        %v2658 = vunpack.c.l.b16 %v923
        %v2659 = vunpack.c.l.b16 %v924
        %v2660 = vunpack.c.l.b16 %v925
        %v2661 = vunpack.c.l.b16 %v926
        %v2662 = vunpack.c.l.b16 %v927
        %v2663 = vunpack.c.l.b16 %v928
        %v2664 = vunpack.c.l.b16 %v929
        %v2665 = vunpack.c.l.b16 %v930
        %v2666 = vunpack.c.l.b16 %v931
        %v2667 = vunpack.c.l.b16 %v932
        %v2668 = vunpack.c.l.b16 %v933
        %v2669 = vunpack.c.l.b16 %v934
        %v2670 = vunpack.c.l.b16 %v935
        %v2671 = vunpack.c.l.b16 %v936
        %v2672 = vunpack.c.l.b16 %v937
        %v2673 = vunpack.c.l.b16 %v938
        %v2674 = vunpack.c.l.b16 %v939
        %v2675 = vunpack.c.l.b16 %v940
        %v2676 = vunpack.c.l.b16 %v941
        %v2677 = vunpack.c.l.b16 %v942
        %v2678 = vunpack.c.l.b16 %v943
        %v2679 = vunpack.c.l.b16 %v944
        %v2680 = vunpack.c.l.b16 %v945
        %v2681 = vunpack.c.l.b16 %v946
        %v2682 = vunpack.c.l.b16 %v947
        %v2683 = vunpack.c.l.b16 %v948
        %v2684 = vunpack.c.l.b16 %v949
        %v2685 = vunpack.c.l.b16 %v950
        %v2686 = vunpack.c.l.b16 %v951
        %v2687 = vunpack.c.l.b16 %v952
        %v2688 = vunpack.c.l.b16 %v953
        %v2689 = vunpack.c.l.b16 %v954
        %v2690 = vunpack.c.l.b16 %v955
        %v2691 = vunpack.c.l.b16 %v956
        %v2692 = vunpack.c.l.b16 %v957
        %v2693 = vunpack.c.l.b16 %v958
        %v2694 = vunpack.c.l.b16 %v959
        %v2695 = vpack.c.b16 %v2312, %v2311
        %v2696 = vpack.c.b16 %v2314, %v2313
        %v2697 = vpack.c.b16 %v2316, %v2315
        %v2698 = vpack.c.b16 %v2318, %v2317
        %v2699 = vpack.c.b16 %v2320, %v2319
        %v2700 = vpack.c.b16 %v2322, %v2321
        %v2701 = vpack.c.b16 %v2324, %v2323
        %v2702 = vpack.c.b16 %v2326, %v2325
        %v2703 = vpack.c.b16 %v2328, %v2327
        %v2704 = vpack.c.b16 %v2330, %v2329
        %v2705 = vpack.c.b16 %v2332, %v2331
        %v2706 = vpack.c.b16 %v2334, %v2333
        %v2707 = vpack.c.b16 %v2336, %v2335
        %v2708 = vpack.c.b16 %v2338, %v2337
        %v2709 = vpack.c.b16 %v2340, %v2339
        %v2710 = vpack.c.b16 %v2342, %v2341
        %v2711 = vpack.c.b16 %v2344, %v2343
        %v2712 = vpack.c.b16 %v2346, %v2345
        %v2713 = vpack.c.b16 %v2348, %v2347
        %v2714 = vpack.c.b16 %v2350, %v2349
        %v2715 = vpack.c.b16 %v2352, %v2351
        %v2716 = vpack.c.b16 %v2354, %v2353
        %v2717 = vpack.c.b16 %v2356, %v2355
        %v2718 = vpack.c.b16 %v2358, %v2357
        %v2719 = vpack.c.b16 %v2360, %v2359
        %v2720 = vpack.c.b16 %v2362, %v2361
        %v2721 = vpack.c.b16 %v2364, %v2363
        %v2722 = vpack.c.b16 %v2366, %v2365
        %v2723 = vpack.c.b16 %v2368, %v2367
        %v2724 = vpack.c.b16 %v2370, %v2369
        %v2725 = vpack.c.b16 %v2372, %v2371
        %v2726 = vpack.c.b16 %v2374, %v2373
        %v2727 = vpack.c.b16 %v2376, %v2375
        %v2728 = vpack.c.b16 %v2378, %v2377
        %v2729 = vpack.c.b16 %v2380, %v2379
        %v2730 = vpack.c.b16 %v2382, %v2381
        %v2731 = vpack.c.b16 %v2384, %v2383
        %v2732 = vpack.c.b16 %v2386, %v2385
        %v2733 = vpack.c.b16 %v2388, %v2387
        %v2734 = vpack.c.b16 %v2390, %v2389
        %v2735 = vpack.c.b16 %v2392, %v2391
        %v2736 = vpack.c.b16 %v2394, %v2393
        %v2737 = vpack.c.b16 %v2396, %v2395
        %v2738 = vpack.c.b16 %v2398, %v2397
        %v2739 = vpack.c.b16 %v2400, %v2399
        %v2740 = vpack.c.b16 %v2402, %v2401
        %v2741 = vpack.c.b16 %v2404, %v2403
        %v2742 = vpack.c.b16 %v2406, %v2405
        %v2743 = vpack.c.b16 %v2408, %v2407
        %v2744 = vpack.c.b16 %v2410, %v2409
        %v2745 = vpack.c.b16 %v2412, %v2411
        %v2746 = vpack.c.b16 %v2414, %v2413
        %v2747 = vpack.c.b16 %v2416, %v2415
        %v2748 = vpack.c.b16 %v2418, %v2417
        %v2749 = vpack.c.b16 %v2420, %v2419
        %v2750 = vpack.c.b16 %v2422, %v2421
        %v2751 = vpack.c.b16 %v2424, %v2423
        %v2752 = vpack.c.b16 %v2426, %v2425
        %v2753 = vpack.c.b16 %v2428, %v2427
        %v2754 = vpack.c.b16 %v2430, %v2429
        %v2755 = vpack.c.b16 %v2432, %v2431
        %v2756 = vpack.c.b16 %v2434, %v2433
        %v2757 = vpack.c.b16 %v2436, %v2435
        %v2758 = vpack.c.b16 %v2438, %v2437
        %v2759 = vpack.c.b16 %v2440, %v2439
        %v2760 = vpack.c.b16 %v2442, %v2441
        %v2761 = vpack.c.b16 %v2444, %v2443
        %v2762 = vpack.c.b16 %v2446, %v2445
        %v2763 = vpack.c.b16 %v2448, %v2447
        %v2764 = vpack.c.b16 %v2450, %v2449
        %v2765 = vpack.c.b16 %v2452, %v2451
        %v2766 = vpack.c.b16 %v2454, %v2453
        %v2767 = vpack.c.b16 %v2456, %v2455
        %v2768 = vpack.c.b16 %v2458, %v2457
        %v2769 = vpack.c.b16 %v2460, %v2459
        %v2770 = vpack.c.b16 %v2462, %v2461
        %v2771 = vpack.c.b16 %v2464, %v2463
        %v2772 = vpack.c.b16 %v2466, %v2465
        %v2773 = vpack.c.b16 %v2468, %v2467
        %v2774 = vpack.c.b16 %v2470, %v2469
        %v2775 = vpack.c.b16 %v2472, %v2471
        %v2776 = vpack.c.b16 %v2474, %v2473
        %v2777 = vpack.c.b16 %v2476, %v2475
        %v2778 = vpack.c.b16 %v2478, %v2477
        %v2779 = vpack.c.b16 %v2480, %v2479
        %v2780 = vpack.c.b16 %v2482, %v2481
        %v2781 = vpack.c.b16 %v2484, %v2483
        %v2782 = vpack.c.b16 %v2486, %v2485
        %v2783 = vpack.c.b16 %v2488, %v2487
        %v2784 = vpack.c.b16 %v2490, %v2489
        %v2785 = vpack.c.b16 %v2492, %v2491
        %v2786 = vpack.c.b16 %v2494, %v2493
        %v2787 = vpack.c.b16 %v2496, %v2495
        %v2788 = vpack.c.b16 %v2498, %v2497
        %v2789 = vpack.c.b16 %v2500, %v2499
        %v2790 = vpack.c.b16 %v2502, %v2501
        %v2791 = vpack.c.b16 %v2504, %v2503
        %v2792 = vpack.c.b16 %v2506, %v2505
        %v2793 = vpack.c.b16 %v2508, %v2507
        %v2794 = vpack.c.b16 %v2510, %v2509
        %v2795 = vpack.c.b16 %v2512, %v2511
        %v2796 = vpack.c.b16 %v2514, %v2513
        %v2797 = vpack.c.b16 %v2516, %v2515
        %v2798 = vpack.c.b16 %v2518, %v2517
        %v2799 = vpack.c.b16 %v2520, %v2519
        %v2800 = vpack.c.b16 %v2522, %v2521
        %v2801 = vpack.c.b16 %v2524, %v2523
        %v2802 = vpack.c.b16 %v2526, %v2525
        %v2803 = vpack.c.b16 %v2528, %v2527
        %v2804 = vpack.c.b16 %v2530, %v2529
        %v2805 = vpack.c.b16 %v2532, %v2531
        %v2806 = vpack.c.b16 %v2534, %v2533
        %v2807 = vpack.c.b16 %v2536, %v2535
        %v2808 = vpack.c.b16 %v2538, %v2537
        %v2809 = vpack.c.b16 %v2540, %v2539
        %v2810 = vpack.c.b16 %v2542, %v2541
        %v2811 = vpack.c.b16 %v2544, %v2543
        %v2812 = vpack.c.b16 %v2546, %v2545
        %v2813 = vpack.c.b16 %v2548, %v2547
        %v2814 = vpack.c.b16 %v2550, %v2549
        %v2815 = vpack.c.b16 %v2552, %v2551
        %v2816 = vpack.c.b16 %v2554, %v2553
        %v2817 = vpack.c.b16 %v2556, %v2555
        %v2818 = vpack.c.b16 %v2558, %v2557
        %v2819 = vpack.c.b16 %v2560, %v2559
        %v2820 = vpack.c.b16 %v2562, %v2561
        %v2821 = vpack.c.b16 %v2564, %v2563
        %v2822 = vpack.c.b16 %v2566, %v2565
        %v2823 = vpack.c.b16 %v2568, %v2567
        %v2824 = vpack.c.b16 %v2570, %v2569
        %v2825 = vpack.c.b16 %v2572, %v2571
        %v2826 = vpack.c.b16 %v2574, %v2573
        %v2827 = vpack.c.b16 %v2576, %v2575
        %v2828 = vpack.c.b16 %v2578, %v2577
        %v2829 = vpack.c.b16 %v2580, %v2579
        %v2830 = vpack.c.b16 %v2582, %v2581
        %v2831 = vpack.c.b16 %v2584, %v2583
        %v2832 = vpack.c.b16 %v2586, %v2585
        %v2833 = vpack.c.b16 %v2588, %v2587
        %v2834 = vpack.c.b16 %v2590, %v2589
        %v2835 = vpack.c.b16 %v2592, %v2591
        %v2836 = vpack.c.b16 %v2594, %v2593
        %v2837 = vpack.c.b16 %v2596, %v2595
        %v2838 = vpack.c.b16 %v2598, %v2597
        %v2839 = vpack.c.b16 %v2600, %v2599
        %v2840 = vpack.c.b16 %v2602, %v2601
        %v2841 = vpack.c.b16 %v2604, %v2603
        %v2842 = vpack.c.b16 %v2606, %v2605
        %v2843 = vpack.c.b16 %v2608, %v2607
        %v2844 = vpack.c.b16 %v2610, %v2609
        %v2845 = vpack.c.b16 %v2612, %v2611
        %v2846 = vpack.c.b16 %v2614, %v2613
        %v2847 = vpack.c.b16 %v2616, %v2615
        %v2848 = vpack.c.b16 %v2618, %v2617
        %v2849 = vpack.c.b16 %v2620, %v2619
        %v2850 = vpack.c.b16 %v2622, %v2621
        %v2851 = vpack.c.b16 %v2624, %v2623
        %v2852 = vpack.c.b16 %v2626, %v2625
        %v2853 = vpack.c.b16 %v2628, %v2627
        %v2854 = vpack.c.b16 %v2630, %v2629
        %v2855 = vpack.c.b16 %v2632, %v2631
        %v2856 = vpack.c.b16 %v2634, %v2633
        %v2857 = vpack.c.b16 %v2636, %v2635
        %v2858 = vpack.c.b16 %v2638, %v2637
        %v2859 = vpack.c.b16 %v2640, %v2639
        %v2860 = vpack.c.b16 %v2642, %v2641
        %v2861 = vpack.c.b16 %v2644, %v2643
        %v2862 = vpack.c.b16 %v2646, %v2645
        %v2863 = vpack.c.b16 %v2648, %v2647
        %v2864 = vpack.c.b16 %v2650, %v2649
        %v2865 = vpack.c.b16 %v2652, %v2651
        %v2866 = vpack.c.b16 %v2654, %v2653
        %v2867 = vpack.c.b16 %v2656, %v2655
        %v2868 = vpack.c.b16 %v2658, %v2657
        %v2869 = vpack.c.b16 %v2660, %v2659
        %v2870 = vpack.c.b16 %v2662, %v2661
        %v2871 = vpack.c.b16 %v2664, %v2663
        %v2872 = vpack.c.b16 %v2666, %v2665
        %v2873 = vpack.c.b16 %v2668, %v2667
        %v2874 = vpack.c.b16 %v2670, %v2669
        %v2875 = vpack.c.b16 %v2672, %v2671
        %v2876 = vpack.c.b16 %v2674, %v2673
        %v2877 = vpack.c.b16 %v2676, %v2675
        %v2878 = vpack.c.b16 %v2678, %v2677
        %v2879 = vpack.c.b16 %v2680, %v2679
        %v2880 = vpack.c.b16 %v2682, %v2681
        %v2881 = vpack.c.b16 %v2684, %v2683
        %v2882 = vpack.c.b16 %v2686, %v2685
        %v2883 = vpack.c.b16 %v2688, %v2687
        %v2884 = vpack.c.b16 %v2690, %v2689
        %v2885 = vpack.c.b16 %v2692, %v2691
        %v2886 = vpack.c.b16 %v2694, %v2693
        %3079 = vmatprep.subr.bf16.mxu0 0
        %3080 = vmatpush1.bf16.msra.mxu0 %v2702
        %3081 = vmatprep.subr.bf16.mxu0 0
        %3082 = vmatpush1.bf16.msra.mxu0 %v2701
        %3083 = vmatprep.subr.bf16.mxu0 0
        %3084 = vmatpush1.bf16.msra.mxu0 %v2700
        %3085 = vmatprep.subr.bf16.mxu0 0
        %3086 = vmatpush1.bf16.msra.mxu0 %v2699
        %3087 = vmatprep.subr.bf16.mxu0 0
        %3088 = vmatpush1.bf16.msra.mxu0 %v2698
        %3089 = vmatprep.subr.bf16.mxu0 0
        %3090 = vmatpush1.bf16.msra.mxu0 %v2697
        %3091 = vmatprep.subr.bf16.mxu0 0
        %3092 = vmatpush1.bf16.msra.mxu0 %v2696
        %3093 = vmatprep.subr.bf16.mxu0 0
        %3094 = vmatpush1.bf16.msra.mxu0 %v2695
        %3095 = vmatprep.subr.bf16.mxu0 0
        %3096 = vmatpush2.bf16.msra.mxu0 %v2710
        %3097 = vmatprep.subr.bf16.mxu0 0
        %3098 = vmatpush2.bf16.msra.mxu0 %v2709
        %3099 = vmatprep.subr.bf16.mxu0 0
        %3100 = vmatpush2.bf16.msra.mxu0 %v2708
        %3101 = vmatprep.subr.bf16.mxu0 0
        %3102 = vmatpush2.bf16.msra.mxu0 %v2707
        %3103 = vmatprep.subr.bf16.mxu0 0
        %3104 = vmatpush2.bf16.msra.mxu0 %v2706
        %3105 = vmatprep.subr.bf16.mxu0 0
        %3106 = vmatpush2.bf16.msra.mxu0 %v2705
        %3107 = vmatprep.subr.bf16.mxu0 0
        %3108 = vmatpush2.bf16.msra.mxu0 %v2704
        %3109 = vmatprep.subr.bf16.mxu0 0
        %3110 = vmatpush2.bf16.msra.mxu0 %v2703
        %3111 = vmatprep.mubr.bf16.mxu0 %v1544
        %3112 = vmatmul.mubr.bf16.gmra.mxu0 %v1543
        %v3113 = vpop.f32.mrf.mxu0
        %v3114 = vadd.f32 %v965, %v3113
        %v3115 = vpop.f32.mrf.mxu0
        %v3116 = vpop.f32.mrf.mxu0
        %v3117 = vadd.f32 %v965, %v3116
        %v3118 = vpop.f32.mrf.mxu0
        %3119 = vmatprep.mubr.bf16.mxu0 %v1568
        %3120 = vmatmul.mubr.bf16.gmra.mxu0 %v1567
        %v3121 = vpop.f32.mrf.mxu0
        %v3122 = vadd.f32 %v965, %v3121
        %v3123 = vpop.f32.mrf.mxu0
        %v3124 = vpop.f32.mrf.mxu0
        %v3125 = vadd.f32 %v965, %v3124
        %v3126 = vpop.f32.mrf.mxu0
        %3127 = vmatprep.mubr.bf16.mxu0 %v1592
        %3128 = vmatmul.mubr.bf16.gmra.mxu0 %v1591
        %v3129 = vpop.f32.mrf.mxu0
        %v3130 = vadd.f32 %v965, %v3129
        %v3131 = vpop.f32.mrf.mxu0
        %v3132 = vpop.f32.mrf.mxu0
        %v3133 = vadd.f32 %v965, %v3132
        %v3134 = vpop.f32.mrf.mxu0
        %3135 = vmatprep.mubr.bf16.mxu0 %v1616
        %3136 = vmatmul.mubr.bf16.gmra.mxu0 %v1615
        %v3137 = vpop.f32.mrf.mxu0
        %v3138 = vadd.f32 %v965, %v3137
        %v3139 = vpop.f32.mrf.mxu0
        %v3140 = vpop.f32.mrf.mxu0
        %v3141 = vadd.f32 %v965, %v3140
        %v3142 = vpop.f32.mrf.mxu0
        %3143 = vmatprep.mubr.bf16.mxu0 %v1640
        %3144 = vmatmul.mubr.bf16.gmra.mxu0 %v1639
        %v3145 = vpop.f32.mrf.mxu0
        %v3146 = vadd.f32 %v965, %v3145
        %v3147 = vpop.f32.mrf.mxu0
        %v3148 = vpop.f32.mrf.mxu0
        %v3149 = vadd.f32 %v965, %v3148
        %v3150 = vpop.f32.mrf.mxu0
        %3151 = vmatprep.mubr.bf16.mxu0 %v1664
        %3152 = vmatmul.mubr.bf16.gmra.mxu0 %v1663
        %v3153 = vpop.f32.mrf.mxu0
        %v3154 = vadd.f32 %v965, %v3153
        %v3155 = vpop.f32.mrf.mxu0
        %v3156 = vpop.f32.mrf.mxu0
        %v3157 = vadd.f32 %v965, %v3156
        %v3158 = vpop.f32.mrf.mxu0
        %3159 = vmatprep.mubr.bf16.mxu0 %v1688
        %3160 = vmatmul.mubr.bf16.gmra.mxu0 %v1687
        %v3161 = vpop.f32.mrf.mxu0
        %v3162 = vadd.f32 %v965, %v3161
        %v3163 = vpop.f32.mrf.mxu0
        %v3164 = vpop.f32.mrf.mxu0
        %v3165 = vadd.f32 %v965, %v3164
        %v3166 = vpop.f32.mrf.mxu0
        %3167 = vmatprep.mubr.bf16.mxu0 %v1712
        %3168 = vmatmul.mubr.bf16.gmra.mxu0 %v1711
        %v3169 = vpop.f32.mrf.mxu0
        %v3170 = vadd.f32 %v965, %v3169
        %v3171 = vpop.f32.mrf.mxu0
        %v3172 = vpop.f32.mrf.mxu0
        %v3173 = vadd.f32 %v965, %v3172
        %v3174 = vpop.f32.mrf.mxu0
        %3175 = vdwg.mxu0
        %3176 = vmatprep.subr.bf16.mxu0 0
        %3177 = vmatpush1.bf16.msra.mxu0 %v2718
        %3178 = vmatprep.subr.bf16.mxu0 0
        %3179 = vmatpush1.bf16.msra.mxu0 %v2717
        %3180 = vmatprep.subr.bf16.mxu0 0
        %3181 = vmatpush1.bf16.msra.mxu0 %v2716
        %3182 = vmatprep.subr.bf16.mxu0 0
        %3183 = vmatpush1.bf16.msra.mxu0 %v2715
        %3184 = vmatprep.subr.bf16.mxu0 0
        %3185 = vmatpush1.bf16.msra.mxu0 %v2714
        %3186 = vmatprep.subr.bf16.mxu0 0
        %3187 = vmatpush1.bf16.msra.mxu0 %v2713
        %3188 = vmatprep.subr.bf16.mxu0 0
        %3189 = vmatpush1.bf16.msra.mxu0 %v2712
        %3190 = vmatprep.subr.bf16.mxu0 0
        %3191 = vmatpush1.bf16.msra.mxu0 %v2711
        %3192 = vmatprep.subr.bf16.mxu0 0
        %3193 = vmatpush2.bf16.msra.mxu0 %v2726
        %3194 = vmatprep.subr.bf16.mxu0 0
        %3195 = vmatpush2.bf16.msra.mxu0 %v2725
        %3196 = vmatprep.subr.bf16.mxu0 0
        %3197 = vmatpush2.bf16.msra.mxu0 %v2724
        %3198 = vmatprep.subr.bf16.mxu0 0
        %3199 = vmatpush2.bf16.msra.mxu0 %v2723
        %3200 = vmatprep.subr.bf16.mxu0 0
        %3201 = vmatpush2.bf16.msra.mxu0 %v2722
        %3202 = vmatprep.subr.bf16.mxu0 0
        %3203 = vmatpush2.bf16.msra.mxu0 %v2721
        %3204 = vmatprep.subr.bf16.mxu0 0
        %3205 = vmatpush2.bf16.msra.mxu0 %v2720
        %3206 = vmatprep.subr.bf16.mxu0 0
        %3207 = vmatpush2.bf16.msra.mxu0 %v2719
        %3208 = vmatprep.mubr.bf16.mxu0 %v1546
        %3209 = vmatmul.mubr.bf16.gmra.mxu0 %v1545
        %v3210 = vpop.f32.mrf.mxu0
        %v3211 = vadd.f32 %v3114, %v3210
        %v3212 = vpop.f32.mrf.mxu0
        %v3213 = vpop.f32.mrf.mxu0
        %v3214 = vadd.f32 %v3117, %v3213
        %v3215 = vpop.f32.mrf.mxu0
        %3216 = vmatprep.mubr.bf16.mxu0 %v1570
        %3217 = vmatmul.mubr.bf16.gmra.mxu0 %v1569
        %v3218 = vpop.f32.mrf.mxu0
        %v3219 = vadd.f32 %v3122, %v3218
        %v3220 = vpop.f32.mrf.mxu0
        %v3221 = vpop.f32.mrf.mxu0
        %v3222 = vadd.f32 %v3125, %v3221
        %v3223 = vpop.f32.mrf.mxu0
        %3224 = vmatprep.mubr.bf16.mxu0 %v1594
        %3225 = vmatmul.mubr.bf16.gmra.mxu0 %v1593
        %v3226 = vpop.f32.mrf.mxu0
        %v3227 = vadd.f32 %v3130, %v3226
        %v3228 = vpop.f32.mrf.mxu0
        %v3229 = vpop.f32.mrf.mxu0
        %v3230 = vadd.f32 %v3133, %v3229
        %v3231 = vpop.f32.mrf.mxu0
        %3232 = vmatprep.mubr.bf16.mxu0 %v1618
        %3233 = vmatmul.mubr.bf16.gmra.mxu0 %v1617
        %v3234 = vpop.f32.mrf.mxu0
        %v3235 = vadd.f32 %v3138, %v3234
        %v3236 = vpop.f32.mrf.mxu0
        %v3237 = vpop.f32.mrf.mxu0
        %v3238 = vadd.f32 %v3141, %v3237
        %v3239 = vpop.f32.mrf.mxu0
        %3240 = vmatprep.mubr.bf16.mxu0 %v1642
        %3241 = vmatmul.mubr.bf16.gmra.mxu0 %v1641
        %v3242 = vpop.f32.mrf.mxu0
        %v3243 = vadd.f32 %v3146, %v3242
        %v3244 = vpop.f32.mrf.mxu0
        %v3245 = vpop.f32.mrf.mxu0
        %v3246 = vadd.f32 %v3149, %v3245
        %v3247 = vpop.f32.mrf.mxu0
        %3248 = vmatprep.mubr.bf16.mxu0 %v1666
        %3249 = vmatmul.mubr.bf16.gmra.mxu0 %v1665
        %v3250 = vpop.f32.mrf.mxu0
        %v3251 = vadd.f32 %v3154, %v3250
        %v3252 = vpop.f32.mrf.mxu0
        %v3253 = vpop.f32.mrf.mxu0
        %v3254 = vadd.f32 %v3157, %v3253
        %v3255 = vpop.f32.mrf.mxu0
        %3256 = vmatprep.mubr.bf16.mxu0 %v1690
        %3257 = vmatmul.mubr.bf16.gmra.mxu0 %v1689
        %v3258 = vpop.f32.mrf.mxu0
        %v3259 = vadd.f32 %v3162, %v3258
        %v3260 = vpop.f32.mrf.mxu0
        %v3261 = vpop.f32.mrf.mxu0
        %v3262 = vadd.f32 %v3165, %v3261
        %v3263 = vpop.f32.mrf.mxu0
        %3264 = vmatprep.mubr.bf16.mxu0 %v1714
        %3265 = vmatmul.mubr.bf16.gmra.mxu0 %v1713
        %v3266 = vpop.f32.mrf.mxu0
        %v3267 = vadd.f32 %v3170, %v3266
        %v3268 = vpop.f32.mrf.mxu0
        %v3269 = vpop.f32.mrf.mxu0
        %v3270 = vadd.f32 %v3173, %v3269
        %v3271 = vpop.f32.mrf.mxu0
        %3272 = vdwg.mxu0
        %3273 = vmatprep.subr.bf16.mxu0 0
        %3274 = vmatpush1.bf16.msra.mxu0 %v2734
        %3275 = vmatprep.subr.bf16.mxu0 0
        %3276 = vmatpush1.bf16.msra.mxu0 %v2733
        %3277 = vmatprep.subr.bf16.mxu0 0
        %3278 = vmatpush1.bf16.msra.mxu0 %v2732
        %3279 = vmatprep.subr.bf16.mxu0 0
        %3280 = vmatpush1.bf16.msra.mxu0 %v2731
        %3281 = vmatprep.subr.bf16.mxu0 0
        %3282 = vmatpush1.bf16.msra.mxu0 %v2730
        %3283 = vmatprep.subr.bf16.mxu0 0
        %3284 = vmatpush1.bf16.msra.mxu0 %v2729
        %3285 = vmatprep.subr.bf16.mxu0 0
        %3286 = vmatpush1.bf16.msra.mxu0 %v2728
        %3287 = vmatprep.subr.bf16.mxu0 0
        %3288 = vmatpush1.bf16.msra.mxu0 %v2727
        %3289 = vmatprep.subr.bf16.mxu0 0
        %3290 = vmatpush2.bf16.msra.mxu0 %v2742
        %3291 = vmatprep.subr.bf16.mxu0 0
        %3292 = vmatpush2.bf16.msra.mxu0 %v2741
        %3293 = vmatprep.subr.bf16.mxu0 0
        %3294 = vmatpush2.bf16.msra.mxu0 %v2740
        %3295 = vmatprep.subr.bf16.mxu0 0
        %3296 = vmatpush2.bf16.msra.mxu0 %v2739
        %3297 = vmatprep.subr.bf16.mxu0 0
        %3298 = vmatpush2.bf16.msra.mxu0 %v2738
        %3299 = vmatprep.subr.bf16.mxu0 0
        %3300 = vmatpush2.bf16.msra.mxu0 %v2737
        %3301 = vmatprep.subr.bf16.mxu0 0
        %3302 = vmatpush2.bf16.msra.mxu0 %v2736
        %3303 = vmatprep.subr.bf16.mxu0 0
        %3304 = vmatpush2.bf16.msra.mxu0 %v2735
        %3305 = vmatprep.mubr.bf16.mxu0 %v1548
        %3306 = vmatmul.mubr.bf16.gmra.mxu0 %v1547
        %v3307 = vpop.f32.mrf.mxu0
        %v3308 = vadd.f32 %v3211, %v3307
        %v3309 = vpop.f32.mrf.mxu0
        %v3310 = vpop.f32.mrf.mxu0
        %v3311 = vadd.f32 %v3214, %v3310
        %v3312 = vpop.f32.mrf.mxu0
        %3313 = vmatprep.mubr.bf16.mxu0 %v1572
        %3314 = vmatmul.mubr.bf16.gmra.mxu0 %v1571
        %v3315 = vpop.f32.mrf.mxu0
        %v3316 = vadd.f32 %v3219, %v3315
        %v3317 = vpop.f32.mrf.mxu0
        %v3318 = vpop.f32.mrf.mxu0
        %v3319 = vadd.f32 %v3222, %v3318
        %v3320 = vpop.f32.mrf.mxu0
        %3321 = vmatprep.mubr.bf16.mxu0 %v1596
        %3322 = vmatmul.mubr.bf16.gmra.mxu0 %v1595
        %v3323 = vpop.f32.mrf.mxu0
        %v3324 = vadd.f32 %v3227, %v3323
        %v3325 = vpop.f32.mrf.mxu0
        %v3326 = vpop.f32.mrf.mxu0
        %v3327 = vadd.f32 %v3230, %v3326
        %v3328 = vpop.f32.mrf.mxu0
        %3329 = vmatprep.mubr.bf16.mxu0 %v1620
        %3330 = vmatmul.mubr.bf16.gmra.mxu0 %v1619
        %v3331 = vpop.f32.mrf.mxu0
        %v3332 = vadd.f32 %v3235, %v3331
        %v3333 = vpop.f32.mrf.mxu0
        %v3334 = vpop.f32.mrf.mxu0
        %v3335 = vadd.f32 %v3238, %v3334
        %v3336 = vpop.f32.mrf.mxu0
        %3337 = vmatprep.mubr.bf16.mxu0 %v1644
        %3338 = vmatmul.mubr.bf16.gmra.mxu0 %v1643
        %v3339 = vpop.f32.mrf.mxu0
        %v3340 = vadd.f32 %v3243, %v3339
        %v3341 = vpop.f32.mrf.mxu0
        %v3342 = vpop.f32.mrf.mxu0
        %v3343 = vadd.f32 %v3246, %v3342
        %v3344 = vpop.f32.mrf.mxu0
        %3345 = vmatprep.mubr.bf16.mxu0 %v1668
        %3346 = vmatmul.mubr.bf16.gmra.mxu0 %v1667
        %v3347 = vpop.f32.mrf.mxu0
        %v3348 = vadd.f32 %v3251, %v3347
        %v3349 = vpop.f32.mrf.mxu0
        %v3350 = vpop.f32.mrf.mxu0
        %v3351 = vadd.f32 %v3254, %v3350
        %v3352 = vpop.f32.mrf.mxu0
        %3353 = vmatprep.mubr.bf16.mxu0 %v1692
        %3354 = vmatmul.mubr.bf16.gmra.mxu0 %v1691
        %v3355 = vpop.f32.mrf.mxu0
        %v3356 = vadd.f32 %v3259, %v3355
        %v3357 = vpop.f32.mrf.mxu0
        %v3358 = vpop.f32.mrf.mxu0
        %v3359 = vadd.f32 %v3262, %v3358
        %v3360 = vpop.f32.mrf.mxu0
        %3361 = vmatprep.mubr.bf16.mxu0 %v1716
        %3362 = vmatmul.mubr.bf16.gmra.mxu0 %v1715
        %v3363 = vpop.f32.mrf.mxu0
        %v3364 = vadd.f32 %v3267, %v3363
        %v3365 = vpop.f32.mrf.mxu0
        %v3366 = vpop.f32.mrf.mxu0
        %v3367 = vadd.f32 %v3270, %v3366
        %v3368 = vpop.f32.mrf.mxu0
        %3369 = vdwg.mxu0
        %3370 = vmatprep.subr.bf16.mxu0 0
        %3371 = vmatpush1.bf16.msra.mxu0 %v2750
        %3372 = vmatprep.subr.bf16.mxu0 0
        %3373 = vmatpush1.bf16.msra.mxu0 %v2749
        %3374 = vmatprep.subr.bf16.mxu0 0
        %3375 = vmatpush1.bf16.msra.mxu0 %v2748
        %3376 = vmatprep.subr.bf16.mxu0 0
        %3377 = vmatpush1.bf16.msra.mxu0 %v2747
        %3378 = vmatprep.subr.bf16.mxu0 0
        %3379 = vmatpush1.bf16.msra.mxu0 %v2746
        %3380 = vmatprep.subr.bf16.mxu0 0
        %3381 = vmatpush1.bf16.msra.mxu0 %v2745
        %3382 = vmatprep.subr.bf16.mxu0 0
        %3383 = vmatpush1.bf16.msra.mxu0 %v2744
        %3384 = vmatprep.subr.bf16.mxu0 0
        %3385 = vmatpush1.bf16.msra.mxu0 %v2743
        %3386 = vmatprep.subr.bf16.mxu0 0
        %3387 = vmatpush2.bf16.msra.mxu0 %v2758
        %3388 = vmatprep.subr.bf16.mxu0 0
        %3389 = vmatpush2.bf16.msra.mxu0 %v2757
        %3390 = vmatprep.subr.bf16.mxu0 0
        %3391 = vmatpush2.bf16.msra.mxu0 %v2756
        %3392 = vmatprep.subr.bf16.mxu0 0
        %3393 = vmatpush2.bf16.msra.mxu0 %v2755
        %3394 = vmatprep.subr.bf16.mxu0 0
        %3395 = vmatpush2.bf16.msra.mxu0 %v2754
        %3396 = vmatprep.subr.bf16.mxu0 0
        %3397 = vmatpush2.bf16.msra.mxu0 %v2753
        %3398 = vmatprep.subr.bf16.mxu0 0
        %3399 = vmatpush2.bf16.msra.mxu0 %v2752
        %3400 = vmatprep.subr.bf16.mxu0 0
        %3401 = vmatpush2.bf16.msra.mxu0 %v2751
        %3402 = vmatprep.mubr.bf16.mxu0 %v1550
        %3403 = vmatmul.mubr.bf16.gmra.mxu0 %v1549
        %v3404 = vpop.f32.mrf.mxu0
        %v3405 = vadd.f32 %v3308, %v3404
        %v3406 = vpop.f32.mrf.mxu0
        %v3407 = vpop.f32.mrf.mxu0
        %v3408 = vadd.f32 %v3311, %v3407
        %v3409 = vpop.f32.mrf.mxu0
        %3410 = vmatprep.mubr.bf16.mxu0 %v1574
        %3411 = vmatmul.mubr.bf16.gmra.mxu0 %v1573
        %v3412 = vpop.f32.mrf.mxu0
        %v3413 = vadd.f32 %v3316, %v3412
        %v3414 = vpop.f32.mrf.mxu0
        %v3415 = vpop.f32.mrf.mxu0
        %v3416 = vadd.f32 %v3319, %v3415
        %v3417 = vpop.f32.mrf.mxu0
        %3418 = vmatprep.mubr.bf16.mxu0 %v1598
        %3419 = vmatmul.mubr.bf16.gmra.mxu0 %v1597
        %v3420 = vpop.f32.mrf.mxu0
        %v3421 = vadd.f32 %v3324, %v3420
        %v3422 = vpop.f32.mrf.mxu0
        %v3423 = vpop.f32.mrf.mxu0
        %v3424 = vadd.f32 %v3327, %v3423
        %v3425 = vpop.f32.mrf.mxu0
        %3426 = vmatprep.mubr.bf16.mxu0 %v1622
        %3427 = vmatmul.mubr.bf16.gmra.mxu0 %v1621
        %v3428 = vpop.f32.mrf.mxu0
        %v3429 = vadd.f32 %v3332, %v3428
        %v3430 = vpop.f32.mrf.mxu0
        %v3431 = vpop.f32.mrf.mxu0
        %v3432 = vadd.f32 %v3335, %v3431
        %v3433 = vpop.f32.mrf.mxu0
        %3434 = vmatprep.mubr.bf16.mxu0 %v1646
        %3435 = vmatmul.mubr.bf16.gmra.mxu0 %v1645
        %v3436 = vpop.f32.mrf.mxu0
        %v3437 = vadd.f32 %v3340, %v3436
        %v3438 = vpop.f32.mrf.mxu0
        %v3439 = vpop.f32.mrf.mxu0
        %v3440 = vadd.f32 %v3343, %v3439
        %v3441 = vpop.f32.mrf.mxu0
        %3442 = vmatprep.mubr.bf16.mxu0 %v1670
        %3443 = vmatmul.mubr.bf16.gmra.mxu0 %v1669
        %v3444 = vpop.f32.mrf.mxu0
        %v3445 = vadd.f32 %v3348, %v3444
        %v3446 = vpop.f32.mrf.mxu0
        %v3447 = vpop.f32.mrf.mxu0
        %v3448 = vadd.f32 %v3351, %v3447
        %v3449 = vpop.f32.mrf.mxu0
        %3450 = vmatprep.mubr.bf16.mxu0 %v1694
        %3451 = vmatmul.mubr.bf16.gmra.mxu0 %v1693
        %v3452 = vpop.f32.mrf.mxu0
        %v3453 = vadd.f32 %v3356, %v3452
        %v3454 = vpop.f32.mrf.mxu0
        %v3455 = vpop.f32.mrf.mxu0
        %v3456 = vadd.f32 %v3359, %v3455
        %v3457 = vpop.f32.mrf.mxu0
        %3458 = vmatprep.mubr.bf16.mxu0 %v1718
        %3459 = vmatmul.mubr.bf16.gmra.mxu0 %v1717
        %v3460 = vpop.f32.mrf.mxu0
        %v3461 = vadd.f32 %v3364, %v3460
        %v3462 = vpop.f32.mrf.mxu0
        %v3463 = vpop.f32.mrf.mxu0
        %v3464 = vadd.f32 %v3367, %v3463
        %v3465 = vpop.f32.mrf.mxu0
        %3466 = vdwg.mxu0
        %3467 = vmatprep.subr.bf16.mxu0 0
        %3468 = vmatpush1.bf16.msra.mxu0 %v2766
        %3469 = vmatprep.subr.bf16.mxu0 0
        %3470 = vmatpush1.bf16.msra.mxu0 %v2765
        %3471 = vmatprep.subr.bf16.mxu0 0
        %3472 = vmatpush1.bf16.msra.mxu0 %v2764
        %3473 = vmatprep.subr.bf16.mxu0 0
        %3474 = vmatpush1.bf16.msra.mxu0 %v2763
        %3475 = vmatprep.subr.bf16.mxu0 0
        %3476 = vmatpush1.bf16.msra.mxu0 %v2762
        %3477 = vmatprep.subr.bf16.mxu0 0
        %3478 = vmatpush1.bf16.msra.mxu0 %v2761
        %3479 = vmatprep.subr.bf16.mxu0 0
        %3480 = vmatpush1.bf16.msra.mxu0 %v2760
        %3481 = vmatprep.subr.bf16.mxu0 0
        %3482 = vmatpush1.bf16.msra.mxu0 %v2759
        %3483 = vmatprep.subr.bf16.mxu0 0
        %3484 = vmatpush2.bf16.msra.mxu0 %v2774
        %3485 = vmatprep.subr.bf16.mxu0 0
        %3486 = vmatpush2.bf16.msra.mxu0 %v2773
        %3487 = vmatprep.subr.bf16.mxu0 0
        %3488 = vmatpush2.bf16.msra.mxu0 %v2772
        %3489 = vmatprep.subr.bf16.mxu0 0
        %3490 = vmatpush2.bf16.msra.mxu0 %v2771
        %3491 = vmatprep.subr.bf16.mxu0 0
        %3492 = vmatpush2.bf16.msra.mxu0 %v2770
        %3493 = vmatprep.subr.bf16.mxu0 0
        %3494 = vmatpush2.bf16.msra.mxu0 %v2769
        %3495 = vmatprep.subr.bf16.mxu0 0
        %3496 = vmatpush2.bf16.msra.mxu0 %v2768
        %3497 = vmatprep.subr.bf16.mxu0 0
        %3498 = vmatpush2.bf16.msra.mxu0 %v2767
        %3499 = vmatprep.mubr.bf16.mxu0 %v1552
        %3500 = vmatmul.mubr.bf16.gmra.mxu0 %v1551
        %v3501 = vpop.f32.mrf.mxu0
        %v3502 = vadd.f32 %v3405, %v3501
        %v3503 = vpop.f32.mrf.mxu0
        %v3504 = vpop.f32.mrf.mxu0
        %v3505 = vadd.f32 %v3408, %v3504
        %v3506 = vpop.f32.mrf.mxu0
        %3507 = vmatprep.mubr.bf16.mxu0 %v1576
        %3508 = vmatmul.mubr.bf16.gmra.mxu0 %v1575
        %v3509 = vpop.f32.mrf.mxu0
        %v3510 = vadd.f32 %v3413, %v3509
        %v3511 = vpop.f32.mrf.mxu0
        %v3512 = vpop.f32.mrf.mxu0
        %v3513 = vadd.f32 %v3416, %v3512
        %v3514 = vpop.f32.mrf.mxu0
        %3515 = vmatprep.mubr.bf16.mxu0 %v1600
        %3516 = vmatmul.mubr.bf16.gmra.mxu0 %v1599
        %v3517 = vpop.f32.mrf.mxu0
        %v3518 = vadd.f32 %v3421, %v3517
        %v3519 = vpop.f32.mrf.mxu0
        %v3520 = vpop.f32.mrf.mxu0
        %v3521 = vadd.f32 %v3424, %v3520
        %v3522 = vpop.f32.mrf.mxu0
        %3523 = vmatprep.mubr.bf16.mxu0 %v1624
        %3524 = vmatmul.mubr.bf16.gmra.mxu0 %v1623
        %v3525 = vpop.f32.mrf.mxu0
        %v3526 = vadd.f32 %v3429, %v3525
        %v3527 = vpop.f32.mrf.mxu0
        %v3528 = vpop.f32.mrf.mxu0
        %v3529 = vadd.f32 %v3432, %v3528
        %v3530 = vpop.f32.mrf.mxu0
        %3531 = vmatprep.mubr.bf16.mxu0 %v1648
        %3532 = vmatmul.mubr.bf16.gmra.mxu0 %v1647
        %v3533 = vpop.f32.mrf.mxu0
        %v3534 = vadd.f32 %v3437, %v3533
        %v3535 = vpop.f32.mrf.mxu0
        %v3536 = vpop.f32.mrf.mxu0
        %v3537 = vadd.f32 %v3440, %v3536
        %v3538 = vpop.f32.mrf.mxu0
        %3539 = vmatprep.mubr.bf16.mxu0 %v1672
        %3540 = vmatmul.mubr.bf16.gmra.mxu0 %v1671
        %v3541 = vpop.f32.mrf.mxu0
        %v3542 = vadd.f32 %v3445, %v3541
        %v3543 = vpop.f32.mrf.mxu0
        %v3544 = vpop.f32.mrf.mxu0
        %v3545 = vadd.f32 %v3448, %v3544
        %v3546 = vpop.f32.mrf.mxu0
        %3547 = vmatprep.mubr.bf16.mxu0 %v1696
        %3548 = vmatmul.mubr.bf16.gmra.mxu0 %v1695
        %v3549 = vpop.f32.mrf.mxu0
        %v3550 = vadd.f32 %v3453, %v3549
        %v3551 = vpop.f32.mrf.mxu0
        %v3552 = vpop.f32.mrf.mxu0
        %v3553 = vadd.f32 %v3456, %v3552
        %v3554 = vpop.f32.mrf.mxu0
        %3555 = vmatprep.mubr.bf16.mxu0 %v1720
        %3556 = vmatmul.mubr.bf16.gmra.mxu0 %v1719
        %v3557 = vpop.f32.mrf.mxu0
        %v3558 = vadd.f32 %v3461, %v3557
        %v3559 = vpop.f32.mrf.mxu0
        %v3560 = vpop.f32.mrf.mxu0
        %v3561 = vadd.f32 %v3464, %v3560
        %v3562 = vpop.f32.mrf.mxu0
        %3563 = vdwg.mxu0
        %3564 = vmatprep.subr.bf16.mxu0 0
        %3565 = vmatpush1.bf16.msra.mxu0 %v2782
        %3566 = vmatprep.subr.bf16.mxu0 0
        %3567 = vmatpush1.bf16.msra.mxu0 %v2781
        %3568 = vmatprep.subr.bf16.mxu0 0
        %3569 = vmatpush1.bf16.msra.mxu0 %v2780
        %3570 = vmatprep.subr.bf16.mxu0 0
        %3571 = vmatpush1.bf16.msra.mxu0 %v2779
        %3572 = vmatprep.subr.bf16.mxu0 0
        %3573 = vmatpush1.bf16.msra.mxu0 %v2778
        %3574 = vmatprep.subr.bf16.mxu0 0
        %3575 = vmatpush1.bf16.msra.mxu0 %v2777
        %3576 = vmatprep.subr.bf16.mxu0 0
        %3577 = vmatpush1.bf16.msra.mxu0 %v2776
        %3578 = vmatprep.subr.bf16.mxu0 0
        %3579 = vmatpush1.bf16.msra.mxu0 %v2775
        %3580 = vmatprep.subr.bf16.mxu0 0
        %3581 = vmatpush2.bf16.msra.mxu0 %v2790
        %3582 = vmatprep.subr.bf16.mxu0 0
        %3583 = vmatpush2.bf16.msra.mxu0 %v2789
        %3584 = vmatprep.subr.bf16.mxu0 0
        %3585 = vmatpush2.bf16.msra.mxu0 %v2788
        %3586 = vmatprep.subr.bf16.mxu0 0
        %3587 = vmatpush2.bf16.msra.mxu0 %v2787
        %3588 = vmatprep.subr.bf16.mxu0 0
        %3589 = vmatpush2.bf16.msra.mxu0 %v2786
        %3590 = vmatprep.subr.bf16.mxu0 0
        %3591 = vmatpush2.bf16.msra.mxu0 %v2785
        %3592 = vmatprep.subr.bf16.mxu0 0
        %3593 = vmatpush2.bf16.msra.mxu0 %v2784
        %3594 = vmatprep.subr.bf16.mxu0 0
        %3595 = vmatpush2.bf16.msra.mxu0 %v2783
        %3596 = vmatprep.mubr.bf16.mxu0 %v1554
        %3597 = vmatmul.mubr.bf16.gmra.mxu0 %v1553
        %v3598 = vpop.f32.mrf.mxu0
        %v3599 = vadd.f32 %v3502, %v3598
        %v3600 = vpop.f32.mrf.mxu0
        %v3601 = vpop.f32.mrf.mxu0
        %v3602 = vadd.f32 %v3505, %v3601
        %v3603 = vpop.f32.mrf.mxu0
        %3604 = vmatprep.mubr.bf16.mxu0 %v1578
        %3605 = vmatmul.mubr.bf16.gmra.mxu0 %v1577
        %v3606 = vpop.f32.mrf.mxu0
        %v3607 = vadd.f32 %v3510, %v3606
        %v3608 = vpop.f32.mrf.mxu0
        %v3609 = vpop.f32.mrf.mxu0
        %v3610 = vadd.f32 %v3513, %v3609
        %v3611 = vpop.f32.mrf.mxu0
        %3612 = vmatprep.mubr.bf16.mxu0 %v1602
        %3613 = vmatmul.mubr.bf16.gmra.mxu0 %v1601
        %v3614 = vpop.f32.mrf.mxu0
        %v3615 = vadd.f32 %v3518, %v3614
        %v3616 = vpop.f32.mrf.mxu0
        %v3617 = vpop.f32.mrf.mxu0
        %v3618 = vadd.f32 %v3521, %v3617
        %v3619 = vpop.f32.mrf.mxu0
        %3620 = vmatprep.mubr.bf16.mxu0 %v1626
        %3621 = vmatmul.mubr.bf16.gmra.mxu0 %v1625
        %v3622 = vpop.f32.mrf.mxu0
        %v3623 = vadd.f32 %v3526, %v3622
        %v3624 = vpop.f32.mrf.mxu0
        %v3625 = vpop.f32.mrf.mxu0
        %v3626 = vadd.f32 %v3529, %v3625
        %v3627 = vpop.f32.mrf.mxu0
        %3628 = vmatprep.mubr.bf16.mxu0 %v1650
        %3629 = vmatmul.mubr.bf16.gmra.mxu0 %v1649
        %v3630 = vpop.f32.mrf.mxu0
        %v3631 = vadd.f32 %v3534, %v3630
        %v3632 = vpop.f32.mrf.mxu0
        %v3633 = vpop.f32.mrf.mxu0
        %v3634 = vadd.f32 %v3537, %v3633
        %v3635 = vpop.f32.mrf.mxu0
        %3636 = vmatprep.mubr.bf16.mxu0 %v1674
        %3637 = vmatmul.mubr.bf16.gmra.mxu0 %v1673
        %v3638 = vpop.f32.mrf.mxu0
        %v3639 = vadd.f32 %v3542, %v3638
        %v3640 = vpop.f32.mrf.mxu0
        %v3641 = vpop.f32.mrf.mxu0
        %v3642 = vadd.f32 %v3545, %v3641
        %v3643 = vpop.f32.mrf.mxu0
        %3644 = vmatprep.mubr.bf16.mxu0 %v1698
        %3645 = vmatmul.mubr.bf16.gmra.mxu0 %v1697
        %v3646 = vpop.f32.mrf.mxu0
        %v3647 = vadd.f32 %v3550, %v3646
        %v3648 = vpop.f32.mrf.mxu0
        %v3649 = vpop.f32.mrf.mxu0
        %v3650 = vadd.f32 %v3553, %v3649
        %v3651 = vpop.f32.mrf.mxu0
        %3652 = vmatprep.mubr.bf16.mxu0 %v1722
        %3653 = vmatmul.mubr.bf16.gmra.mxu0 %v1721
        %v3654 = vpop.f32.mrf.mxu0
        %v3655 = vadd.f32 %v3558, %v3654
        %v3656 = vpop.f32.mrf.mxu0
        %v3657 = vpop.f32.mrf.mxu0
        %v3658 = vadd.f32 %v3561, %v3657
        %v3659 = vpop.f32.mrf.mxu0
        %3660 = vdwg.mxu0
        %3661 = vmatprep.subr.bf16.mxu0 0
        %3662 = vmatpush1.bf16.msra.mxu0 %v2798
        %3663 = vmatprep.subr.bf16.mxu0 0
        %3664 = vmatpush1.bf16.msra.mxu0 %v2797
        %3665 = vmatprep.subr.bf16.mxu0 0
        %3666 = vmatpush1.bf16.msra.mxu0 %v2796
        %3667 = vmatprep.subr.bf16.mxu0 0
        %3668 = vmatpush1.bf16.msra.mxu0 %v2795
        %3669 = vmatprep.subr.bf16.mxu0 0
        %3670 = vmatpush1.bf16.msra.mxu0 %v2794
        %3671 = vmatprep.subr.bf16.mxu0 0
        %3672 = vmatpush1.bf16.msra.mxu0 %v2793
        %3673 = vmatprep.subr.bf16.mxu0 0
        %3674 = vmatpush1.bf16.msra.mxu0 %v2792
        %3675 = vmatprep.subr.bf16.mxu0 0
        %3676 = vmatpush1.bf16.msra.mxu0 %v2791
        %3677 = vmatprep.subr.bf16.mxu0 0
        %3678 = vmatpush2.bf16.msra.mxu0 %v2806
        %3679 = vmatprep.subr.bf16.mxu0 0
        %3680 = vmatpush2.bf16.msra.mxu0 %v2805
        %3681 = vmatprep.subr.bf16.mxu0 0
        %3682 = vmatpush2.bf16.msra.mxu0 %v2804
        %3683 = vmatprep.subr.bf16.mxu0 0
        %3684 = vmatpush2.bf16.msra.mxu0 %v2803
        %3685 = vmatprep.subr.bf16.mxu0 0
        %3686 = vmatpush2.bf16.msra.mxu0 %v2802
        %3687 = vmatprep.subr.bf16.mxu0 0
        %3688 = vmatpush2.bf16.msra.mxu0 %v2801
        %3689 = vmatprep.subr.bf16.mxu0 0
        %3690 = vmatpush2.bf16.msra.mxu0 %v2800
        %3691 = vmatprep.subr.bf16.mxu0 0
        %3692 = vmatpush2.bf16.msra.mxu0 %v2799
        %3693 = vmatprep.mubr.bf16.mxu0 %v1556
        %3694 = vmatmul.mubr.bf16.gmra.mxu0 %v1555
        %v3695 = vpop.f32.mrf.mxu0
        %v3696 = vadd.f32 %v3599, %v3695
        %v3697 = vpop.f32.mrf.mxu0
        %v3698 = vpop.f32.mrf.mxu0
        %v3699 = vadd.f32 %v3602, %v3698
        %v3700 = vpop.f32.mrf.mxu0
        %3701 = vmatprep.mubr.bf16.mxu0 %v1580
        %3702 = vmatmul.mubr.bf16.gmra.mxu0 %v1579
        %v3703 = vpop.f32.mrf.mxu0
        %v3704 = vadd.f32 %v3607, %v3703
        %v3705 = vpop.f32.mrf.mxu0
        %v3706 = vpop.f32.mrf.mxu0
        %v3707 = vadd.f32 %v3610, %v3706
        %v3708 = vpop.f32.mrf.mxu0
        %3709 = vmatprep.mubr.bf16.mxu0 %v1604
        %3710 = vmatmul.mubr.bf16.gmra.mxu0 %v1603
        %v3711 = vpop.f32.mrf.mxu0
        %v3712 = vadd.f32 %v3615, %v3711
        %v3713 = vpop.f32.mrf.mxu0
        %v3714 = vpop.f32.mrf.mxu0
        %v3715 = vadd.f32 %v3618, %v3714
        %v3716 = vpop.f32.mrf.mxu0
        %3717 = vmatprep.mubr.bf16.mxu0 %v1628
        %3718 = vmatmul.mubr.bf16.gmra.mxu0 %v1627
        %v3719 = vpop.f32.mrf.mxu0
        %v3720 = vadd.f32 %v3623, %v3719
        %v3721 = vpop.f32.mrf.mxu0
        %v3722 = vpop.f32.mrf.mxu0
        %v3723 = vadd.f32 %v3626, %v3722
        %v3724 = vpop.f32.mrf.mxu0
        %3725 = vmatprep.mubr.bf16.mxu0 %v1652
        %3726 = vmatmul.mubr.bf16.gmra.mxu0 %v1651
        %v3727 = vpop.f32.mrf.mxu0
        %v3728 = vadd.f32 %v3631, %v3727
        %v3729 = vpop.f32.mrf.mxu0
        %v3730 = vpop.f32.mrf.mxu0
        %v3731 = vadd.f32 %v3634, %v3730
        %v3732 = vpop.f32.mrf.mxu0
        %3733 = vmatprep.mubr.bf16.mxu0 %v1676
        %3734 = vmatmul.mubr.bf16.gmra.mxu0 %v1675
        %v3735 = vpop.f32.mrf.mxu0
        %v3736 = vadd.f32 %v3639, %v3735
        %v3737 = vpop.f32.mrf.mxu0
        %v3738 = vpop.f32.mrf.mxu0
        %v3739 = vadd.f32 %v3642, %v3738
        %v3740 = vpop.f32.mrf.mxu0
        %3741 = vmatprep.mubr.bf16.mxu0 %v1700
        %3742 = vmatmul.mubr.bf16.gmra.mxu0 %v1699
        %v3743 = vpop.f32.mrf.mxu0
        %v3744 = vadd.f32 %v3647, %v3743
        %v3745 = vpop.f32.mrf.mxu0
        %v3746 = vpop.f32.mrf.mxu0
        %v3747 = vadd.f32 %v3650, %v3746
        %v3748 = vpop.f32.mrf.mxu0
        %3749 = vmatprep.mubr.bf16.mxu0 %v1724
        %3750 = vmatmul.mubr.bf16.gmra.mxu0 %v1723
        %v3751 = vpop.f32.mrf.mxu0
        %v3752 = vadd.f32 %v3655, %v3751
        %v3753 = vpop.f32.mrf.mxu0
        %v3754 = vpop.f32.mrf.mxu0
        %v3755 = vadd.f32 %v3658, %v3754
        %v3756 = vpop.f32.mrf.mxu0
        %3757 = vdwg.mxu0
        %3758 = vmatprep.subr.bf16.mxu0 0
        %3759 = vmatpush1.bf16.msra.mxu0 %v2814
        %3760 = vmatprep.subr.bf16.mxu0 0
        %3761 = vmatpush1.bf16.msra.mxu0 %v2813
        %3762 = vmatprep.subr.bf16.mxu0 0
        %3763 = vmatpush1.bf16.msra.mxu0 %v2812
        %3764 = vmatprep.subr.bf16.mxu0 0
        %3765 = vmatpush1.bf16.msra.mxu0 %v2811
        %3766 = vmatprep.subr.bf16.mxu0 0
        %3767 = vmatpush1.bf16.msra.mxu0 %v2810
        %3768 = vmatprep.subr.bf16.mxu0 0
        %3769 = vmatpush1.bf16.msra.mxu0 %v2809
        %3770 = vmatprep.subr.bf16.mxu0 0
        %3771 = vmatpush1.bf16.msra.mxu0 %v2808
        %3772 = vmatprep.subr.bf16.mxu0 0
        %3773 = vmatpush1.bf16.msra.mxu0 %v2807
        %3774 = vmatprep.subr.bf16.mxu0 0
        %3775 = vmatpush2.bf16.msra.mxu0 %v2822
        %3776 = vmatprep.subr.bf16.mxu0 0
        %3777 = vmatpush2.bf16.msra.mxu0 %v2821
        %3778 = vmatprep.subr.bf16.mxu0 0
        %3779 = vmatpush2.bf16.msra.mxu0 %v2820
        %3780 = vmatprep.subr.bf16.mxu0 0
        %3781 = vmatpush2.bf16.msra.mxu0 %v2819
        %3782 = vmatprep.subr.bf16.mxu0 0
        %3783 = vmatpush2.bf16.msra.mxu0 %v2818
        %3784 = vmatprep.subr.bf16.mxu0 0
        %3785 = vmatpush2.bf16.msra.mxu0 %v2817
        %3786 = vmatprep.subr.bf16.mxu0 0
        %3787 = vmatpush2.bf16.msra.mxu0 %v2816
        %3788 = vmatprep.subr.bf16.mxu0 0
        %3789 = vmatpush2.bf16.msra.mxu0 %v2815
        %3790 = vmatprep.mubr.bf16.mxu0 %v1558
        %3791 = vmatmul.mubr.bf16.gmra.mxu0 %v1557
        %v3792 = vpop.f32.mrf.mxu0
        %v3793 = vadd.f32 %v3696, %v3792
        %v3794 = vpop.f32.mrf.mxu0
        %v3795 = vpop.f32.mrf.mxu0
        %v3796 = vadd.f32 %v3699, %v3795
        %v3797 = vpop.f32.mrf.mxu0
        %3798 = vmatprep.mubr.bf16.mxu0 %v1582
        %3799 = vmatmul.mubr.bf16.gmra.mxu0 %v1581
        %v3800 = vpop.f32.mrf.mxu0
        %v3801 = vadd.f32 %v3704, %v3800
        %v3802 = vpop.f32.mrf.mxu0
        %v3803 = vpop.f32.mrf.mxu0
        %v3804 = vadd.f32 %v3707, %v3803
        %v3805 = vpop.f32.mrf.mxu0
        %3806 = vmatprep.mubr.bf16.mxu0 %v1606
        %3807 = vmatmul.mubr.bf16.gmra.mxu0 %v1605
        %v3808 = vpop.f32.mrf.mxu0
        %v3809 = vadd.f32 %v3712, %v3808
        %v3810 = vpop.f32.mrf.mxu0
        %v3811 = vpop.f32.mrf.mxu0
        %v3812 = vadd.f32 %v3715, %v3811
        %v3813 = vpop.f32.mrf.mxu0
        %3814 = vmatprep.mubr.bf16.mxu0 %v1630
        %3815 = vmatmul.mubr.bf16.gmra.mxu0 %v1629
        %v3816 = vpop.f32.mrf.mxu0
        %v3817 = vadd.f32 %v3720, %v3816
        %v3818 = vpop.f32.mrf.mxu0
        %v3819 = vpop.f32.mrf.mxu0
        %v3820 = vadd.f32 %v3723, %v3819
        %v3821 = vpop.f32.mrf.mxu0
        %3822 = vmatprep.mubr.bf16.mxu0 %v1654
        %3823 = vmatmul.mubr.bf16.gmra.mxu0 %v1653
        %v3824 = vpop.f32.mrf.mxu0
        %v3825 = vadd.f32 %v3728, %v3824
        %v3826 = vpop.f32.mrf.mxu0
        %v3827 = vpop.f32.mrf.mxu0
        %v3828 = vadd.f32 %v3731, %v3827
        %v3829 = vpop.f32.mrf.mxu0
        %3830 = vmatprep.mubr.bf16.mxu0 %v1678
        %3831 = vmatmul.mubr.bf16.gmra.mxu0 %v1677
        %v3832 = vpop.f32.mrf.mxu0
        %v3833 = vadd.f32 %v3736, %v3832
        %v3834 = vpop.f32.mrf.mxu0
        %v3835 = vpop.f32.mrf.mxu0
        %v3836 = vadd.f32 %v3739, %v3835
        %v3837 = vpop.f32.mrf.mxu0
        %3838 = vmatprep.mubr.bf16.mxu0 %v1702
        %3839 = vmatmul.mubr.bf16.gmra.mxu0 %v1701
        %v3840 = vpop.f32.mrf.mxu0
        %v3841 = vadd.f32 %v3744, %v3840
        %v3842 = vpop.f32.mrf.mxu0
        %v3843 = vpop.f32.mrf.mxu0
        %v3844 = vadd.f32 %v3747, %v3843
        %v3845 = vpop.f32.mrf.mxu0
        %3846 = vmatprep.mubr.bf16.mxu0 %v1726
        %3847 = vmatmul.mubr.bf16.gmra.mxu0 %v1725
        %v3848 = vpop.f32.mrf.mxu0
        %v3849 = vadd.f32 %v3752, %v3848
        %v3850 = vpop.f32.mrf.mxu0
        %v3851 = vpop.f32.mrf.mxu0
        %v3852 = vadd.f32 %v3755, %v3851
        %v3853 = vpop.f32.mrf.mxu0
        %3854 = vdwg.mxu0
        %3855 = vmatprep.subr.bf16.mxu0 0
        %3856 = vmatpush1.bf16.msra.mxu0 %v2830
        %3857 = vmatprep.subr.bf16.mxu0 0
        %3858 = vmatpush1.bf16.msra.mxu0 %v2829
        %3859 = vmatprep.subr.bf16.mxu0 0
        %3860 = vmatpush1.bf16.msra.mxu0 %v2828
        %3861 = vmatprep.subr.bf16.mxu0 0
        %3862 = vmatpush1.bf16.msra.mxu0 %v2827
        %3863 = vmatprep.subr.bf16.mxu0 0
        %3864 = vmatpush1.bf16.msra.mxu0 %v2826
        %3865 = vmatprep.subr.bf16.mxu0 0
        %3866 = vmatpush1.bf16.msra.mxu0 %v2825
        %3867 = vmatprep.subr.bf16.mxu0 0
        %3868 = vmatpush1.bf16.msra.mxu0 %v2824
        %3869 = vmatprep.subr.bf16.mxu0 0
        %3870 = vmatpush1.bf16.msra.mxu0 %v2823
        %3871 = vmatprep.subr.bf16.mxu0 0
        %3872 = vmatpush2.bf16.msra.mxu0 %v2838
        %3873 = vmatprep.subr.bf16.mxu0 0
        %3874 = vmatpush2.bf16.msra.mxu0 %v2837
        %3875 = vmatprep.subr.bf16.mxu0 0
        %3876 = vmatpush2.bf16.msra.mxu0 %v2836
        %3877 = vmatprep.subr.bf16.mxu0 0
        %3878 = vmatpush2.bf16.msra.mxu0 %v2835
        %3879 = vmatprep.subr.bf16.mxu0 0
        %3880 = vmatpush2.bf16.msra.mxu0 %v2834
        %3881 = vmatprep.subr.bf16.mxu0 0
        %3882 = vmatpush2.bf16.msra.mxu0 %v2833
        %3883 = vmatprep.subr.bf16.mxu0 0
        %3884 = vmatpush2.bf16.msra.mxu0 %v2832
        %3885 = vmatprep.subr.bf16.mxu0 0
        %3886 = vmatpush2.bf16.msra.mxu0 %v2831
        %3887 = vmatprep.mubr.bf16.mxu0 %v1560
        %3888 = vmatmul.mubr.bf16.gmra.mxu0 %v1559
        %v3889 = vpop.f32.mrf.mxu0
        %v3890 = vadd.f32 %v3793, %v3889
        %v3891 = vpop.f32.mrf.mxu0
        %v3892 = vpop.f32.mrf.mxu0
        %v3893 = vadd.f32 %v3796, %v3892
        %v3894 = vpop.f32.mrf.mxu0
        %3895 = vmatprep.mubr.bf16.mxu0 %v1584
        %3896 = vmatmul.mubr.bf16.gmra.mxu0 %v1583
        %v3897 = vpop.f32.mrf.mxu0
        %v3898 = vadd.f32 %v3801, %v3897
        %v3899 = vpop.f32.mrf.mxu0
        %v3900 = vpop.f32.mrf.mxu0
        %v3901 = vadd.f32 %v3804, %v3900
        %v3902 = vpop.f32.mrf.mxu0
        %3903 = vmatprep.mubr.bf16.mxu0 %v1608
        %3904 = vmatmul.mubr.bf16.gmra.mxu0 %v1607
        %v3905 = vpop.f32.mrf.mxu0
        %v3906 = vadd.f32 %v3809, %v3905
        %v3907 = vpop.f32.mrf.mxu0
        %v3908 = vpop.f32.mrf.mxu0
        %v3909 = vadd.f32 %v3812, %v3908
        %v3910 = vpop.f32.mrf.mxu0
        %3911 = vmatprep.mubr.bf16.mxu0 %v1632
        %3912 = vmatmul.mubr.bf16.gmra.mxu0 %v1631
        %v3913 = vpop.f32.mrf.mxu0
        %v3914 = vadd.f32 %v3817, %v3913
        %v3915 = vpop.f32.mrf.mxu0
        %v3916 = vpop.f32.mrf.mxu0
        %v3917 = vadd.f32 %v3820, %v3916
        %v3918 = vpop.f32.mrf.mxu0
        %3919 = vmatprep.mubr.bf16.mxu0 %v1656
        %3920 = vmatmul.mubr.bf16.gmra.mxu0 %v1655
        %v3921 = vpop.f32.mrf.mxu0
        %v3922 = vadd.f32 %v3825, %v3921
        %v3923 = vpop.f32.mrf.mxu0
        %v3924 = vpop.f32.mrf.mxu0
        %v3925 = vadd.f32 %v3828, %v3924
        %v3926 = vpop.f32.mrf.mxu0
        %3927 = vmatprep.mubr.bf16.mxu0 %v1680
        %3928 = vmatmul.mubr.bf16.gmra.mxu0 %v1679
        %v3929 = vpop.f32.mrf.mxu0
        %v3930 = vadd.f32 %v3833, %v3929
        %v3931 = vpop.f32.mrf.mxu0
        %v3932 = vpop.f32.mrf.mxu0
        %v3933 = vadd.f32 %v3836, %v3932
        %v3934 = vpop.f32.mrf.mxu0
        %3935 = vmatprep.mubr.bf16.mxu0 %v1704
        %3936 = vmatmul.mubr.bf16.gmra.mxu0 %v1703
        %v3937 = vpop.f32.mrf.mxu0
        %v3938 = vadd.f32 %v3841, %v3937
        %v3939 = vpop.f32.mrf.mxu0
        %v3940 = vpop.f32.mrf.mxu0
        %v3941 = vadd.f32 %v3844, %v3940
        %v3942 = vpop.f32.mrf.mxu0
        %3943 = vmatprep.mubr.bf16.mxu0 %v1728
        %3944 = vmatmul.mubr.bf16.gmra.mxu0 %v1727
        %v3945 = vpop.f32.mrf.mxu0
        %v3946 = vadd.f32 %v3849, %v3945
        %v3947 = vpop.f32.mrf.mxu0
        %v3948 = vpop.f32.mrf.mxu0
        %v3949 = vadd.f32 %v3852, %v3948
        %v3950 = vpop.f32.mrf.mxu0
        %3951 = vdwg.mxu0
        %3952 = vmatprep.subr.bf16.mxu0 0
        %3953 = vmatpush1.bf16.msra.mxu0 %v2846
        %3954 = vmatprep.subr.bf16.mxu0 0
        %3955 = vmatpush1.bf16.msra.mxu0 %v2845
        %3956 = vmatprep.subr.bf16.mxu0 0
        %3957 = vmatpush1.bf16.msra.mxu0 %v2844
        %3958 = vmatprep.subr.bf16.mxu0 0
        %3959 = vmatpush1.bf16.msra.mxu0 %v2843
        %3960 = vmatprep.subr.bf16.mxu0 0
        %3961 = vmatpush1.bf16.msra.mxu0 %v2842
        %3962 = vmatprep.subr.bf16.mxu0 0
        %3963 = vmatpush1.bf16.msra.mxu0 %v2841
        %3964 = vmatprep.subr.bf16.mxu0 0
        %3965 = vmatpush1.bf16.msra.mxu0 %v2840
        %3966 = vmatprep.subr.bf16.mxu0 0
        %3967 = vmatpush1.bf16.msra.mxu0 %v2839
        %3968 = vmatprep.subr.bf16.mxu0 0
        %3969 = vmatpush2.bf16.msra.mxu0 %v2854
        %3970 = vmatprep.subr.bf16.mxu0 0
        %3971 = vmatpush2.bf16.msra.mxu0 %v2853
        %3972 = vmatprep.subr.bf16.mxu0 0
        %3973 = vmatpush2.bf16.msra.mxu0 %v2852
        %3974 = vmatprep.subr.bf16.mxu0 0
        %3975 = vmatpush2.bf16.msra.mxu0 %v2851
        %3976 = vmatprep.subr.bf16.mxu0 0
        %3977 = vmatpush2.bf16.msra.mxu0 %v2850
        %3978 = vmatprep.subr.bf16.mxu0 0
        %3979 = vmatpush2.bf16.msra.mxu0 %v2849
        %3980 = vmatprep.subr.bf16.mxu0 0
        %3981 = vmatpush2.bf16.msra.mxu0 %v2848
        %3982 = vmatprep.subr.bf16.mxu0 0
        %3983 = vmatpush2.bf16.msra.mxu0 %v2847
        %3984 = vmatprep.mubr.bf16.mxu0 %v1562
        %3985 = vmatmul.mubr.bf16.gmra.mxu0 %v1561
        %v3986 = vpop.f32.mrf.mxu0
        %v3987 = vadd.f32 %v3890, %v3986
        %v3988 = vpop.f32.mrf.mxu0
        %v3989 = vpop.f32.mrf.mxu0
        %v3990 = vadd.f32 %v3893, %v3989
        %v3991 = vpop.f32.mrf.mxu0
        %3992 = vmatprep.mubr.bf16.mxu0 %v1586
        %3993 = vmatmul.mubr.bf16.gmra.mxu0 %v1585
        %v3994 = vpop.f32.mrf.mxu0
        %v3995 = vadd.f32 %v3898, %v3994
        %v3996 = vpop.f32.mrf.mxu0
        %v3997 = vpop.f32.mrf.mxu0
        %v3998 = vadd.f32 %v3901, %v3997
        %v3999 = vpop.f32.mrf.mxu0
        %4000 = vmatprep.mubr.bf16.mxu0 %v1610
        %4001 = vmatmul.mubr.bf16.gmra.mxu0 %v1609
        %v4002 = vpop.f32.mrf.mxu0
        %v4003 = vadd.f32 %v3906, %v4002
        %v4004 = vpop.f32.mrf.mxu0
        %v4005 = vpop.f32.mrf.mxu0
        %v4006 = vadd.f32 %v3909, %v4005
        %v4007 = vpop.f32.mrf.mxu0
        %4008 = vmatprep.mubr.bf16.mxu0 %v1634
        %4009 = vmatmul.mubr.bf16.gmra.mxu0 %v1633
        %v4010 = vpop.f32.mrf.mxu0
        %v4011 = vadd.f32 %v3914, %v4010
        %v4012 = vpop.f32.mrf.mxu0
        %v4013 = vpop.f32.mrf.mxu0
        %v4014 = vadd.f32 %v3917, %v4013
        %v4015 = vpop.f32.mrf.mxu0
        %4016 = vmatprep.mubr.bf16.mxu0 %v1658
        %4017 = vmatmul.mubr.bf16.gmra.mxu0 %v1657
        %v4018 = vpop.f32.mrf.mxu0
        %v4019 = vadd.f32 %v3922, %v4018
        %v4020 = vpop.f32.mrf.mxu0
        %v4021 = vpop.f32.mrf.mxu0
        %v4022 = vadd.f32 %v3925, %v4021
        %v4023 = vpop.f32.mrf.mxu0
        %4024 = vmatprep.mubr.bf16.mxu0 %v1682
        %4025 = vmatmul.mubr.bf16.gmra.mxu0 %v1681
        %v4026 = vpop.f32.mrf.mxu0
        %v4027 = vadd.f32 %v3930, %v4026
        %v4028 = vpop.f32.mrf.mxu0
        %v4029 = vpop.f32.mrf.mxu0
        %v4030 = vadd.f32 %v3933, %v4029
        %v4031 = vpop.f32.mrf.mxu0
        %4032 = vmatprep.mubr.bf16.mxu0 %v1706
        %4033 = vmatmul.mubr.bf16.gmra.mxu0 %v1705
        %v4034 = vpop.f32.mrf.mxu0
        %v4035 = vadd.f32 %v3938, %v4034
        %v4036 = vpop.f32.mrf.mxu0
        %v4037 = vpop.f32.mrf.mxu0
        %v4038 = vadd.f32 %v3941, %v4037
        %v4039 = vpop.f32.mrf.mxu0
        %4040 = vmatprep.mubr.bf16.mxu0 %v1730
        %4041 = vmatmul.mubr.bf16.gmra.mxu0 %v1729
        %v4042 = vpop.f32.mrf.mxu0
        %v4043 = vadd.f32 %v3946, %v4042
        %v4044 = vpop.f32.mrf.mxu0
        %v4045 = vpop.f32.mrf.mxu0
        %v4046 = vadd.f32 %v3949, %v4045
        %v4047 = vpop.f32.mrf.mxu0
        %4048 = vdwg.mxu0
        %4049 = vmatprep.subr.bf16.mxu0 0
        %4050 = vmatpush1.bf16.msra.mxu0 %v2862
        %4051 = vmatprep.subr.bf16.mxu0 0
        %4052 = vmatpush1.bf16.msra.mxu0 %v2861
        %4053 = vmatprep.subr.bf16.mxu0 0
        %4054 = vmatpush1.bf16.msra.mxu0 %v2860
        %4055 = vmatprep.subr.bf16.mxu0 0
        %4056 = vmatpush1.bf16.msra.mxu0 %v2859
        %4057 = vmatprep.subr.bf16.mxu0 0
        %4058 = vmatpush1.bf16.msra.mxu0 %v2858
        %4059 = vmatprep.subr.bf16.mxu0 0
        %4060 = vmatpush1.bf16.msra.mxu0 %v2857
        %4061 = vmatprep.subr.bf16.mxu0 0
        %4062 = vmatpush1.bf16.msra.mxu0 %v2856
        %4063 = vmatprep.subr.bf16.mxu0 0
        %4064 = vmatpush1.bf16.msra.mxu0 %v2855
        %4065 = vmatprep.subr.bf16.mxu0 0
        %4066 = vmatpush2.bf16.msra.mxu0 %v2870
        %4067 = vmatprep.subr.bf16.mxu0 0
        %4068 = vmatpush2.bf16.msra.mxu0 %v2869
        %4069 = vmatprep.subr.bf16.mxu0 0
        %4070 = vmatpush2.bf16.msra.mxu0 %v2868
        %4071 = vmatprep.subr.bf16.mxu0 0
        %4072 = vmatpush2.bf16.msra.mxu0 %v2867
        %4073 = vmatprep.subr.bf16.mxu0 0
        %4074 = vmatpush2.bf16.msra.mxu0 %v2866
        %4075 = vmatprep.subr.bf16.mxu0 0
        %4076 = vmatpush2.bf16.msra.mxu0 %v2865
        %4077 = vmatprep.subr.bf16.mxu0 0
        %4078 = vmatpush2.bf16.msra.mxu0 %v2864
        %4079 = vmatprep.subr.bf16.mxu0 0
        %4080 = vmatpush2.bf16.msra.mxu0 %v2863
        %4081 = vmatprep.mubr.bf16.mxu0 %v1564
        %4082 = vmatmul.mubr.bf16.gmra.mxu0 %v1563
        %v4083 = vpop.f32.mrf.mxu0
        %v4084 = vadd.f32 %v3987, %v4083
        %v4085 = vpop.f32.mrf.mxu0
        %v4086 = vpop.f32.mrf.mxu0
        %v4087 = vadd.f32 %v3990, %v4086
        %v4088 = vpop.f32.mrf.mxu0
        %4089 = vmatprep.mubr.bf16.mxu0 %v1588
        %4090 = vmatmul.mubr.bf16.gmra.mxu0 %v1587
        %v4091 = vpop.f32.mrf.mxu0
        %v4092 = vadd.f32 %v3995, %v4091
        %v4093 = vpop.f32.mrf.mxu0
        %v4094 = vpop.f32.mrf.mxu0
        %v4095 = vadd.f32 %v3998, %v4094
        %v4096 = vpop.f32.mrf.mxu0
        %4097 = vmatprep.mubr.bf16.mxu0 %v1612
        %4098 = vmatmul.mubr.bf16.gmra.mxu0 %v1611
        %v4099 = vpop.f32.mrf.mxu0
        %v4100 = vadd.f32 %v4003, %v4099
        %v4101 = vpop.f32.mrf.mxu0
        %v4102 = vpop.f32.mrf.mxu0
        %v4103 = vadd.f32 %v4006, %v4102
        %v4104 = vpop.f32.mrf.mxu0
        %4105 = vmatprep.mubr.bf16.mxu0 %v1636
        %4106 = vmatmul.mubr.bf16.gmra.mxu0 %v1635
        %v4107 = vpop.f32.mrf.mxu0
        %v4108 = vadd.f32 %v4011, %v4107
        %v4109 = vpop.f32.mrf.mxu0
        %v4110 = vpop.f32.mrf.mxu0
        %v4111 = vadd.f32 %v4014, %v4110
        %v4112 = vpop.f32.mrf.mxu0
        %4113 = vmatprep.mubr.bf16.mxu0 %v1660
        %4114 = vmatmul.mubr.bf16.gmra.mxu0 %v1659
        %v4115 = vpop.f32.mrf.mxu0
        %v4116 = vadd.f32 %v4019, %v4115
        %v4117 = vpop.f32.mrf.mxu0
        %v4118 = vpop.f32.mrf.mxu0
        %v4119 = vadd.f32 %v4022, %v4118
        %v4120 = vpop.f32.mrf.mxu0
        %4121 = vmatprep.mubr.bf16.mxu0 %v1684
        %4122 = vmatmul.mubr.bf16.gmra.mxu0 %v1683
        %v4123 = vpop.f32.mrf.mxu0
        %v4124 = vadd.f32 %v4027, %v4123
        %v4125 = vpop.f32.mrf.mxu0
        %v4126 = vpop.f32.mrf.mxu0
        %v4127 = vadd.f32 %v4030, %v4126
        %v4128 = vpop.f32.mrf.mxu0
        %4129 = vmatprep.mubr.bf16.mxu0 %v1708
        %4130 = vmatmul.mubr.bf16.gmra.mxu0 %v1707
        %v4131 = vpop.f32.mrf.mxu0
        %v4132 = vadd.f32 %v4035, %v4131
        %v4133 = vpop.f32.mrf.mxu0
        %v4134 = vpop.f32.mrf.mxu0
        %v4135 = vadd.f32 %v4038, %v4134
        %v4136 = vpop.f32.mrf.mxu0
        %4137 = vmatprep.mubr.bf16.mxu0 %v1732
        %4138 = vmatmul.mubr.bf16.gmra.mxu0 %v1731
        %v4139 = vpop.f32.mrf.mxu0
        %v4140 = vadd.f32 %v4043, %v4139
        %v4141 = vpop.f32.mrf.mxu0
        %v4142 = vpop.f32.mrf.mxu0
        %v4143 = vadd.f32 %v4046, %v4142
        %v4144 = vpop.f32.mrf.mxu0
        %4145 = vdwg.mxu0
        %4146 = vmatprep.subr.bf16.mxu0 0
        %4147 = vmatpush1.bf16.msra.mxu0 %v2878
        %4148 = vmatprep.subr.bf16.mxu0 0
        %4149 = vmatpush1.bf16.msra.mxu0 %v2877
        %4150 = vmatprep.subr.bf16.mxu0 0
        %4151 = vmatpush1.bf16.msra.mxu0 %v2876
        %4152 = vmatprep.subr.bf16.mxu0 0
        %4153 = vmatpush1.bf16.msra.mxu0 %v2875
        %4154 = vmatprep.subr.bf16.mxu0 0
        %4155 = vmatpush1.bf16.msra.mxu0 %v2874
        %4156 = vmatprep.subr.bf16.mxu0 0
        %4157 = vmatpush1.bf16.msra.mxu0 %v2873
        %4158 = vmatprep.subr.bf16.mxu0 0
        %4159 = vmatpush1.bf16.msra.mxu0 %v2872
        %4160 = vmatprep.subr.bf16.mxu0 0
        %4161 = vmatpush1.bf16.msra.mxu0 %v2871
        %4162 = vmatprep.subr.bf16.mxu0 0
        %4163 = vmatpush2.bf16.msra.mxu0 %v2886
        %4164 = vmatprep.subr.bf16.mxu0 0
        %4165 = vmatpush2.bf16.msra.mxu0 %v2885
        %4166 = vmatprep.subr.bf16.mxu0 0
        %4167 = vmatpush2.bf16.msra.mxu0 %v2884
        %4168 = vmatprep.subr.bf16.mxu0 0
        %4169 = vmatpush2.bf16.msra.mxu0 %v2883
        %4170 = vmatprep.subr.bf16.mxu0 0
        %4171 = vmatpush2.bf16.msra.mxu0 %v2882
        %4172 = vmatprep.subr.bf16.mxu0 0
        %4173 = vmatpush2.bf16.msra.mxu0 %v2881
        %4174 = vmatprep.subr.bf16.mxu0 0
        %4175 = vmatpush2.bf16.msra.mxu0 %v2880
        %4176 = vmatprep.subr.bf16.mxu0 0
        %4177 = vmatpush2.bf16.msra.mxu0 %v2879
        %4178 = vmatprep.mubr.bf16.mxu0 %v1566
        %4179 = vmatmul.mubr.bf16.gmra.mxu0 %v1565
        %v4180 = vpop.f32.mrf.mxu0
        %v4181 = vadd.f32 %v4084, %v4180
        %v4182 = vpop.f32.mrf.mxu0
        %v4183 = vpop.f32.mrf.mxu0
        %v4184 = vadd.f32 %v4087, %v4183
        %v4185 = vpop.f32.mrf.mxu0
        %4186 = vmatprep.mubr.bf16.mxu0 %v1590
        %4187 = vmatmul.mubr.bf16.gmra.mxu0 %v1589
        %v4188 = vpop.f32.mrf.mxu0
        %v4189 = vadd.f32 %v4092, %v4188
        %v4190 = vpop.f32.mrf.mxu0
        %v4191 = vpop.f32.mrf.mxu0
        %v4192 = vadd.f32 %v4095, %v4191
        %v4193 = vpop.f32.mrf.mxu0
        %4194 = vmatprep.mubr.bf16.mxu0 %v1614
        %4195 = vmatmul.mubr.bf16.gmra.mxu0 %v1613
        %v4196 = vpop.f32.mrf.mxu0
        %v4197 = vadd.f32 %v4100, %v4196
        %v4198 = vpop.f32.mrf.mxu0
        %v4199 = vpop.f32.mrf.mxu0
        %v4200 = vadd.f32 %v4103, %v4199
        %v4201 = vpop.f32.mrf.mxu0
        %4202 = vmatprep.mubr.bf16.mxu0 %v1638
        %4203 = vmatmul.mubr.bf16.gmra.mxu0 %v1637
        %v4204 = vpop.f32.mrf.mxu0
        %v4205 = vadd.f32 %v4108, %v4204
        %v4206 = vpop.f32.mrf.mxu0
        %v4207 = vpop.f32.mrf.mxu0
        %v4208 = vadd.f32 %v4111, %v4207
        %v4209 = vpop.f32.mrf.mxu0
        %4210 = vmatprep.mubr.bf16.mxu0 %v1662
        %4211 = vmatmul.mubr.bf16.gmra.mxu0 %v1661
        %v4212 = vpop.f32.mrf.mxu0
        %v4213 = vadd.f32 %v4116, %v4212
        %v4214 = vpop.f32.mrf.mxu0
        %v4215 = vpop.f32.mrf.mxu0
        %v4216 = vadd.f32 %v4119, %v4215
        %v4217 = vpop.f32.mrf.mxu0
        %4218 = vmatprep.mubr.bf16.mxu0 %v1686
        %4219 = vmatmul.mubr.bf16.gmra.mxu0 %v1685
        %v4220 = vpop.f32.mrf.mxu0
        %v4221 = vadd.f32 %v4124, %v4220
        %v4222 = vpop.f32.mrf.mxu0
        %v4223 = vpop.f32.mrf.mxu0
        %v4224 = vadd.f32 %v4127, %v4223
        %v4225 = vpop.f32.mrf.mxu0
        %4226 = vmatprep.mubr.bf16.mxu0 %v1710
        %4227 = vmatmul.mubr.bf16.gmra.mxu0 %v1709
        %v4228 = vpop.f32.mrf.mxu0
        %v4229 = vadd.f32 %v4132, %v4228
        %v4230 = vpop.f32.mrf.mxu0
        %v4231 = vpop.f32.mrf.mxu0
        %v4232 = vadd.f32 %v4135, %v4231
        %v4233 = vpop.f32.mrf.mxu0
        %4234 = vmatprep.mubr.bf16.mxu0 %v1734
        %4235 = vmatmul.mubr.bf16.gmra.mxu0 %v1733
        %v4236 = vpop.f32.mrf.mxu0
        %v4237 = vadd.f32 %v4140, %v4236
        %v4238 = vpop.f32.mrf.mxu0
        %v4239 = vpop.f32.mrf.mxu0
        %v4240 = vadd.f32 %v4143, %v4239
        %v4241 = vpop.f32.mrf.mxu0
        %4242 = vdwg.mxu0
        %v4243 = vmax.f32 %v4181, 0.0
        %v4244 = vmax.f32 %v4184, 0.0
        %v4245 = vmax.f32 %v4189, 0.0
        %v4246 = vmax.f32 %v4192, 0.0
        %v4247 = vmax.f32 %v4197, 0.0
        %v4248 = vmax.f32 %v4200, 0.0
        %v4249 = vmax.f32 %v4205, 0.0
        %v4250 = vmax.f32 %v4208, 0.0
        %v4251 = vmax.f32 %v4213, 0.0
        %v4252 = vmax.f32 %v4216, 0.0
        %v4253 = vmax.f32 %v4221, 0.0
        %v4254 = vmax.f32 %v4224, 0.0
        %v4255 = vmax.f32 %v4229, 0.0
        %v4256 = vmax.f32 %v4232, 0.0
        %v4257 = vmax.f32 %v4237, 0.0
        %v4258 = vmax.f32 %v4240, 0.0
        %v4259 = vpack.c.bf16 %v4244, %v4243
        %v4260 = vpack.c.bf16 %v4246, %v4245
        %v4261 = vpack.c.bf16 %v4248, %v4247
        %v4262 = vpack.c.bf16 %v4250, %v4249
        %v4263 = vpack.c.bf16 %v4252, %v4251
        %v4264 = vpack.c.bf16 %v4254, %v4253
        %v4265 = vpack.c.bf16 %v4256, %v4255
        %v4266 = vpack.c.bf16 %v4258, %v4257
        %v4267 = vld [vmem:[#allocation8] sm:$0xf]
        %v4268 = vld [vmem:[#allocation8 + $0x4] sm:$0xf]
        %v4269 = vld [vmem:[#allocation8 + $0x8] sm:$0xf]
        %v4270 = vld [vmem:[#allocation8 + $0xc] sm:$0xf]
        %v4271 = vld [vmem:[#allocation8 + $0x10] sm:$0xf]
        %v4272 = vld [vmem:[#allocation8 + $0x14] sm:$0xf]
        %v4273 = vld [vmem:[#allocation8 + $0x18] sm:$0xf]
        %v4274 = vld [vmem:[#allocation8 + $0x1c] sm:$0xf]
        %v4275 = vld [vmem:[#allocation8 + $0x20] sm:$0xf]
        %v4276 = vld [vmem:[#allocation8 + $0x24] sm:$0xf]
        %v4277 = vld [vmem:[#allocation8 + $0x28] sm:$0xf]
        %v4278 = vld [vmem:[#allocation8 + $0x2c] sm:$0xf]
        %v4279 = vld [vmem:[#allocation8 + $0x30] sm:$0xf]
        %v4280 = vld [vmem:[#allocation8 + $0x34] sm:$0xf]
        %v4281 = vld [vmem:[#allocation8 + $0x38] sm:$0xf]
        %v4282 = vld [vmem:[#allocation8 + $0x3c] sm:$0xf]
        %v4283 = vld [vmem:[#allocation10] sm:$0x1]
        %v4285 = vlaneseq
        %v4286 = vshrl.u32 %v4285, 7
        %v4287 = vsub.s32 0, %v4286
        %v4288 = vrot.slane %v4283, %v4287
        %v4306 = vunpack.c.l.b16 %v4267
        %v4307 = vunpack.c.l.b16 %v4268
        %v4308 = vunpack.c.l.b16 %v4269
        %v4309 = vunpack.c.l.b16 %v4270
        %v4310 = vunpack.c.l.b16 %v4271
        %v4311 = vunpack.c.l.b16 %v4272
        %v4312 = vunpack.c.l.b16 %v4273
        %v4313 = vunpack.c.l.b16 %v4274
        %v4314 = vunpack.c.l.b16 %v4275
        %v4315 = vunpack.c.l.b16 %v4276
        %v4316 = vunpack.c.l.b16 %v4277
        %v4317 = vunpack.c.l.b16 %v4278
        %v4318 = vunpack.c.l.b16 %v4279
        %v4319 = vunpack.c.l.b16 %v4280
        %v4320 = vunpack.c.l.b16 %v4281
        %v4321 = vunpack.c.l.b16 %v4282
        %v4322 = vpack.c.b16 %v4307, %v4306
        %v4323 = vpack.c.b16 %v4309, %v4308
        %v4324 = vpack.c.b16 %v4311, %v4310
        %v4325 = vpack.c.b16 %v4313, %v4312
        %v4326 = vpack.c.b16 %v4315, %v4314
        %v4327 = vpack.c.b16 %v4317, %v4316
        %v4328 = vpack.c.b16 %v4319, %v4318
        %v4329 = vpack.c.b16 %v4321, %v4320
        %4338 = vmatprep.subr.bf16.mxu0 0
        %4339 = vmatpush1.bf16.msra.mxu0 %v4329
        %4340 = vmatprep.subr.bf16.mxu0 0
        %4341 = vmatpush1.bf16.msra.mxu0 %v4328
        %4342 = vmatprep.subr.bf16.mxu0 0
        %4343 = vmatpush1.bf16.msra.mxu0 %v4327
        %4344 = vmatprep.subr.bf16.mxu0 0
        %4345 = vmatpush1.bf16.msra.mxu0 %v4326
        %4346 = vmatprep.subr.bf16.mxu0 0
        %4347 = vmatpush1.bf16.msra.mxu0 %v4325
        %4348 = vmatprep.subr.bf16.mxu0 0
        %4349 = vmatpush1.bf16.msra.mxu0 %v4324
        %4350 = vmatprep.subr.bf16.mxu0 0
        %4351 = vmatpush1.bf16.msra.mxu0 %v4323
        %4352 = vmatprep.subr.bf16.mxu0 0
        %4353 = vmatpush1.bf16.msra.mxu0 %v4322
        %4354 = vmatprep.subr.bf16.mxu0 0
        %4355 = vmatpush2.bf16.msra.mxu0 0
        %4356 = vmatprep.subr.bf16.mxu0 0
        %4357 = vmatpush2.bf16.msra.mxu0 0
        %4358 = vmatprep.subr.bf16.mxu0 0
        %4359 = vmatpush2.bf16.msra.mxu0 0
        %4360 = vmatprep.subr.bf16.mxu0 0
        %4361 = vmatpush2.bf16.msra.mxu0 0
        %4362 = vmatprep.subr.bf16.mxu0 0
        %4363 = vmatpush2.bf16.msra.mxu0 0
        %4364 = vmatprep.subr.bf16.mxu0 0
        %4365 = vmatpush2.bf16.msra.mxu0 0
        %4366 = vmatprep.subr.bf16.mxu0 0
        %4367 = vmatpush2.bf16.msra.mxu0 0
        %4368 = vmatprep.subr.bf16.mxu0 0
        %4369 = vmatpush2.bf16.msra.mxu0 0
        %4370 = vmatprep.mubr.bf16.mxu0 0
        %4371 = vmatmul.mubr.bf16.gmra.mxu0 %v4259
        %v4372 = vpop.f32.mrf.mxu0
        %v4373 = vadd.f32 %v4288, %v4372
        %v4374 = vpop.f32.mrf.mxu0
        %v4375 = vpop.f32.mrf.mxu0
        %v4376 = vadd.f32 %v4288, %v4375
        %v4377 = vpop.f32.mrf.mxu0
        %4378 = vmatprep.mubr.bf16.mxu0 0
        %4379 = vmatmul.mubr.bf16.gmra.mxu0 %v4260
        %v4380 = vpop.f32.mrf.mxu0
        %v4381 = vadd.f32 %v4288, %v4380
        %v4382 = vpop.f32.mrf.mxu0
        %v4383 = vpop.f32.mrf.mxu0
        %v4384 = vadd.f32 %v4288, %v4383
        %v4385 = vpop.f32.mrf.mxu0
        %4386 = vmatprep.mubr.bf16.mxu0 0
        %4387 = vmatmul.mubr.bf16.gmra.mxu0 %v4261
        %v4388 = vpop.f32.mrf.mxu0
        %v4389 = vadd.f32 %v4288, %v4388
        %v4390 = vpop.f32.mrf.mxu0
        %v4391 = vpop.f32.mrf.mxu0
        %v4392 = vadd.f32 %v4288, %v4391
        %v4393 = vpop.f32.mrf.mxu0
        %4394 = vmatprep.mubr.bf16.mxu0 0
        %4395 = vmatmul.mubr.bf16.gmra.mxu0 %v4262
        %v4396 = vpop.f32.mrf.mxu0
        %v4397 = vadd.f32 %v4288, %v4396
        %v4398 = vpop.f32.mrf.mxu0
        %v4399 = vpop.f32.mrf.mxu0
        %v4400 = vadd.f32 %v4288, %v4399
        %v4401 = vpop.f32.mrf.mxu0
        %4402 = vmatprep.mubr.bf16.mxu0 0
        %4403 = vmatmul.mubr.bf16.gmra.mxu0 %v4263
        %v4404 = vpop.f32.mrf.mxu0
        %v4405 = vadd.f32 %v4288, %v4404
        %v4406 = vpop.f32.mrf.mxu0
        %v4407 = vpop.f32.mrf.mxu0
        %v4408 = vadd.f32 %v4288, %v4407
        %v4409 = vpop.f32.mrf.mxu0
        %4410 = vmatprep.mubr.bf16.mxu0 0
        %4411 = vmatmul.mubr.bf16.gmra.mxu0 %v4264
        %v4412 = vpop.f32.mrf.mxu0
        %v4413 = vadd.f32 %v4288, %v4412
        %v4414 = vpop.f32.mrf.mxu0
        %v4415 = vpop.f32.mrf.mxu0
        %v4416 = vadd.f32 %v4288, %v4415
        %v4417 = vpop.f32.mrf.mxu0
        %4418 = vmatprep.mubr.bf16.mxu0 0
        %4419 = vmatmul.mubr.bf16.gmra.mxu0 %v4265
        %v4420 = vpop.f32.mrf.mxu0
        %v4421 = vadd.f32 %v4288, %v4420
        %v4422 = vpop.f32.mrf.mxu0
        %v4423 = vpop.f32.mrf.mxu0
        %v4424 = vadd.f32 %v4288, %v4423
        %v4425 = vpop.f32.mrf.mxu0
        %4426 = vmatprep.mubr.bf16.mxu0 0
        %4427 = vmatmul.mubr.bf16.gmra.mxu0 %v4266
        %v4428 = vpop.f32.mrf.mxu0
        %v4429 = vadd.f32 %v4288, %v4428
        %v4430 = vpop.f32.mrf.mxu0
        %v4431 = vpop.f32.mrf.mxu0
        %v4432 = vadd.f32 %v4288, %v4431
        %v4433 = vpop.f32.mrf.mxu0
        %4434 = vdwg.mxu0
        %v4435 = vadd.f32 %v4181, %v4373
        %v4436 = vadd.f32 %v4184, %v4376
        %v4437 = vadd.f32 %v4189, %v4381
        %v4438 = vadd.f32 %v4192, %v4384
        %v4439 = vadd.f32 %v4197, %v4389
        %v4440 = vadd.f32 %v4200, %v4392
        %v4441 = vadd.f32 %v4205, %v4397
        %v4442 = vadd.f32 %v4208, %v4400
        %v4443 = vadd.f32 %v4213, %v4405
        %v4444 = vadd.f32 %v4216, %v4408
        %v4445 = vadd.f32 %v4221, %v4413
        %v4446 = vadd.f32 %v4224, %v4416
        %v4447 = vadd.f32 %v4229, %v4421
        %v4448 = vadd.f32 %v4232, %v4424
        %v4449 = vadd.f32 %v4237, %v4429
        %v4450 = vadd.f32 %v4240, %v4432
        %v4451 = vmax.f32 %v4435, 0.0
        %v4452 = vmax.f32 %v4436, 0.0
        %v4453 = vmax.f32 %v4437, 0.0
        %v4454 = vmax.f32 %v4438, 0.0
        %v4455 = vmax.f32 %v4439, 0.0
        %v4456 = vmax.f32 %v4440, 0.0
        %v4457 = vmax.f32 %v4441, 0.0
        %v4458 = vmax.f32 %v4442, 0.0
        %v4459 = vmax.f32 %v4443, 0.0
        %v4460 = vmax.f32 %v4444, 0.0
        %v4461 = vmax.f32 %v4445, 0.0
        %v4462 = vmax.f32 %v4446, 0.0
        %v4463 = vmax.f32 %v4447, 0.0
        %v4464 = vmax.f32 %v4448, 0.0
        %v4465 = vmax.f32 %v4449, 0.0
        %v4466 = vmax.f32 %v4450, 0.0
        %v4467 = vpack.c.bf16 %v4452, %v4451
        %v4468 = vpack.c.bf16 %v4454, %v4453
        %v4469 = vpack.c.bf16 %v4456, %v4455
        %v4470 = vpack.c.bf16 %v4458, %v4457
        %v4471 = vpack.c.bf16 %v4460, %v4459
        %v4472 = vpack.c.bf16 %v4462, %v4461
        %v4473 = vpack.c.bf16 %v4464, %v4463
        %v4474 = vpack.c.bf16 %v4466, %v4465
        %s4475 = scalar_lea.vmem [#allocation8], 64
        %v4476 = vld [vmem:[%s4475] sm:$0xf]
        %v4477 = vld [vmem:[%s4475 + $0x4] sm:$0xf]
        %v4478 = vld [vmem:[%s4475 + $0x8] sm:$0xf]
        %v4479 = vld [vmem:[%s4475 + $0xc] sm:$0xf]
        %v4480 = vld [vmem:[%s4475 + $0x10] sm:$0xf]
        %v4481 = vld [vmem:[%s4475 + $0x14] sm:$0xf]
        %v4482 = vld [vmem:[%s4475 + $0x18] sm:$0xf]
        %v4483 = vld [vmem:[%s4475 + $0x1c] sm:$0xf]
        %v4484 = vld [vmem:[%s4475 + $0x20] sm:$0xf]
        %v4485 = vld [vmem:[%s4475 + $0x24] sm:$0xf]
        %v4486 = vld [vmem:[%s4475 + $0x28] sm:$0xf]
        %v4487 = vld [vmem:[%s4475 + $0x2c] sm:$0xf]
        %v4488 = vld [vmem:[%s4475 + $0x30] sm:$0xf]
        %v4489 = vld [vmem:[%s4475 + $0x34] sm:$0xf]
        %v4490 = vld [vmem:[%s4475 + $0x38] sm:$0xf]
        %v4491 = vld [vmem:[%s4475 + $0x3c] sm:$0xf]
        %s4492 = scalar_lea.vmem [#allocation10], 1
        %v4493 = vld [vmem:[%s4492] sm:$0x1]
        %v4495 = vlaneseq
        %v4496 = vshrl.u32 %v4495, 7
        %v4497 = vsub.s32 0, %v4496
        %v4498 = vrot.slane %v4493, %v4497
        %v4516 = vunpack.c.l.b16 %v4476
        %v4517 = vunpack.c.l.b16 %v4477
        %v4518 = vunpack.c.l.b16 %v4478
        %v4519 = vunpack.c.l.b16 %v4479
        %v4520 = vunpack.c.l.b16 %v4480
        %v4521 = vunpack.c.l.b16 %v4481
        %v4522 = vunpack.c.l.b16 %v4482
        %v4523 = vunpack.c.l.b16 %v4483
        %v4524 = vunpack.c.l.b16 %v4484
        %v4525 = vunpack.c.l.b16 %v4485
        %v4526 = vunpack.c.l.b16 %v4486
        %v4527 = vunpack.c.l.b16 %v4487
        %v4528 = vunpack.c.l.b16 %v4488
        %v4529 = vunpack.c.l.b16 %v4489
        %v4530 = vunpack.c.l.b16 %v4490
        %v4531 = vunpack.c.l.b16 %v4491
        %v4532 = vpack.c.b16 %v4517, %v4516
        %v4533 = vpack.c.b16 %v4519, %v4518
        %v4534 = vpack.c.b16 %v4521, %v4520
        %v4535 = vpack.c.b16 %v4523, %v4522
        %v4536 = vpack.c.b16 %v4525, %v4524
        %v4537 = vpack.c.b16 %v4527, %v4526
        %v4538 = vpack.c.b16 %v4529, %v4528
        %v4539 = vpack.c.b16 %v4531, %v4530
        %4548 = vmatprep.subr.bf16.mxu0 0
        %4549 = vmatpush1.bf16.msra.mxu0 %v4539
        %4550 = vmatprep.subr.bf16.mxu0 0
        %4551 = vmatpush1.bf16.msra.mxu0 %v4538
        %4552 = vmatprep.subr.bf16.mxu0 0
        %4553 = vmatpush1.bf16.msra.mxu0 %v4537
        %4554 = vmatprep.subr.bf16.mxu0 0
        %4555 = vmatpush1.bf16.msra.mxu0 %v4536
        %4556 = vmatprep.subr.bf16.mxu0 0
        %4557 = vmatpush1.bf16.msra.mxu0 %v4535
        %4558 = vmatprep.subr.bf16.mxu0 0
        %4559 = vmatpush1.bf16.msra.mxu0 %v4534
        %4560 = vmatprep.subr.bf16.mxu0 0
        %4561 = vmatpush1.bf16.msra.mxu0 %v4533
        %4562 = vmatprep.subr.bf16.mxu0 0
        %4563 = vmatpush1.bf16.msra.mxu0 %v4532
        %4564 = vmatprep.subr.bf16.mxu0 0
        %4565 = vmatpush2.bf16.msra.mxu0 0
        %4566 = vmatprep.subr.bf16.mxu0 0
        %4567 = vmatpush2.bf16.msra.mxu0 0
        %4568 = vmatprep.subr.bf16.mxu0 0
        %4569 = vmatpush2.bf16.msra.mxu0 0
        %4570 = vmatprep.subr.bf16.mxu0 0
        %4571 = vmatpush2.bf16.msra.mxu0 0
        %4572 = vmatprep.subr.bf16.mxu0 0
        %4573 = vmatpush2.bf16.msra.mxu0 0
        %4574 = vmatprep.subr.bf16.mxu0 0
        %4575 = vmatpush2.bf16.msra.mxu0 0
        %4576 = vmatprep.subr.bf16.mxu0 0
        %4577 = vmatpush2.bf16.msra.mxu0 0
        %4578 = vmatprep.subr.bf16.mxu0 0
        %4579 = vmatpush2.bf16.msra.mxu0 0
        %4580 = vmatprep.mubr.bf16.mxu0 0
        %4581 = vmatmul.mubr.bf16.gmra.mxu0 %v4467
        %v4582 = vpop.f32.mrf.mxu0
        %v4583 = vadd.f32 %v4498, %v4582
        %v4584 = vpop.f32.mrf.mxu0
        %v4585 = vpop.f32.mrf.mxu0
        %v4586 = vadd.f32 %v4498, %v4585
        %v4587 = vpop.f32.mrf.mxu0
        %4588 = vmatprep.mubr.bf16.mxu0 0
        %4589 = vmatmul.mubr.bf16.gmra.mxu0 %v4468
        %v4590 = vpop.f32.mrf.mxu0
        %v4591 = vadd.f32 %v4498, %v4590
        %v4592 = vpop.f32.mrf.mxu0
        %v4593 = vpop.f32.mrf.mxu0
        %v4594 = vadd.f32 %v4498, %v4593
        %v4595 = vpop.f32.mrf.mxu0
        %4596 = vmatprep.mubr.bf16.mxu0 0
        %4597 = vmatmul.mubr.bf16.gmra.mxu0 %v4469
        %v4598 = vpop.f32.mrf.mxu0
        %v4599 = vadd.f32 %v4498, %v4598
        %v4600 = vpop.f32.mrf.mxu0
        %v4601 = vpop.f32.mrf.mxu0
        %v4602 = vadd.f32 %v4498, %v4601
        %v4603 = vpop.f32.mrf.mxu0
        %4604 = vmatprep.mubr.bf16.mxu0 0
        %4605 = vmatmul.mubr.bf16.gmra.mxu0 %v4470
        %v4606 = vpop.f32.mrf.mxu0
        %v4607 = vadd.f32 %v4498, %v4606
        %v4608 = vpop.f32.mrf.mxu0
        %v4609 = vpop.f32.mrf.mxu0
        %v4610 = vadd.f32 %v4498, %v4609
        %v4611 = vpop.f32.mrf.mxu0
        %4612 = vmatprep.mubr.bf16.mxu0 0
        %4613 = vmatmul.mubr.bf16.gmra.mxu0 %v4471
        %v4614 = vpop.f32.mrf.mxu0
        %v4615 = vadd.f32 %v4498, %v4614
        %v4616 = vpop.f32.mrf.mxu0
        %v4617 = vpop.f32.mrf.mxu0
        %v4618 = vadd.f32 %v4498, %v4617
        %v4619 = vpop.f32.mrf.mxu0
        %4620 = vmatprep.mubr.bf16.mxu0 0
        %4621 = vmatmul.mubr.bf16.gmra.mxu0 %v4472
        %v4622 = vpop.f32.mrf.mxu0
        %v4623 = vadd.f32 %v4498, %v4622
        %v4624 = vpop.f32.mrf.mxu0
        %v4625 = vpop.f32.mrf.mxu0
        %v4626 = vadd.f32 %v4498, %v4625
        %v4627 = vpop.f32.mrf.mxu0
        %4628 = vmatprep.mubr.bf16.mxu0 0
        %4629 = vmatmul.mubr.bf16.gmra.mxu0 %v4473
        %v4630 = vpop.f32.mrf.mxu0
        %v4631 = vadd.f32 %v4498, %v4630
        %v4632 = vpop.f32.mrf.mxu0
        %v4633 = vpop.f32.mrf.mxu0
        %v4634 = vadd.f32 %v4498, %v4633
        %v4635 = vpop.f32.mrf.mxu0
        %4636 = vmatprep.mubr.bf16.mxu0 0
        %4637 = vmatmul.mubr.bf16.gmra.mxu0 %v4474
        %v4638 = vpop.f32.mrf.mxu0
        %v4639 = vadd.f32 %v4498, %v4638
        %v4640 = vpop.f32.mrf.mxu0
        %v4641 = vpop.f32.mrf.mxu0
        %v4642 = vadd.f32 %v4498, %v4641
        %v4643 = vpop.f32.mrf.mxu0
        %4644 = vdwg.mxu0
        %v4645 = vadd.f32 %v4435, %v4583
        %v4646 = vadd.f32 %v4436, %v4586
        %v4647 = vadd.f32 %v4437, %v4591
        %v4648 = vadd.f32 %v4438, %v4594
        %v4649 = vadd.f32 %v4439, %v4599
        %v4650 = vadd.f32 %v4440, %v4602
        %v4651 = vadd.f32 %v4441, %v4607
        %v4652 = vadd.f32 %v4442, %v4610
        %v4653 = vadd.f32 %v4443, %v4615
        %v4654 = vadd.f32 %v4444, %v4618
        %v4655 = vadd.f32 %v4445, %v4623
        %v4656 = vadd.f32 %v4446, %v4626
        %v4657 = vadd.f32 %v4447, %v4631
        %v4658 = vadd.f32 %v4448, %v4634
        %v4659 = vadd.f32 %v4449, %v4639
        %v4660 = vadd.f32 %v4450, %v4642
        %v4661 = vmax.f32 %v4645, 0.0
        %v4662 = vmax.f32 %v4646, 0.0
        %v4663 = vmax.f32 %v4647, 0.0
        %v4664 = vmax.f32 %v4648, 0.0
        %v4665 = vmax.f32 %v4649, 0.0
        %v4666 = vmax.f32 %v4650, 0.0
        %v4667 = vmax.f32 %v4651, 0.0
        %v4668 = vmax.f32 %v4652, 0.0
        %v4669 = vmax.f32 %v4653, 0.0
        %v4670 = vmax.f32 %v4654, 0.0
        %v4671 = vmax.f32 %v4655, 0.0
        %v4672 = vmax.f32 %v4656, 0.0
        %v4673 = vmax.f32 %v4657, 0.0
        %v4674 = vmax.f32 %v4658, 0.0
        %v4675 = vmax.f32 %v4659, 0.0
        %v4676 = vmax.f32 %v4660, 0.0
        %v4677 = vpack.c.bf16 %v4662, %v4661
        %v4678 = vpack.c.bf16 %v4664, %v4663
        %v4679 = vpack.c.bf16 %v4666, %v4665
        %v4680 = vpack.c.bf16 %v4668, %v4667
        %v4681 = vpack.c.bf16 %v4670, %v4669
        %v4682 = vpack.c.bf16 %v4672, %v4671
        %v4683 = vpack.c.bf16 %v4674, %v4673
        %v4684 = vpack.c.bf16 %v4676, %v4675
        %s4685 = scalar_lea.vmem [#allocation8], 128
        %v4686 = vld [vmem:[%s4685] sm:$0xf]
        %v4687 = vld [vmem:[%s4685 + $0x4] sm:$0xf]
        %v4688 = vld [vmem:[%s4685 + $0x8] sm:$0xf]
        %v4689 = vld [vmem:[%s4685 + $0xc] sm:$0xf]
        %v4690 = vld [vmem:[%s4685 + $0x10] sm:$0xf]
        %v4691 = vld [vmem:[%s4685 + $0x14] sm:$0xf]
        %v4692 = vld [vmem:[%s4685 + $0x18] sm:$0xf]
        %v4693 = vld [vmem:[%s4685 + $0x1c] sm:$0xf]
        %v4694 = vld [vmem:[%s4685 + $0x20] sm:$0xf]
        %v4695 = vld [vmem:[%s4685 + $0x24] sm:$0xf]
        %v4696 = vld [vmem:[%s4685 + $0x28] sm:$0xf]
        %v4697 = vld [vmem:[%s4685 + $0x2c] sm:$0xf]
        %v4698 = vld [vmem:[%s4685 + $0x30] sm:$0xf]
        %v4699 = vld [vmem:[%s4685 + $0x34] sm:$0xf]
        %v4700 = vld [vmem:[%s4685 + $0x38] sm:$0xf]
        %v4701 = vld [vmem:[%s4685 + $0x3c] sm:$0xf]
        %s4702 = scalar_lea.vmem [#allocation10], 2
        %v4703 = vld [vmem:[%s4702] sm:$0x1]
        %v4705 = vlaneseq
        %v4706 = vshrl.u32 %v4705, 7
        %v4707 = vsub.s32 0, %v4706
        %v4708 = vrot.slane %v4703, %v4707
        %v4726 = vunpack.c.l.b16 %v4686
        %v4727 = vunpack.c.l.b16 %v4687
        %v4728 = vunpack.c.l.b16 %v4688
        %v4729 = vunpack.c.l.b16 %v4689
        %v4730 = vunpack.c.l.b16 %v4690
        %v4731 = vunpack.c.l.b16 %v4691
        %v4732 = vunpack.c.l.b16 %v4692
        %v4733 = vunpack.c.l.b16 %v4693
        %v4734 = vunpack.c.l.b16 %v4694
        %v4735 = vunpack.c.l.b16 %v4695
        %v4736 = vunpack.c.l.b16 %v4696
        %v4737 = vunpack.c.l.b16 %v4697
        %v4738 = vunpack.c.l.b16 %v4698
        %v4739 = vunpack.c.l.b16 %v4699
        %v4740 = vunpack.c.l.b16 %v4700
        %v4741 = vunpack.c.l.b16 %v4701
        %v4742 = vpack.c.b16 %v4727, %v4726
        %v4743 = vpack.c.b16 %v4729, %v4728
        %v4744 = vpack.c.b16 %v4731, %v4730
        %v4745 = vpack.c.b16 %v4733, %v4732
        %v4746 = vpack.c.b16 %v4735, %v4734
        %v4747 = vpack.c.b16 %v4737, %v4736
        %v4748 = vpack.c.b16 %v4739, %v4738
        %v4749 = vpack.c.b16 %v4741, %v4740
        %4758 = vmatprep.subr.bf16.mxu0 0
        %4759 = vmatpush1.bf16.msra.mxu0 %v4749
        %4760 = vmatprep.subr.bf16.mxu0 0
        %4761 = vmatpush1.bf16.msra.mxu0 %v4748
        %4762 = vmatprep.subr.bf16.mxu0 0
        %4763 = vmatpush1.bf16.msra.mxu0 %v4747
        %4764 = vmatprep.subr.bf16.mxu0 0
        %4765 = vmatpush1.bf16.msra.mxu0 %v4746
        %4766 = vmatprep.subr.bf16.mxu0 0
        %4767 = vmatpush1.bf16.msra.mxu0 %v4745
        %4768 = vmatprep.subr.bf16.mxu0 0
        %4769 = vmatpush1.bf16.msra.mxu0 %v4744
        %4770 = vmatprep.subr.bf16.mxu0 0
        %4771 = vmatpush1.bf16.msra.mxu0 %v4743
        %4772 = vmatprep.subr.bf16.mxu0 0
        %4773 = vmatpush1.bf16.msra.mxu0 %v4742
        %4774 = vmatprep.subr.bf16.mxu0 0
        %4775 = vmatpush2.bf16.msra.mxu0 0
        %4776 = vmatprep.subr.bf16.mxu0 0
        %4777 = vmatpush2.bf16.msra.mxu0 0
        %4778 = vmatprep.subr.bf16.mxu0 0
        %4779 = vmatpush2.bf16.msra.mxu0 0
        %4780 = vmatprep.subr.bf16.mxu0 0
        %4781 = vmatpush2.bf16.msra.mxu0 0
        %4782 = vmatprep.subr.bf16.mxu0 0
        %4783 = vmatpush2.bf16.msra.mxu0 0
        %4784 = vmatprep.subr.bf16.mxu0 0
        %4785 = vmatpush2.bf16.msra.mxu0 0
        %4786 = vmatprep.subr.bf16.mxu0 0
        %4787 = vmatpush2.bf16.msra.mxu0 0
        %4788 = vmatprep.subr.bf16.mxu0 0
        %4789 = vmatpush2.bf16.msra.mxu0 0
        %4790 = vmatprep.mubr.bf16.mxu0 0
        %4791 = vmatmul.mubr.bf16.gmra.mxu0 %v4677
        %v4792 = vpop.f32.mrf.mxu0
        %v4793 = vadd.f32 %v4708, %v4792
        %v4794 = vpop.f32.mrf.mxu0
        %v4795 = vpop.f32.mrf.mxu0
        %v4796 = vadd.f32 %v4708, %v4795
        %v4797 = vpop.f32.mrf.mxu0
        %4798 = vmatprep.mubr.bf16.mxu0 0
        %4799 = vmatmul.mubr.bf16.gmra.mxu0 %v4678
        %v4800 = vpop.f32.mrf.mxu0
        %v4801 = vadd.f32 %v4708, %v4800
        %v4802 = vpop.f32.mrf.mxu0
        %v4803 = vpop.f32.mrf.mxu0
        %v4804 = vadd.f32 %v4708, %v4803
        %v4805 = vpop.f32.mrf.mxu0
        %4806 = vmatprep.mubr.bf16.mxu0 0
        %4807 = vmatmul.mubr.bf16.gmra.mxu0 %v4679
        %v4808 = vpop.f32.mrf.mxu0
        %v4809 = vadd.f32 %v4708, %v4808
        %v4810 = vpop.f32.mrf.mxu0
        %v4811 = vpop.f32.mrf.mxu0
        %v4812 = vadd.f32 %v4708, %v4811
        %v4813 = vpop.f32.mrf.mxu0
        %4814 = vmatprep.mubr.bf16.mxu0 0
        %4815 = vmatmul.mubr.bf16.gmra.mxu0 %v4680
        %v4816 = vpop.f32.mrf.mxu0
        %v4817 = vadd.f32 %v4708, %v4816
        %v4818 = vpop.f32.mrf.mxu0
        %v4819 = vpop.f32.mrf.mxu0
        %v4820 = vadd.f32 %v4708, %v4819
        %v4821 = vpop.f32.mrf.mxu0
        %4822 = vmatprep.mubr.bf16.mxu0 0
        %4823 = vmatmul.mubr.bf16.gmra.mxu0 %v4681
        %v4824 = vpop.f32.mrf.mxu0
        %v4825 = vadd.f32 %v4708, %v4824
        %v4826 = vpop.f32.mrf.mxu0
        %v4827 = vpop.f32.mrf.mxu0
        %v4828 = vadd.f32 %v4708, %v4827
        %v4829 = vpop.f32.mrf.mxu0
        %4830 = vmatprep.mubr.bf16.mxu0 0
        %4831 = vmatmul.mubr.bf16.gmra.mxu0 %v4682
        %v4832 = vpop.f32.mrf.mxu0
        %v4833 = vadd.f32 %v4708, %v4832
        %v4834 = vpop.f32.mrf.mxu0
        %v4835 = vpop.f32.mrf.mxu0
        %v4836 = vadd.f32 %v4708, %v4835
        %v4837 = vpop.f32.mrf.mxu0
        %4838 = vmatprep.mubr.bf16.mxu0 0
        %4839 = vmatmul.mubr.bf16.gmra.mxu0 %v4683
        %v4840 = vpop.f32.mrf.mxu0
        %v4841 = vadd.f32 %v4708, %v4840
        %v4842 = vpop.f32.mrf.mxu0
        %v4843 = vpop.f32.mrf.mxu0
        %v4844 = vadd.f32 %v4708, %v4843
        %v4845 = vpop.f32.mrf.mxu0
        %4846 = vmatprep.mubr.bf16.mxu0 0
        %4847 = vmatmul.mubr.bf16.gmra.mxu0 %v4684
        %v4848 = vpop.f32.mrf.mxu0
        %v4849 = vadd.f32 %v4708, %v4848
        %v4850 = vpop.f32.mrf.mxu0
        %v4851 = vpop.f32.mrf.mxu0
        %v4852 = vadd.f32 %v4708, %v4851
        %v4853 = vpop.f32.mrf.mxu0
        %4854 = vdwg.mxu0
        %v4855 = vadd.f32 %v4645, %v4793
        %v4856 = vadd.f32 %v4646, %v4796
        %v4857 = vadd.f32 %v4647, %v4801
        %v4858 = vadd.f32 %v4648, %v4804
        %v4859 = vadd.f32 %v4649, %v4809
        %v4860 = vadd.f32 %v4650, %v4812
        %v4861 = vadd.f32 %v4651, %v4817
        %v4862 = vadd.f32 %v4652, %v4820
        %v4863 = vadd.f32 %v4653, %v4825
        %v4864 = vadd.f32 %v4654, %v4828
        %v4865 = vadd.f32 %v4655, %v4833
        %v4866 = vadd.f32 %v4656, %v4836
        %v4867 = vadd.f32 %v4657, %v4841
        %v4868 = vadd.f32 %v4658, %v4844
        %v4869 = vadd.f32 %v4659, %v4849
        %v4870 = vadd.f32 %v4660, %v4852
        %v4871 = vmax.f32 %v4855, 0.0
        %v4872 = vmax.f32 %v4856, 0.0
        %v4873 = vmax.f32 %v4857, 0.0
        %v4874 = vmax.f32 %v4858, 0.0
        %v4875 = vmax.f32 %v4859, 0.0
        %v4876 = vmax.f32 %v4860, 0.0
        %v4877 = vmax.f32 %v4861, 0.0
        %v4878 = vmax.f32 %v4862, 0.0
        %v4879 = vmax.f32 %v4863, 0.0
        %v4880 = vmax.f32 %v4864, 0.0
        %v4881 = vmax.f32 %v4865, 0.0
        %v4882 = vmax.f32 %v4866, 0.0
        %v4883 = vmax.f32 %v4867, 0.0
        %v4884 = vmax.f32 %v4868, 0.0
        %v4885 = vmax.f32 %v4869, 0.0
        %v4886 = vmax.f32 %v4870, 0.0
        %v4887 = vpack.c.bf16 %v4872, %v4871
        %v4888 = vpack.c.bf16 %v4874, %v4873
        %v4889 = vpack.c.bf16 %v4876, %v4875
        %v4890 = vpack.c.bf16 %v4878, %v4877
        %v4891 = vpack.c.bf16 %v4880, %v4879
        %v4892 = vpack.c.bf16 %v4882, %v4881
        %v4893 = vpack.c.bf16 %v4884, %v4883
        %v4894 = vpack.c.bf16 %v4886, %v4885
        %s4895 = scalar_lea.vmem [#allocation8], 192
        %v4896 = vld [vmem:[%s4895] sm:$0xf]
        %v4897 = vld [vmem:[%s4895 + $0x4] sm:$0xf]
        %v4898 = vld [vmem:[%s4895 + $0x8] sm:$0xf]
        %v4899 = vld [vmem:[%s4895 + $0xc] sm:$0xf]
        %v4900 = vld [vmem:[%s4895 + $0x10] sm:$0xf]
        %v4901 = vld [vmem:[%s4895 + $0x14] sm:$0xf]
        %v4902 = vld [vmem:[%s4895 + $0x18] sm:$0xf]
        %v4903 = vld [vmem:[%s4895 + $0x1c] sm:$0xf]
        %v4904 = vld [vmem:[%s4895 + $0x20] sm:$0xf]
        %v4905 = vld [vmem:[%s4895 + $0x24] sm:$0xf]
        %v4906 = vld [vmem:[%s4895 + $0x28] sm:$0xf]
        %v4907 = vld [vmem:[%s4895 + $0x2c] sm:$0xf]
        %v4908 = vld [vmem:[%s4895 + $0x30] sm:$0xf]
        %v4909 = vld [vmem:[%s4895 + $0x34] sm:$0xf]
        %v4910 = vld [vmem:[%s4895 + $0x38] sm:$0xf]
        %v4911 = vld [vmem:[%s4895 + $0x3c] sm:$0xf]
        %s4912 = scalar_lea.vmem [#allocation10], 3
        %v4913 = vld [vmem:[%s4912] sm:$0x1]
        %v4915 = vlaneseq
        %v4916 = vshrl.u32 %v4915, 7
        %v4917 = vsub.s32 0, %v4916
        %v4918 = vrot.slane %v4913, %v4917
        %v4936 = vunpack.c.l.b16 %v4896
        %v4937 = vunpack.c.l.b16 %v4897
        %v4938 = vunpack.c.l.b16 %v4898
        %v4939 = vunpack.c.l.b16 %v4899
        %v4940 = vunpack.c.l.b16 %v4900
        %v4941 = vunpack.c.l.b16 %v4901
        %v4942 = vunpack.c.l.b16 %v4902
        %v4943 = vunpack.c.l.b16 %v4903
        %v4944 = vunpack.c.l.b16 %v4904
        %v4945 = vunpack.c.l.b16 %v4905
        %v4946 = vunpack.c.l.b16 %v4906
        %v4947 = vunpack.c.l.b16 %v4907
        %v4948 = vunpack.c.l.b16 %v4908
        %v4949 = vunpack.c.l.b16 %v4909
        %v4950 = vunpack.c.l.b16 %v4910
        %v4951 = vunpack.c.l.b16 %v4911
        %v4952 = vpack.c.b16 %v4937, %v4936
        %v4953 = vpack.c.b16 %v4939, %v4938
        %v4954 = vpack.c.b16 %v4941, %v4940
        %v4955 = vpack.c.b16 %v4943, %v4942
        %v4956 = vpack.c.b16 %v4945, %v4944
        %v4957 = vpack.c.b16 %v4947, %v4946
        %v4958 = vpack.c.b16 %v4949, %v4948
        %v4959 = vpack.c.b16 %v4951, %v4950
        %4968 = vmatprep.subr.bf16.mxu0 0
        %4969 = vmatpush1.bf16.msra.mxu0 %v4959
        %4970 = vmatprep.subr.bf16.mxu0 0
        %4971 = vmatpush1.bf16.msra.mxu0 %v4958
        %4972 = vmatprep.subr.bf16.mxu0 0
        %4973 = vmatpush1.bf16.msra.mxu0 %v4957
        %4974 = vmatprep.subr.bf16.mxu0 0
        %4975 = vmatpush1.bf16.msra.mxu0 %v4956
        %4976 = vmatprep.subr.bf16.mxu0 0
        %4977 = vmatpush1.bf16.msra.mxu0 %v4955
        %4978 = vmatprep.subr.bf16.mxu0 0
        %4979 = vmatpush1.bf16.msra.mxu0 %v4954
        %4980 = vmatprep.subr.bf16.mxu0 0
        %4981 = vmatpush1.bf16.msra.mxu0 %v4953
        %4982 = vmatprep.subr.bf16.mxu0 0
        %4983 = vmatpush1.bf16.msra.mxu0 %v4952
        %4984 = vmatprep.subr.bf16.mxu0 0
        %4985 = vmatpush2.bf16.msra.mxu0 0
        %4986 = vmatprep.subr.bf16.mxu0 0
        %4987 = vmatpush2.bf16.msra.mxu0 0
        %4988 = vmatprep.subr.bf16.mxu0 0
        %4989 = vmatpush2.bf16.msra.mxu0 0
        %4990 = vmatprep.subr.bf16.mxu0 0
        %4991 = vmatpush2.bf16.msra.mxu0 0
        %4992 = vmatprep.subr.bf16.mxu0 0
        %4993 = vmatpush2.bf16.msra.mxu0 0
        %4994 = vmatprep.subr.bf16.mxu0 0
        %4995 = vmatpush2.bf16.msra.mxu0 0
        %4996 = vmatprep.subr.bf16.mxu0 0
        %4997 = vmatpush2.bf16.msra.mxu0 0
        %4998 = vmatprep.subr.bf16.mxu0 0
        %4999 = vmatpush2.bf16.msra.mxu0 0
        %5000 = vmatprep.mubr.bf16.mxu0 0
        %5001 = vmatmul.mubr.bf16.gmra.mxu0 %v4887
        %v5002 = vpop.f32.mrf.mxu0
        %v5003 = vadd.f32 %v4918, %v5002
        %v5004 = vpop.f32.mrf.mxu0
        %v5005 = vpop.f32.mrf.mxu0
        %v5006 = vadd.f32 %v4918, %v5005
        %v5007 = vpop.f32.mrf.mxu0
        %5008 = vmatprep.mubr.bf16.mxu0 0
        %5009 = vmatmul.mubr.bf16.gmra.mxu0 %v4888
        %v5010 = vpop.f32.mrf.mxu0
        %v5011 = vadd.f32 %v4918, %v5010
        %v5012 = vpop.f32.mrf.mxu0
        %v5013 = vpop.f32.mrf.mxu0
        %v5014 = vadd.f32 %v4918, %v5013
        %v5015 = vpop.f32.mrf.mxu0
        %5016 = vmatprep.mubr.bf16.mxu0 0
        %5017 = vmatmul.mubr.bf16.gmra.mxu0 %v4889
        %v5018 = vpop.f32.mrf.mxu0
        %v5019 = vadd.f32 %v4918, %v5018
        %v5020 = vpop.f32.mrf.mxu0
        %v5021 = vpop.f32.mrf.mxu0
        %v5022 = vadd.f32 %v4918, %v5021
        %v5023 = vpop.f32.mrf.mxu0
        %5024 = vmatprep.mubr.bf16.mxu0 0
        %5025 = vmatmul.mubr.bf16.gmra.mxu0 %v4890
        %v5026 = vpop.f32.mrf.mxu0
        %v5027 = vadd.f32 %v4918, %v5026
        %v5028 = vpop.f32.mrf.mxu0
        %v5029 = vpop.f32.mrf.mxu0
        %v5030 = vadd.f32 %v4918, %v5029
        %v5031 = vpop.f32.mrf.mxu0
        %5032 = vmatprep.mubr.bf16.mxu0 0
        %5033 = vmatmul.mubr.bf16.gmra.mxu0 %v4891
        %v5034 = vpop.f32.mrf.mxu0
        %v5035 = vadd.f32 %v4918, %v5034
        %v5036 = vpop.f32.mrf.mxu0
        %v5037 = vpop.f32.mrf.mxu0
        %v5038 = vadd.f32 %v4918, %v5037
        %v5039 = vpop.f32.mrf.mxu0
        %5040 = vmatprep.mubr.bf16.mxu0 0
        %5041 = vmatmul.mubr.bf16.gmra.mxu0 %v4892
        %v5042 = vpop.f32.mrf.mxu0
        %v5043 = vadd.f32 %v4918, %v5042
        %v5044 = vpop.f32.mrf.mxu0
        %v5045 = vpop.f32.mrf.mxu0
        %v5046 = vadd.f32 %v4918, %v5045
        %v5047 = vpop.f32.mrf.mxu0
        %5048 = vmatprep.mubr.bf16.mxu0 0
        %5049 = vmatmul.mubr.bf16.gmra.mxu0 %v4893
        %v5050 = vpop.f32.mrf.mxu0
        %v5051 = vadd.f32 %v4918, %v5050
        %v5052 = vpop.f32.mrf.mxu0
        %v5053 = vpop.f32.mrf.mxu0
        %v5054 = vadd.f32 %v4918, %v5053
        %v5055 = vpop.f32.mrf.mxu0
        %5056 = vmatprep.mubr.bf16.mxu0 0
        %5057 = vmatmul.mubr.bf16.gmra.mxu0 %v4894
        %v5058 = vpop.f32.mrf.mxu0
        %v5059 = vadd.f32 %v4918, %v5058
        %v5060 = vpop.f32.mrf.mxu0
        %v5061 = vpop.f32.mrf.mxu0
        %v5062 = vadd.f32 %v4918, %v5061
        %v5063 = vpop.f32.mrf.mxu0
        %5064 = vdwg.mxu0
        %v5065 = vadd.f32 %v4855, %v5003
        %v5066 = vadd.f32 %v4856, %v5006
        %v5067 = vadd.f32 %v4857, %v5011
        %v5068 = vadd.f32 %v4858, %v5014
        %v5069 = vadd.f32 %v4859, %v5019
        %v5070 = vadd.f32 %v4860, %v5022
        %v5071 = vadd.f32 %v4861, %v5027
        %v5072 = vadd.f32 %v4862, %v5030
        %v5073 = vadd.f32 %v4863, %v5035
        %v5074 = vadd.f32 %v4864, %v5038
        %v5075 = vadd.f32 %v4865, %v5043
        %v5076 = vadd.f32 %v4866, %v5046
        %v5077 = vadd.f32 %v4867, %v5051
        %v5078 = vadd.f32 %v4868, %v5054
        %v5079 = vadd.f32 %v4869, %v5059
        %v5080 = vadd.f32 %v4870, %v5062
        %v5081 = vpack.c.bf16 %v5066, %v5065
        %v5082 = vpack.c.bf16 %v5068, %v5067
        %v5083 = vpack.c.bf16 %v5070, %v5069
        %v5084 = vpack.c.bf16 %v5072, %v5071
        %v5085 = vpack.c.bf16 %v5074, %v5073
        %v5086 = vpack.c.bf16 %v5076, %v5075
        %v5087 = vpack.c.bf16 %v5078, %v5077
        %v5088 = vpack.c.bf16 %v5080, %v5079
        %v5089 = vld [vmem:[#allocation11] sm:$0xf]
        %v5090 = vld [vmem:[#allocation11 + $0x4] sm:$0xf]
        %v5091 = vld [vmem:[#allocation11 + $0x8] sm:$0xf]
        %v5092 = vld [vmem:[#allocation11 + $0xc] sm:$0xf]
        %v5093 = vld [vmem:[#allocation11 + $0x10] sm:$0xf]
        %v5094 = vld [vmem:[#allocation11 + $0x14] sm:$0xf]
        %v5095 = vld [vmem:[#allocation11 + $0x18] sm:$0xf]
        %v5096 = vld [vmem:[#allocation11 + $0x1c] sm:$0xf]
        %v5097 = vld [vmem:[#allocation11 + $0x20] sm:$0xf]
        %v5098 = vld [vmem:[#allocation11 + $0x24] sm:$0xf]
        %v5099 = vld [vmem:[#allocation11 + $0x28] sm:$0xf]
        %v5100 = vld [vmem:[#allocation11 + $0x2c] sm:$0xf]
        %v5101 = vld [vmem:[#allocation11 + $0x30] sm:$0xf]
        %v5102 = vld [vmem:[#allocation11 + $0x34] sm:$0xf]
        %v5103 = vld [vmem:[#allocation11 + $0x38] sm:$0xf]
        %v5104 = vld [vmem:[#allocation11 + $0x3c] sm:$0xf]
        %v5105 = vld [vmem:[#allocation13] sm:$0x1]
        %v5107 = vlaneseq
        %v5108 = vshrl.u32 %v5107, 7
        %v5109 = vsub.s32 0, %v5108
        %v5110 = vrot.slane %v5105, %v5109
        %v5128 = vunpack.c.l.b16 %v5089
        %v5129 = vunpack.c.l.b16 %v5090
        %v5130 = vunpack.c.l.b16 %v5091
        %v5131 = vunpack.c.l.b16 %v5092
        %v5132 = vunpack.c.l.b16 %v5093
        %v5133 = vunpack.c.l.b16 %v5094
        %v5134 = vunpack.c.l.b16 %v5095
        %v5135 = vunpack.c.l.b16 %v5096
        %v5136 = vunpack.c.l.b16 %v5097
        %v5137 = vunpack.c.l.b16 %v5098
        %v5138 = vunpack.c.l.b16 %v5099
        %v5139 = vunpack.c.l.b16 %v5100
        %v5140 = vunpack.c.l.b16 %v5101
        %v5141 = vunpack.c.l.b16 %v5102
        %v5142 = vunpack.c.l.b16 %v5103
        %v5143 = vunpack.c.l.b16 %v5104
        %v5144 = vpack.c.b16 %v5129, %v5128
        %v5145 = vpack.c.b16 %v5131, %v5130
        %v5146 = vpack.c.b16 %v5133, %v5132
        %v5147 = vpack.c.b16 %v5135, %v5134
        %v5148 = vpack.c.b16 %v5137, %v5136
        %v5149 = vpack.c.b16 %v5139, %v5138
        %v5150 = vpack.c.b16 %v5141, %v5140
        %v5151 = vpack.c.b16 %v5143, %v5142
        %5160 = vmatprep.subr.bf16.mxu0 0
        %5161 = vmatpush1.bf16.msra.mxu0 %v5151
        %5162 = vmatprep.subr.bf16.mxu0 0
        %5163 = vmatpush1.bf16.msra.mxu0 %v5150
        %5164 = vmatprep.subr.bf16.mxu0 0
        %5165 = vmatpush1.bf16.msra.mxu0 %v5149
        %5166 = vmatprep.subr.bf16.mxu0 0
        %5167 = vmatpush1.bf16.msra.mxu0 %v5148
        %5168 = vmatprep.subr.bf16.mxu0 0
        %5169 = vmatpush1.bf16.msra.mxu0 %v5147
        %5170 = vmatprep.subr.bf16.mxu0 0
        %5171 = vmatpush1.bf16.msra.mxu0 %v5146
        %5172 = vmatprep.subr.bf16.mxu0 0
        %5173 = vmatpush1.bf16.msra.mxu0 %v5145
        %5174 = vmatprep.subr.bf16.mxu0 0
        %5175 = vmatpush1.bf16.msra.mxu0 %v5144
        %5176 = vmatprep.subr.bf16.mxu0 0
        %5177 = vmatpush2.bf16.msra.mxu0 0
        %5178 = vmatprep.subr.bf16.mxu0 0
        %5179 = vmatpush2.bf16.msra.mxu0 0
        %5180 = vmatprep.subr.bf16.mxu0 0
        %5181 = vmatpush2.bf16.msra.mxu0 0
        %5182 = vmatprep.subr.bf16.mxu0 0
        %5183 = vmatpush2.bf16.msra.mxu0 0
        %5184 = vmatprep.subr.bf16.mxu0 0
        %5185 = vmatpush2.bf16.msra.mxu0 0
        %5186 = vmatprep.subr.bf16.mxu0 0
        %5187 = vmatpush2.bf16.msra.mxu0 0
        %5188 = vmatprep.subr.bf16.mxu0 0
        %5189 = vmatpush2.bf16.msra.mxu0 0
        %5190 = vmatprep.subr.bf16.mxu0 0
        %5191 = vmatpush2.bf16.msra.mxu0 0
        %5192 = vmatprep.mubr.bf16.mxu0 0
        %5193 = vmatmul.mubr.bf16.gmra.mxu0 %v5081
        %v5194 = vpop.f32.mrf.mxu0
        %v5195 = vadd.f32 %v5110, %v5194
        %v5196 = vpop.f32.mrf.mxu0
        %v5197 = vpop.f32.mrf.mxu0
        %v5198 = vadd.f32 %v5110, %v5197
        %v5199 = vpop.f32.mrf.mxu0
        %5200 = vmatprep.mubr.bf16.mxu0 0
        %5201 = vmatmul.mubr.bf16.gmra.mxu0 %v5082
        %v5202 = vpop.f32.mrf.mxu0
        %v5203 = vadd.f32 %v5110, %v5202
        %v5204 = vpop.f32.mrf.mxu0
        %v5205 = vpop.f32.mrf.mxu0
        %v5206 = vadd.f32 %v5110, %v5205
        %v5207 = vpop.f32.mrf.mxu0
        %5208 = vmatprep.mubr.bf16.mxu0 0
        %5209 = vmatmul.mubr.bf16.gmra.mxu0 %v5083
        %v5210 = vpop.f32.mrf.mxu0
        %v5211 = vadd.f32 %v5110, %v5210
        %v5212 = vpop.f32.mrf.mxu0
        %v5213 = vpop.f32.mrf.mxu0
        %v5214 = vadd.f32 %v5110, %v5213
        %v5215 = vpop.f32.mrf.mxu0
        %5216 = vmatprep.mubr.bf16.mxu0 0
        %5217 = vmatmul.mubr.bf16.gmra.mxu0 %v5084
        %v5218 = vpop.f32.mrf.mxu0
        %v5219 = vadd.f32 %v5110, %v5218
        %v5220 = vpop.f32.mrf.mxu0
        %v5221 = vpop.f32.mrf.mxu0
        %v5222 = vadd.f32 %v5110, %v5221
        %v5223 = vpop.f32.mrf.mxu0
        %5224 = vmatprep.mubr.bf16.mxu0 0
        %5225 = vmatmul.mubr.bf16.gmra.mxu0 %v5085
        %v5226 = vpop.f32.mrf.mxu0
        %v5227 = vadd.f32 %v5110, %v5226
        %v5228 = vpop.f32.mrf.mxu0
        %v5229 = vpop.f32.mrf.mxu0
        %v5230 = vadd.f32 %v5110, %v5229
        %v5231 = vpop.f32.mrf.mxu0
        %5232 = vmatprep.mubr.bf16.mxu0 0
        %5233 = vmatmul.mubr.bf16.gmra.mxu0 %v5086
        %v5234 = vpop.f32.mrf.mxu0
        %v5235 = vadd.f32 %v5110, %v5234
        %v5236 = vpop.f32.mrf.mxu0
        %v5237 = vpop.f32.mrf.mxu0
        %v5238 = vadd.f32 %v5110, %v5237
        %v5239 = vpop.f32.mrf.mxu0
        %5240 = vmatprep.mubr.bf16.mxu0 0
        %5241 = vmatmul.mubr.bf16.gmra.mxu0 %v5087
        %v5242 = vpop.f32.mrf.mxu0
        %v5243 = vadd.f32 %v5110, %v5242
        %v5244 = vpop.f32.mrf.mxu0
        %v5245 = vpop.f32.mrf.mxu0
        %v5246 = vadd.f32 %v5110, %v5245
        %v5247 = vpop.f32.mrf.mxu0
        %5248 = vmatprep.mubr.bf16.mxu0 0
        %5249 = vmatmul.mubr.bf16.gmra.mxu0 %v5088
        %v5250 = vpop.f32.mrf.mxu0
        %v5251 = vadd.f32 %v5110, %v5250
        %v5252 = vpop.f32.mrf.mxu0
        %v5253 = vpop.f32.mrf.mxu0
        %v5254 = vadd.f32 %v5110, %v5253
        %v5255 = vpop.f32.mrf.mxu0
        %5256 = vdwg.mxu0
        %5257 = vst [vmem:[%s380] sm:$0xff] %v5195
        %5258 = vst [vmem:[%s380 + $0x8] sm:$0xff] %v5198
        %5259 = vst [vmem:[%s380 + $0x10] sm:$0xff] %v5203
        %5260 = vst [vmem:[%s380 + $0x18] sm:$0xff] %v5206
        %5261 = vst [vmem:[%s380 + $0x20] sm:$0xff] %v5211
        %5262 = vst [vmem:[%s380 + $0x28] sm:$0xff] %v5214
        %5263 = vst [vmem:[%s380 + $0x30] sm:$0xff] %v5219
        %5264 = vst [vmem:[%s380 + $0x38] sm:$0xff] %v5222
        %5265 = vst [vmem:[%s380 + $0x40] sm:$0xff] %v5227
        %5266 = vst [vmem:[%s380 + $0x48] sm:$0xff] %v5230
        %5267 = vst [vmem:[%s380 + $0x50] sm:$0xff] %v5235
        %5268 = vst [vmem:[%s380 + $0x58] sm:$0xff] %v5238
        %5269 = vst [vmem:[%s380 + $0x60] sm:$0xff] %v5243
        %5270 = vst [vmem:[%s380 + $0x68] sm:$0xff] %v5246
        %5271 = vst [vmem:[%s380 + $0x70] sm:$0xff] %v5251
        %5272 = vst [vmem:[%s380 + $0x78] sm:$0xff] %v5254
        %s5273 = sand.u32 %s187, 1
        %s5274 = scalar_lea.sflag [#allocation4], %s5273
        %s5275 = sand.u32 %s187, 1
        %s5276 = smul.addr %s5275, 128
        %s5277 = scalar_lea.vmem [#allocation14], %s5276
        // Predicated region
        $region77: #{tpu_custom_call.1} parent=47 // pred_check
          %p5278 = pneg %p197
        $region78: #{tpu_custom_call.1} parent=47 // pred_check_branch
          %5280 = sbr.rel (%p5278) target = $region80
        $region79: #{tpu_custom_call.1} parent=47 // pred_region
          %s5281 = smul.u32 16, %s27
          %s5283 = ssub.s32 2048, 2048
          %5284 = vsyncadd %s5274, %s5283
          %s5285 = smul.addr %s5281, 128
          %s5286 = scalar_lea.hbm %s7, %s5285
          %s5287 = sshll.u32 %s5277, 4
          %s5288 = int_to_ptr.vmem [resolvable:$true] %s5287
          %5293 = dma.vmem_to_hbm [thread:$0]  %s5288, 2048, %s5286, %s5274, 128, 128, 8
        $region80: #{tpu_custom_call.1} parent=47 // pred_fallthru
          _
      $region48: #{tpu_custom_call.1} parent=5 // pred_fallthru
        _
      %p5294 = scmp.le.s32.totalorder 2, %s22
      // Predicated region
      $region81: #{tpu_custom_call.1} parent=5 // pred_check
        %p5295 = pneg %p5294
      $region82: #{tpu_custom_call.1} parent=5 // pred_check_branch
        %5297 = sbr.rel (%p5295) target = $region84
      $region83: #{tpu_custom_call.1} parent=5 // pred_region
        %s5298 = ssub.s32 %s22, 2
        // Predicated region
        $region85: #{tpu_custom_call.1} parent=83 // pred_check
          %p5299 = pneg %p203
        $region86: #{tpu_custom_call.1} parent=83 // pred_check_branch
          %5301 = sbr.rel (%p5299) target = $region88
        $region87: #{tpu_custom_call.1} parent=83 // pred_region
          %s5302 = sand.u32 %s188, 1
          %s5303 = scalar_lea.sflag [#allocation4], %s5302
          %s5304 = sand.u32 %s188, 1
          %s5305 = smul.addr %s5304, 128
          %s5306 = scalar_lea.vmem [#allocation14], %s5305
          %5307 = dma.done %s5303, 2048
        $region88: #{tpu_custom_call.1} parent=83 // pred_fallthru
          _
      $region84: #{tpu_custom_call.1} parent=5 // pred_fallthru
        _
    $region6: #{tpu_custom_call.1} parent=1 // loop_footer
      %s26 = sadd.s32 1, %s22
    $region7: #{tpu_custom_call.1} parent=1 // loop_footer_branch
      %21 = sbr.rel target = $region3
    $region8: #{tpu_custom_call.1} parent=1 // loop_exit
      _
    %5308 = vsyncpa [#allocation3], 1
    %s5309 = scalar_lea.sflag [#allocation3], 1
    %5310 = vsyncpa %s5309, 1
    %5311 = vsyncpa [#allocation6], 1
    %5312 = vsyncpa [#allocation9], 1
    %5313 = vsyncpa [#allocation12], 1
    %5314 = vsyncpa [#allocation4], 1
    %s5315 = scalar_lea.sflag [#allocation4], 1
    %5316 = vsyncpa %s5315, 1

</llo_original>
